<compile_context>
chip_gen: v7x
topology: tpu7x:2x2x1
jax: 0.10.0
libtpu: 0.0.40
codegen_flags: <defaults>
</compile_context>

<pallas_src>
import functools

import numpy as np

import jax
import jax.numpy as jnp
from jax.experimental import pallas as pl
from jax.experimental.pallas import tpu as pltpu

LANE = 128


# -----------------------------------------------------------------------------
# Fully fused Bottleneck kernel (one grid step == one batch element)
# -----------------------------------------------------------------------------
def bottleneck_kernel(x_ref, w1_ref, b1_ref, w2_ref, b2_ref, w3_ref, b3_ref,
                      fc1w_ref, fc1b_ref, fc2w_ref, fc2b_ref, msp_ref, bsp_ref,
                      o_ref, *, h, w, c_out):
    hw = h * w
    x = x_ref[0]                                    # (HW, Cp) f32, also identity
    xb = x.astype(jnp.bfloat16)

    # ---- conv1 (1x1) + BN1 (scale folded into weights) + ReLU ---------------
    y1 = jnp.dot(xb, w1_ref[...], preferred_element_type=jnp.float32)
    y1 = jnp.maximum(y1 + b1_ref[...], 0.0)         # (HW, Cp) f32

    # ---- conv2 (3x3, pad 1) as ONE im2col matmul (K = 9*Cp) -----------------
    # Taps gathered with XLU sublane rolls + masks on the flattened tile.
    pix = jax.lax.broadcasted_iota(jnp.int32, (hw, 1), 0)
    if (w & (w - 1)) == 0:
        pw = jnp.bitwise_and(pix, w - 1)            # column index (w is pow2)
    else:
        pw = pix % w
    patches = []
    for dh in (-1, 0, 1):
        for dw in (-1, 0, 1):
            shift = dh * w + dw
            if shift == 0:
                tap = y1
            else:
                # out[p] = y1[(p + shift) mod HW]   (np.roll semantics)
                tap = pltpu.roll(y1, (-shift) % hw, axis=0)
            conds = []
            if dh < 0:
                conds.append(pix >= (-dh) * w)
            elif dh > 0:
                conds.append(pix < (h - dh) * w)
            if dw < 0:
                conds.append(pw >= -dw)
            elif dw > 0:
                conds.append(pw < w - dw)
            if conds:
                valid = conds[0]
                for cnd in conds[1:]:
                    valid = jnp.logical_and(valid, cnd)
                tap = jnp.where(valid, tap, 0.0)
            patches.append(tap.astype(jnp.bfloat16))
    im2col = jnp.concatenate(patches, axis=-1)       # (HW, 9*Cp) bf16
    y2 = jnp.dot(im2col, w2_ref[...], preferred_element_type=jnp.float32)
    y2 = jnp.maximum(y2 + b2_ref[...], 0.0)          # (HW, Cp) f32

    # ---- conv3 (1x1) + BN3 (no ReLU) ----------------------------------------
    y3 = jnp.dot(y2.astype(jnp.bfloat16), w3_ref[...],
                 preferred_element_type=jnp.float32) + b3_ref[...]

    # ---- CBAM ChannelGate: global avg/max pool -> shared MLP -> sigmoid -----
    pooled = jnp.concatenate(
        [jnp.mean(y3, axis=0, keepdims=True),
         jnp.max(y3, axis=0, keepdims=True)], axis=0)            # (2, Cp)
    hid = jnp.maximum(
        jnp.dot(pooled, fc1w_ref[...], preferred_element_type=jnp.float32)
        + fc1b_ref[...], 0.0)
    att2 = (jnp.dot(hid, fc2w_ref[...], preferred_element_type=jnp.float32)
            + fc2b_ref[...])                                      # (2, Cp)
    att = att2[0:1, :] + att2[1:2, :]                             # (1, Cp)
    cs = 1.0 / (1.0 + jnp.exp(-att))
    og = y3 * cs                                                  # (HW, Cp)

    # ---- CBAM SpatialGate: channel max/mean pool -> 7x7 conv (precomputed
    #      conv-matrix, BN folded) -> sigmoid ---------------------------------
    lane = jax.lax.broadcasted_iota(jnp.int32, (1, og.shape[1]), 1)
    cp_max = jnp.max(jnp.where(lane < c_out, og, -1e30), axis=1, keepdims=True)
    cp_mean = jnp.sum(og, axis=1, keepdims=True) * (1.0 / c_out)
    cp = jnp.concatenate([cp_max, cp_mean], axis=0)               # (2*HW, 1)
    sp = jnp.dot(msp_ref[...], cp, preferred_element_type=jnp.float32)
    ss = 1.0 / (1.0 + jnp.exp(-(sp + bsp_ref[...])))              # (HW, 1)

    # ---- spatial gate * channel-gated out + residual + ReLU (single store) --
    o_ref[...] = jnp.maximum(og * ss + x, 0.0)[None]


# -----------------------------------------------------------------------------
# Parameter preparation (done once, outside the hot path)
# -----------------------------------------------------------------------------
def _fold_conv_bn(w_oihw, gamma, beta, mean, var, eps, cin_p, cout_p):
    """OIHW conv weight + eval-mode BN -> folded (KH*KW*cin_p, cout_p) bf16
    weights and (1, cout_p) f32 bias. Zero padding keeps padded lanes zero."""
    cout, cin, kh, kw = w_oihw.shape
    scale = gamma / jnp.sqrt(var + eps)
    bias = beta - mean * scale
    wk = jnp.transpose(w_oihw, (2, 3, 1, 0)) * scale[None, None, None, :]
    wk = jnp.pad(wk, ((0, 0), (0, 0), (0, cin_p - cin), (0, cout_p - cout)))
    wk = wk.reshape(kh * kw * cin_p, cout_p).astype(jnp.bfloat16)
    bias = jnp.pad(bias, (0, cout_p - cout)).reshape(1, cout_p).astype(jnp.float32)
    return wk, bias


def _pad_linear(wt_torch, b, in_p, out_p):
    """torch Linear weight (out, in) -> padded (in_p, out_p) f32 + (1, out_p) bias."""
    out_f, in_f = wt_torch.shape
    wt = jnp.pad(jnp.transpose(wt_torch), ((0, in_p - in_f), (0, out_p - out_f)))
    bp = jnp.pad(b, (0, out_p - out_f)).reshape(1, out_p)
    return wt.astype(jnp.float32), bp.astype(jnp.float32)


def _spatial_conv_matrix(ws_oihw, gamma, beta, mean, var, eps, h, w):
    """7x7 (2->1) conv + BN as a dense (H*W, 2*H*W) matrix (BN scale folded)
    acting on the flattened [max-pool; mean-pool] maps, plus its (1,1) bias."""
    k = ws_oihw.shape[-1]
    pad = (k - 1) // 2
    scale = gamma / jnp.sqrt(var + eps)                          # (1,)
    bias = (beta - mean * scale).reshape(1, 1).astype(jnp.float32)
    wsc = (ws_oihw[0] * scale[0]).astype(jnp.float32)            # (2, k, k)

    rows, cols, ci, khi, kwi = [], [], [], [], []
    for hh in range(h):
        for ww in range(w):
            p_out = hh * w + ww
            for dh in range(-pad, pad + 1):
                for dw in range(-pad, pad + 1):
                    sh, sw = hh + dh, ww + dw
                    if 0 <= sh < h and 0 <= sw < w:
                        for c in range(2):                       # 0=max, 1=mean
                            rows.append(p_out)
                            cols.append(c * h * w + sh * w + sw)
                            ci.append(c)
                            khi.append(dh + pad)
                            kwi.append(dw + pad)
    vals = wsc[np.asarray(ci), np.asarray(khi), np.asarray(kwi)]
    msp = jnp.zeros((h * w, 2 * h * w), jnp.float32).at[
        np.asarray(rows), np.asarray(cols)].set(vals)
    return msp, bias


def prepare_params(p, *, h, w, eps=1e-5):
    cp_ = LANE
    width = p["w1"].shape[0]
    c3 = p["w3"].shape[0]
    assert max(p["w1"].shape[1], width, c3, p["fc1_w"].shape[0]) <= cp_
    w1, b1 = _fold_conv_bn(p["w1"], p["g1"], p["b1"], p["m1"], p["v1"], eps, cp_, cp_)
    w2, b2 = _fold_conv_bn(p["w2"], p["g2"], p["b2"], p["m2"], p["v2"], eps, cp_, cp_)
    w3, b3 = _fold_conv_bn(p["w3"], p["g3"], p["b3"], p["m3"], p["v3"], eps, cp_, cp_)
    fc1w, fc1b = _pad_linear(p["fc1_w"], p["fc1_b"], cp_, cp_)
    fc2w, fc2b = _pad_linear(p["fc2_w"], p["fc2_b"], cp_, cp_)
    msp, bsp = _spatial_conv_matrix(p["ws"], p["gs"], p["bs"], p["ms"], p["vs"],
                                    eps, h, w)
    return dict(w1=w1, b1=b1, w2=w2, b2=b2, w3=w3, b3=b3,
                fc1w=fc1w, fc1b=fc1b, fc2w=fc2w, fc2b=fc2b, msp=msp, bsp=bsp)


# -----------------------------------------------------------------------------
# Bottleneck forward (NCHW in / NCHW out) — one fused pallas_call
# -----------------------------------------------------------------------------
def bottleneck_forward(x_nchw, prm, *, c_out):
    n, cin, h, w = x_nchw.shape
    hw = h * w
    cp_ = LANE
    assert cin <= cp_ and c_out <= cp_
    # TODO(synk): downsample branch is None in this config (stride=1, cin==c_out).

    # NCHW -> flattened, channel-padded NHWC (single boundary transpose).
    x = jnp.transpose(x_nchw, (0, 2, 3, 1)).reshape(n, hw, cin)
    x = jnp.pad(x, ((0, 0), (0, 0), (0, cp_ - cin))).astype(jnp.float32)

    kernel = functools.partial(bottleneck_kernel, h=h, w=w, c_out=c_out)

    out_flat = pl.pallas_call(
        kernel,
        out_shape=jax.ShapeDtypeStruct((n, hw, cp_), jnp.float32),
        grid_spec=pltpu.PrefetchScalarGridSpec(
            num_scalar_prefetch=0,
            grid=(n,),
            in_specs=[
                pl.BlockSpec((1, hw, cp_), lambda b: (b, 0, 0)),      # x / identity
                pl.BlockSpec((cp_, cp_), lambda b: (0, 0)),           # w1 (BN folded)
                pl.BlockSpec((1, cp_), lambda b: (0, 0)),             # b1
                pl.BlockSpec((9 * cp_, cp_), lambda b: (0, 0)),       # w2 im2col
                pl.BlockSpec((1, cp_), lambda b: (0, 0)),             # b2
                pl.BlockSpec((cp_, cp_), lambda b: (0, 0)),           # w3
                pl.BlockSpec((1, cp_), lambda b: (0, 0)),             # b3
                pl.BlockSpec((cp_, cp_), lambda b: (0, 0)),           # fc1 (C -> hid)
                pl.BlockSpec((1, cp_), lambda b: (0, 0)),             # fc1 bias
                pl.BlockSpec((cp_, cp_), lambda b: (0, 0)),           # fc2 (hid -> C)
                pl.BlockSpec((1, cp_), lambda b: (0, 0)),             # fc2 bias
                pl.BlockSpec((hw, 2 * hw), lambda b: (0, 0)),         # 7x7 conv matrix
                pl.BlockSpec((1, 1), lambda b: (0, 0)),               # spatial BN bias
            ],
            out_specs=pl.BlockSpec((1, hw, cp_), lambda b: (b, 0, 0)),
        ),
        compiler_params=pltpu.CompilerParams(
            dimension_semantics=("parallel",),
            vmem_limit_bytes=32 * 1024 * 1024),
    )(x, prm["w1"], prm["b1"], prm["w2"], prm["b2"], prm["w3"], prm["b3"],
      prm["fc1w"], prm["fc1b"], prm["fc2w"], prm["fc2b"], prm["msp"], prm["bsp"])

    out = out_flat[:, :, :c_out].reshape(n, h, w, c_out)
    return jnp.transpose(out, (0, 3, 1, 2))


# -----------------------------------------------------------------------------
# Pure-JAX reference (same eval-mode semantics) for validation
# -----------------------------------------------------------------------------
def _ref_conv_bn(x, w, gamma, beta, mean, var, *, stride, padding, eps, relu):
    y = jax.lax.conv_general_dilated(
        x, w, (stride, stride), ((padding, padding), (padding, padding)),
        dimension_numbers=("NCHW", "OIHW", "NCHW"))
    s = (gamma / jnp.sqrt(var + eps)).reshape(1, -1, 1, 1)
    b = (beta - mean * gamma / jnp.sqrt(var + eps)).reshape(1, -1, 1, 1)
    y = y * s + b
    return jnp.maximum(y, 0.0) if relu else y


def reference_bottleneck(x, p, *, eps=1e-5):
    o = _ref_conv_bn(x, p["w1"], p["g1"], p["b1"], p["m1"], p["v1"],
                     stride=1, padding=0, eps=eps, relu=True)
    o = _ref_conv_bn(o, p["w2"], p["g2"], p["b2"], p["m2"], p["v2"],
                     stride=1, padding=1, eps=eps, relu=True)
    o = _ref_conv_bn(o, p["w3"], p["g3"], p["b3"], p["m3"], p["v3"],
                     stride=1, padding=0, eps=eps, relu=False)
    avg = jnp.mean(o, axis=(2, 3))
    mx = jnp.max(o, axis=(2, 3))

    def mlp(v):
        return jax.nn.relu(v @ p["fc1_w"].T + p["fc1_b"]) @ p["fc2_w"].T + p["fc2_b"]

    cs = jax.nn.sigmoid(mlp(avg) + mlp(mx))
    o = o * cs[:, :, None, None]
    cp = jnp.concatenate([jnp.max(o, axis=1, keepdims=True),
                          jnp.mean(o, axis=1, keepdims=True)], axis=1)
    sp = _ref_conv_bn(cp, p["ws"], p["gs"], p["bs"], p["ms"], p["vs"],
                      stride=1, padding=3, eps=eps, relu=False)
    ss = jax.nn.sigmoid(sp)
    return jnp.maximum(o * ss + x, 0.0)


if __name__ == "__main__":
    key = jax.random.PRNGKey(0)
    ks = jax.random.split(key, 16)

    # Bottleneck(in_channel=64, out_channel=16, stride=1, downsample=None)
    N, in_c, H, W = 2, 64, 16, 16
    out_c, expansion = 16, 4
    width = out_c                        # groups=1, width_per_group=64
    c3 = out_c * expansion               # 64 output channels
    # TODO(synk): the spec builds CBAM(out_channel), whose channel-gate MLP cannot
    # consume the (out_channel*expansion)-channel conv3 output; the gate is built
    # with out_channel*expansion channels so the forward is well-defined (kernel
    # and reference are consistent).
    gate_c = c3
    hidden = max(gate_c // 16, 1)        # reduction_ratio = 16
    eps = 1e-5

    def bn_params(k, c):
        k1, k2, k3, k4 = jax.random.split(k, 4)
        return (1.0 + 0.1 * jax.random.normal(k1, (c,), jnp.float32),
                0.1 * jax.random.normal(k2, (c,), jnp.float32),
                0.1 * jax.random.normal(k3, (c,), jnp.float32),
                jax.nn.softplus(jax.random.normal(k4, (c,), jnp.float32)) + 0.5)

    x = jax.random.normal(ks[0], (N, in_c, H, W), jnp.float32)

    p = {}
    p["w1"] = 0.1 * jax.random.normal(ks[1], (width, in_c, 1, 1), jnp.float32)
    p["g1"], p["b1"], p["m1"], p["v1"] = bn_params(ks[2], width)
    p["w2"] = 0.1 * jax.random.normal(ks[3], (width, width, 3, 3), jnp.float32)
    p["g2"], p["b2"], p["m2"], p["v2"] = bn_params(ks[4], width)
    p["w3"] = 0.1 * jax.random.normal(ks[5], (c3, width, 1, 1), jnp.float32)
    p["g3"], p["b3"], p["m3"], p["v3"] = bn_params(ks[6], c3)
    p["fc1_w"] = 0.1 * jax.random.normal(ks[7], (hidden, gate_c), jnp.float32)
    p["fc1_b"] = 0.1 * jax.random.normal(ks[8], (hidden,), jnp.float32)
    p["fc2_w"] = 0.1 * jax.random.normal(ks[9], (gate_c, hidden), jnp.float32)
    p["fc2_b"] = 0.1 * jax.random.normal(ks[10], (hidden,), jnp.float32) \
        if False else 0.1 * jax.random.normal(ks[10], (gate_c,), jnp.float32)
    p["ws"] = 0.1 * jax.random.normal(ks[11], (1, 2, 7, 7), jnp.float32)
    p["gs"], p["bs"], p["ms"], p["vs"] = bn_params(ks[12], 1)

    prm = jax.block_until_ready(prepare_params(p, h=H, w=W, eps=eps))
    fwd = jax.jit(functools.partial(bottleneck_forward, c_out=c3))
    out = jax.block_until_ready(fwd(x, prm))

    ref = reference_bottleneck(x, p, eps=eps)

    assert out.shape == (N, c3, H, W), out.shape
    err = float(jnp.max(jnp.abs(out - ref)))
    assert err < 5e-2, f"max abs err = {err}"   # bf16 matmul operands, f32 accum
    print("KERNEL_OK")
</pallas_src>

<mosaic_0001>
module attributes {stable_mosaic.version = 11 : i64} {
  func.func @bottleneck_kernel(%arg0: i32, %arg1: memref<1x256x128xf32, #tpu.memory_space<vmem>>, %arg2: memref<128x128xbf16, #tpu.memory_space<vmem>>, %arg3: memref<1x128xf32, #tpu.memory_space<vmem>>, %arg4: memref<1152x128xbf16, #tpu.memory_space<vmem>>, %arg5: memref<1x128xf32, #tpu.memory_space<vmem>>, %arg6: memref<128x128xbf16, #tpu.memory_space<vmem>>, %arg7: memref<1x128xf32, #tpu.memory_space<vmem>>, %arg8: memref<128x128xf32, #tpu.memory_space<vmem>>, %arg9: memref<1x128xf32, #tpu.memory_space<vmem>>, %arg10: memref<128x128xf32, #tpu.memory_space<vmem>>, %arg11: memref<1x128xf32, #tpu.memory_space<vmem>>, %arg12: memref<256x512xf32, #tpu.memory_space<vmem>>, %arg13: memref<1x1xf32, #tpu.memory_space<vmem>>, %arg14: memref<1x256x128xf32, #tpu.memory_space<vmem>>) attributes {dimension_semantics = [#tpu.dimension_semantics<parallel>], iteration_bounds = array<i64: 2>, scalar_prefetch = 0 : i64, scratch_operands = 0 : i64, tpu.core_type = #tpu.core_type<tc>, window_params = [{transform_indices = @transform_0, window_bounds = array<i64: 1, 256, 128>}, {pipeline_mode = #tpu.pipeline_mode<synchronous>, transform_indices = @transform_1, window_bounds = array<i64: 128, 128>}, {pipeline_mode = #tpu.pipeline_mode<synchronous>, transform_indices = @transform_2, window_bounds = array<i64: 1, 128>}, {pipeline_mode = #tpu.pipeline_mode<synchronous>, transform_indices = @transform_3, window_bounds = array<i64: 1152, 128>}, {pipeline_mode = #tpu.pipeline_mode<synchronous>, transform_indices = @transform_4, window_bounds = array<i64: 1, 128>}, {pipeline_mode = #tpu.pipeline_mode<synchronous>, transform_indices = @transform_5, window_bounds = array<i64: 128, 128>}, {pipeline_mode = #tpu.pipeline_mode<synchronous>, transform_indices = @transform_6, window_bounds = array<i64: 1, 128>}, {pipeline_mode = #tpu.pipeline_mode<synchronous>, transform_indices = @transform_7, window_bounds = array<i64: 128, 128>}, {pipeline_mode = #tpu.pipeline_mode<synchronous>, transform_indices = @transform_8, window_bounds = array<i64: 1, 128>}, {pipeline_mode = #tpu.pipeline_mode<synchronous>, transform_indices = @transform_9, window_bounds = array<i64: 128, 128>}, {pipeline_mode = #tpu.pipeline_mode<synchronous>, transform_indices = @transform_10, window_bounds = array<i64: 1, 128>}, {pipeline_mode = #tpu.pipeline_mode<synchronous>, transform_indices = @transform_11, window_bounds = array<i64: 256, 512>}, {pipeline_mode = #tpu.pipeline_mode<synchronous>, transform_indices = @transform_12, window_bounds = array<i64: 1, 1>}, {transform_indices = @transform_13, window_bounds = array<i64: 1, 256, 128>}]} {
    %c0 = arith.constant 0 : index
    %c0_0 = arith.constant 0 : index
    %c0_1 = arith.constant 0 : index
    %0 = vector.load %arg1[%c0, %c0_0, %c0_1] : memref<1x256x128xf32, #tpu.memory_space<vmem>>, vector<1x256x128xf32>
    %1 = vector.shape_cast %0 : vector<1x256x128xf32> to vector<256x128xf32>
    %2 = arith.truncf %1 : vector<256x128xf32> to vector<256x128xbf16>
    %c0_2 = arith.constant 0 : index
    %c0_3 = arith.constant 0 : index
    %3 = vector.load %arg2[%c0_2, %c0_3] : memref<128x128xbf16, #tpu.memory_space<vmem>>, vector<128x128xbf16>
    %cst = arith.constant dense<0.000000e+00> : vector<256x128xf32>
    %4 = tpu.matmul %2, %3, %cst {dimension_numbers = #tpu.dot_dimension_numbers<[1], [0], [0], [1], [0, 0, 1, 1], [], []>} : vector<256x128xbf16>, vector<128x128xbf16>, vector<256x128xf32> -> vector<256x128xf32>
    %c0_4 = arith.constant 0 : index
    %c0_5 = arith.constant 0 : index
    %5 = vector.load %arg3[%c0_4, %c0_5] : memref<1x128xf32, #tpu.memory_space<vmem>>, vector<1x128xf32>
    %6 = vector.broadcast %5 : vector<1x128xf32> to vector<256x128xf32>
    %7 = arith.addf %4, %6 : vector<256x128xf32>
    %cst_6 = arith.constant 0.000000e+00 : f32
    %8 = vector.broadcast %cst_6 : f32 to vector<256x128xf32>
    %9 = arith.maximumf %7, %8 : vector<256x128xf32>
    %10 = tpu.iota {dimensions = array<i32: 0>} : vector<256x1xi32>
    %c15_i32 = arith.constant 15 : i32
    %11 = vector.broadcast %c15_i32 : i32 to vector<256x1xi32>
    %12 = arith.andi %10, %11 : vector<256x1xi32>
    %c17_i32 = arith.constant 17 : i32
    %13 = tpu.dynamic_rotate %9 by %c17_i32 dim 0 : vector<256x128xf32>, i32 -> vector<256x128xf32>
    %c16_i32 = arith.constant 16 : i32
    %14 = vector.broadcast %c16_i32 : i32 to vector<256x1xi32>
    %15 = arith.cmpi sge, %10, %14 : vector<256x1xi32>
    %c1_i32 = arith.constant 1 : i32
    %16 = vector.broadcast %c1_i32 : i32 to vector<256x1xi32>
    %17 = arith.cmpi sge, %12, %16 : vector<256x1xi32>
    %18 = arith.andi %15, %17 : vector<256x1xi1>
    %cst_7 = arith.constant 0.000000e+00 : f32
    %19 = vector.shape_cast %18 : vector<256x1xi1> to vector<256x1xi1>
    %20 = vector.broadcast %19 : vector<256x1xi1> to vector<256x128xi1>
    %21 = vector.broadcast %cst_7 : f32 to vector<256x128xf32>
    %22 = arith.select %20, %13, %21 : vector<256x128xi1>, vector<256x128xf32>
    %23 = arith.truncf %22 : vector<256x128xf32> to vector<256x128xbf16>
    %c16_i32_8 = arith.constant 16 : i32
    %24 = tpu.dynamic_rotate %9 by %c16_i32_8 dim 0 : vector<256x128xf32>, i32 -> vector<256x128xf32>
    %c16_i32_9 = arith.constant 16 : i32
    %25 = vector.broadcast %c16_i32_9 : i32 to vector<256x1xi32>
    %26 = arith.cmpi sge, %10, %25 : vector<256x1xi32>
    %cst_10 = arith.constant 0.000000e+00 : f32
    %27 = vector.shape_cast %26 : vector<256x1xi1> to vector<256x1xi1>
    %28 = vector.broadcast %27 : vector<256x1xi1> to vector<256x128xi1>
    %29 = vector.broadcast %cst_10 : f32 to vector<256x128xf32>
    %30 = arith.select %28, %24, %29 : vector<256x128xi1>, vector<256x128xf32>
    %31 = arith.truncf %30 : vector<256x128xf32> to vector<256x128xbf16>
    %c15_i32_11 = arith.constant 15 : i32
    %32 = tpu.dynamic_rotate %9 by %c15_i32_11 dim 0 : vector<256x128xf32>, i32 -> vector<256x128xf32>
    %c16_i32_12 = arith.constant 16 : i32
    %33 = vector.broadcast %c16_i32_12 : i32 to vector<256x1xi32>
    %34 = arith.cmpi sge, %10, %33 : vector<256x1xi32>
    %c15_i32_13 = arith.constant 15 : i32
    %35 = vector.broadcast %c15_i32_13 : i32 to vector<256x1xi32>
    %36 = arith.cmpi slt, %12, %35 : vector<256x1xi32>
    %37 = arith.andi %34, %36 : vector<256x1xi1>
    %cst_14 = arith.constant 0.000000e+00 : f32
    %38 = vector.shape_cast %37 : vector<256x1xi1> to vector<256x1xi1>
    %39 = vector.broadcast %38 : vector<256x1xi1> to vector<256x128xi1>
    %40 = vector.broadcast %cst_14 : f32 to vector<256x128xf32>
    %41 = arith.select %39, %32, %40 : vector<256x128xi1>, vector<256x128xf32>
    %42 = arith.truncf %41 : vector<256x128xf32> to vector<256x128xbf16>
    %c1_i32_15 = arith.constant 1 : i32
    %43 = tpu.dynamic_rotate %9 by %c1_i32_15 dim 0 : vector<256x128xf32>, i32 -> vector<256x128xf32>
    %c1_i32_16 = arith.constant 1 : i32
    %44 = vector.broadcast %c1_i32_16 : i32 to vector<256x1xi32>
    %45 = arith.cmpi sge, %12, %44 : vector<256x1xi32>
    %cst_17 = arith.constant 0.000000e+00 : f32
    %46 = vector.shape_cast %45 : vector<256x1xi1> to vector<256x1xi1>
    %47 = vector.broadcast %46 : vector<256x1xi1> to vector<256x128xi1>
    %48 = vector.broadcast %cst_17 : f32 to vector<256x128xf32>
    %49 = arith.select %47, %43, %48 : vector<256x128xi1>, vector<256x128xf32>
    %50 = arith.truncf %49 : vector<256x128xf32> to vector<256x128xbf16>
    %51 = arith.truncf %9 : vector<256x128xf32> to vector<256x128xbf16>
    %c255_i32 = arith.constant 255 : i32
    %52 = tpu.dynamic_rotate %9 by %c255_i32 dim 0 : vector<256x128xf32>, i32 -> vector<256x128xf32>
    %c15_i32_18 = arith.constant 15 : i32
    %53 = vector.broadcast %c15_i32_18 : i32 to vector<256x1xi32>
    %54 = arith.cmpi slt, %12, %53 : vector<256x1xi32>
    %cst_19 = arith.constant 0.000000e+00 : f32
    %55 = vector.shape_cast %54 : vector<256x1xi1> to vector<256x1xi1>
    %56 = vector.broadcast %55 : vector<256x1xi1> to vector<256x128xi1>
    %57 = vector.broadcast %cst_19 : f32 to vector<256x128xf32>
    %58 = arith.select %56, %52, %57 : vector<256x128xi1>, vector<256x128xf32>
    %59 = arith.truncf %58 : vector<256x128xf32> to vector<256x128xbf16>
    %c241_i32 = arith.constant 241 : i32
    %60 = tpu.dynamic_rotate %9 by %c241_i32 dim 0 : vector<256x128xf32>, i32 -> vector<256x128xf32>
    %c240_i32 = arith.constant 240 : i32
    %61 = vector.broadcast %c240_i32 : i32 to vector<256x1xi32>
    %62 = arith.cmpi slt, %10, %61 : vector<256x1xi32>
    %c1_i32_20 = arith.constant 1 : i32
    %63 = vector.broadcast %c1_i32_20 : i32 to vector<256x1xi32>
    %64 = arith.cmpi sge, %12, %63 : vector<256x1xi32>
    %65 = arith.andi %62, %64 : vector<256x1xi1>
    %cst_21 = arith.constant 0.000000e+00 : f32
    %66 = vector.shape_cast %65 : vector<256x1xi1> to vector<256x1xi1>
    %67 = vector.broadcast %66 : vector<256x1xi1> to vector<256x128xi1>
    %68 = vector.broadcast %cst_21 : f32 to vector<256x128xf32>
    %69 = arith.select %67, %60, %68 : vector<256x128xi1>, vector<256x128xf32>
    %70 = arith.truncf %69 : vector<256x128xf32> to vector<256x128xbf16>
    %c240_i32_22 = arith.constant 240 : i32
    %71 = tpu.dynamic_rotate %9 by %c240_i32_22 dim 0 : vector<256x128xf32>, i32 -> vector<256x128xf32>
    %c240_i32_23 = arith.constant 240 : i32
    %72 = vector.broadcast %c240_i32_23 : i32 to vector<256x1xi32>
    %73 = arith.cmpi slt, %10, %72 : vector<256x1xi32>
    %cst_24 = arith.constant 0.000000e+00 : f32
    %74 = vector.shape_cast %73 : vector<256x1xi1> to vector<256x1xi1>
    %75 = vector.broadcast %74 : vector<256x1xi1> to vector<256x128xi1>
    %76 = vector.broadcast %cst_24 : f32 to vector<256x128xf32>
    %77 = arith.select %75, %71, %76 : vector<256x128xi1>, vector<256x128xf32>
    %78 = arith.truncf %77 : vector<256x128xf32> to vector<256x128xbf16>
    %c239_i32 = arith.constant 239 : i32
    %79 = tpu.dynamic_rotate %9 by %c239_i32 dim 0 : vector<256x128xf32>, i32 -> vector<256x128xf32>
    %c240_i32_25 = arith.constant 240 : i32
    %80 = vector.broadcast %c240_i32_25 : i32 to vector<256x1xi32>
    %81 = arith.cmpi slt, %10, %80 : vector<256x1xi32>
    %c15_i32_26 = arith.constant 15 : i32
    %82 = vector.broadcast %c15_i32_26 : i32 to vector<256x1xi32>
    %83 = arith.cmpi slt, %12, %82 : vector<256x1xi32>
    %84 = arith.andi %81, %83 : vector<256x1xi1>
    %cst_27 = arith.constant 0.000000e+00 : f32
    %85 = vector.shape_cast %84 : vector<256x1xi1> to vector<256x1xi1>
    %86 = vector.broadcast %85 : vector<256x1xi1> to vector<256x128xi1>
    %87 = vector.broadcast %cst_27 : f32 to vector<256x128xf32>
    %88 = arith.select %86, %79, %87 : vector<256x128xi1>, vector<256x128xf32>
    %89 = arith.truncf %88 : vector<256x128xf32> to vector<256x128xbf16>
    %90 = tpu.concatenate %23, %31, %42, %50, %51, %59, %70, %78, %89 in 1 : vector<256x128xbf16>, vector<256x128xbf16>, vector<256x128xbf16>, vector<256x128xbf16>, vector<256x128xbf16>, vector<256x128xbf16>, vector<256x128xbf16>, vector<256x128xbf16>, vector<256x128xbf16> -> vector<256x1152xbf16>
    %c0_28 = arith.constant 0 : index
    %c0_29 = arith.constant 0 : index
    %91 = vector.load %arg4[%c0_28, %c0_29] : memref<1152x128xbf16, #tpu.memory_space<vmem>>, vector<1152x128xbf16>
    %cst_30 = arith.constant dense<0.000000e+00> : vector<256x128xf32>
    %92 = tpu.matmul %90, %91, %cst_30 {dimension_numbers = #tpu.dot_dimension_numbers<[1], [0], [0], [1], [0, 0, 1, 1], [], []>} : vector<256x1152xbf16>, vector<1152x128xbf16>, vector<256x128xf32> -> vector<256x128xf32>
    %c0_31 = arith.constant 0 : index
    %c0_32 = arith.constant 0 : index
    %93 = vector.load %arg5[%c0_31, %c0_32] : memref<1x128xf32, #tpu.memory_space<vmem>>, vector<1x128xf32>
    %94 = vector.broadcast %93 : vector<1x128xf32> to vector<256x128xf32>
    %95 = arith.addf %92, %94 : vector<256x128xf32>
    %cst_33 = arith.constant 0.000000e+00 : f32
    %96 = vector.broadcast %cst_33 : f32 to vector<256x128xf32>
    %97 = arith.maximumf %95, %96 : vector<256x128xf32>
    %98 = arith.truncf %97 : vector<256x128xf32> to vector<256x128xbf16>
    %c0_34 = arith.constant 0 : index
    %c0_35 = arith.constant 0 : index
    %99 = vector.load %arg6[%c0_34, %c0_35] : memref<128x128xbf16, #tpu.memory_space<vmem>>, vector<128x128xbf16>
    %cst_36 = arith.constant dense<0.000000e+00> : vector<256x128xf32>
    %100 = tpu.matmul %98, %99, %cst_36 {dimension_numbers = #tpu.dot_dimension_numbers<[1], [0], [0], [1], [0, 0, 1, 1], [], []>} : vector<256x128xbf16>, vector<128x128xbf16>, vector<256x128xf32> -> vector<256x128xf32>
    %c0_37 = arith.constant 0 : index
    %c0_38 = arith.constant 0 : index
    %101 = vector.load %arg7[%c0_37, %c0_38] : memref<1x128xf32, #tpu.memory_space<vmem>>, vector<1x128xf32>
    %102 = vector.broadcast %101 : vector<1x128xf32> to vector<256x128xf32>
    %103 = arith.addf %100, %102 : vector<256x128xf32>
    %cst_39 = arith.constant dense<0.000000e+00> : vector<128xf32>
    %104 = vector.multi_reduction <add>, %103, %cst_39 [0] : vector<256x128xf32> to vector<128xf32>
    %105 = vector.shape_cast %104 : vector<128xf32> to vector<1x128xf32>
    %cst_40 = arith.constant 2.560000e+02 : f32
    %106 = vector.broadcast %cst_40 : f32 to vector<1x128xf32>
    %107 = arith.divf %105, %106 : vector<1x128xf32>
    %cst_41 = arith.constant dense<0xFF800000> : vector<128xf32>
    %108 = vector.multi_reduction <maximumf>, %103, %cst_41 [0] : vector<256x128xf32> to vector<128xf32>
    %109 = vector.shape_cast %108 : vector<128xf32> to vector<1x128xf32>
    %110 = tpu.concatenate %107, %109 in 0 : vector<1x128xf32>, vector<1x128xf32> -> vector<2x128xf32>
    %c0_42 = arith.constant 0 : index
    %c0_43 = arith.constant 0 : index
    %111 = vector.load %arg8[%c0_42, %c0_43] : memref<128x128xf32, #tpu.memory_space<vmem>>, vector<128x128xf32>
    %cst_44 = arith.constant dense<0.000000e+00> : vector<2x128xf32>
    %112 = tpu.matmul %110, %111, %cst_44 {dimension_numbers = #tpu.dot_dimension_numbers<[1], [0], [0], [1], [0, 0, 1, 1], [], []>} : vector<2x128xf32>, vector<128x128xf32>, vector<2x128xf32> -> vector<2x128xf32>
    %c0_45 = arith.constant 0 : index
    %c0_46 = arith.constant 0 : index
    %113 = vector.load %arg9[%c0_45, %c0_46] : memref<1x128xf32, #tpu.memory_space<vmem>>, vector<1x128xf32>
    %114 = vector.broadcast %113 : vector<1x128xf32> to vector<2x128xf32>
    %115 = arith.addf %112, %114 : vector<2x128xf32>
    %cst_47 = arith.constant 0.000000e+00 : f32
    %116 = vector.broadcast %cst_47 : f32 to vector<2x128xf32>
    %117 = arith.maximumf %115, %116 : vector<2x128xf32>
    %c0_48 = arith.constant 0 : index
    %c0_49 = arith.constant 0 : index
    %118 = vector.load %arg10[%c0_48, %c0_49] : memref<128x128xf32, #tpu.memory_space<vmem>>, vector<128x128xf32>
    %cst_50 = arith.constant dense<0.000000e+00> : vector<2x128xf32>
    %119 = tpu.matmul %117, %118, %cst_50 {dimension_numbers = #tpu.dot_dimension_numbers<[1], [0], [0], [1], [0, 0, 1, 1], [], []>} : vector<2x128xf32>, vector<128x128xf32>, vector<2x128xf32> -> vector<2x128xf32>
    %c0_51 = arith.constant 0 : index
    %c0_52 = arith.constant 0 : index
    %120 = vector.load %arg11[%c0_51, %c0_52] : memref<1x128xf32, #tpu.memory_space<vmem>>, vector<1x128xf32>
    %121 = vector.broadcast %120 : vector<1x128xf32> to vector<2x128xf32>
    %122 = arith.addf %119, %121 : vector<2x128xf32>
    %123 = vector.extract_strided_slice %122 {offsets = [0, 0], sizes = [1, 128], strides = [1, 1]} : vector<2x128xf32> to vector<1x128xf32>
    %124 = vector.extract_strided_slice %122 {offsets = [1, 0], sizes = [1, 128], strides = [1, 1]} : vector<2x128xf32> to vector<1x128xf32>
    %125 = arith.addf %123, %124 : vector<1x128xf32>
    %cst_53 = arith.constant 0.000000e+00 : f32
    %126 = vector.broadcast %cst_53 : f32 to vector<1x128xf32>
    %127 = arith.subf %126, %125 : vector<1x128xf32>
    %128 = math.exp %127 : vector<1x128xf32>
    %cst_54 = arith.constant 1.000000e+00 : f32
    %129 = vector.broadcast %cst_54 : f32 to vector<1x128xf32>
    %130 = arith.addf %129, %128 : vector<1x128xf32>
    %cst_55 = arith.constant 1.000000e+00 : f32
    %131 = vector.broadcast %cst_55 : f32 to vector<1x128xf32>
    %132 = arith.divf %131, %130 : vector<1x128xf32>
    %133 = vector.broadcast %132 : vector<1x128xf32> to vector<256x128xf32>
    %134 = arith.mulf %103, %133 : vector<256x128xf32>
    %135 = tpu.iota {dimensions = array<i32: 1>} : vector<1x128xi32>
    %c64_i32 = arith.constant 64 : i32
    %136 = vector.broadcast %c64_i32 : i32 to vector<1x128xi32>
    %137 = arith.cmpi slt, %135, %136 : vector<1x128xi32>
    %cst_56 = arith.constant -1.000000e+30 : f32
    %138 = vector.shape_cast %137 : vector<1x128xi1> to vector<1x128xi1>
    %139 = vector.broadcast %138 : vector<1x128xi1> to vector<256x128xi1>
    %140 = vector.broadcast %cst_56 : f32 to vector<256x128xf32>
    %141 = arith.select %139, %134, %140 : vector<256x128xi1>, vector<256x128xf32>
    %cst_57 = arith.constant dense<0xFF800000> : vector<256xf32>
    %142 = vector.multi_reduction <maximumf>, %141, %cst_57 [1] : vector<256x128xf32> to vector<256xf32>
    %143 = vector.shape_cast %142 : vector<256xf32> to vector<256x1xf32>
    %cst_58 = arith.constant dense<0.000000e+00> : vector<256xf32>
    %144 = vector.multi_reduction <add>, %134, %cst_58 [1] : vector<256x128xf32> to vector<256xf32>
    %145 = vector.shape_cast %144 : vector<256xf32> to vector<256x1xf32>
    %cst_59 = arith.constant 1.562500e-02 : f32
    %146 = vector.broadcast %cst_59 : f32 to vector<256x1xf32>
    %147 = arith.mulf %145, %146 : vector<256x1xf32>
    %148 = tpu.concatenate %143, %147 in 0 : vector<256x1xf32>, vector<256x1xf32> -> vector<512x1xf32>
    %c0_60 = arith.constant 0 : index
    %c0_61 = arith.constant 0 : index
    %149 = vector.load %arg12[%c0_60, %c0_61] : memref<256x512xf32, #tpu.memory_space<vmem>>, vector<256x512xf32>
    %cst_62 = arith.constant dense<0.000000e+00> : vector<256x1xf32>
    %150 = tpu.matmul %149, %148, %cst_62 {dimension_numbers = #tpu.dot_dimension_numbers<[1], [0], [0], [1], [0, 0, 1, 1], [], []>} : vector<256x512xf32>, vector<512x1xf32>, vector<256x1xf32> -> vector<256x1xf32>
    %c0_63 = arith.constant 0 : index
    %c0_64 = arith.constant 0 : index
    %151 = vector.load %arg13[%c0_63, %c0_64] : memref<1x1xf32, #tpu.memory_space<vmem>>, vector<1x1xf32>
    %152 = vector.broadcast %151 : vector<1x1xf32> to vector<256x1xf32>
    %153 = arith.addf %150, %152 : vector<256x1xf32>
    %cst_65 = arith.constant 0.000000e+00 : f32
    %154 = vector.broadcast %cst_65 : f32 to vector<256x1xf32>
    %155 = arith.subf %154, %153 : vector<256x1xf32>
    %156 = math.exp %155 : vector<256x1xf32>
    %cst_66 = arith.constant 1.000000e+00 : f32
    %157 = vector.broadcast %cst_66 : f32 to vector<256x1xf32>
    %158 = arith.addf %157, %156 : vector<256x1xf32>
    %cst_67 = arith.constant 1.000000e+00 : f32
    %159 = vector.broadcast %cst_67 : f32 to vector<256x1xf32>
    %160 = arith.divf %159, %158 : vector<256x1xf32>
    %161 = vector.broadcast %160 : vector<256x1xf32> to vector<256x128xf32>
    %162 = arith.mulf %134, %161 : vector<256x128xf32>
    %163 = arith.addf %162, %1 : vector<256x128xf32>
    %cst_68 = arith.constant 0.000000e+00 : f32
    %164 = vector.broadcast %cst_68 : f32 to vector<256x128xf32>
    %165 = arith.maximumf %163, %164 : vector<256x128xf32>
    %166 = vector.shape_cast %165 : vector<256x128xf32> to vector<1x256x128xf32>
    %c0_69 = arith.constant 0 : index
    %c0_70 = arith.constant 0 : index
    %c0_71 = arith.constant 0 : index
    %167 = vector.load %arg14[%c0_69, %c0_70, %c0_71] : memref<1x256x128xf32, #tpu.memory_space<vmem>>, vector<1x256x128xf32>
    tpu.vector_store %arg14[%c0_69, %c0_70, %c0_71], %166 {strides = array<i32>} : memref<1x256x128xf32, #tpu.memory_space<vmem>>, vector<1x256x128xf32>,
    return
  }
  func.func @transform_0(%arg0: i32) -> (i32, i32, i32) {
    %c0_i32 = arith.constant 0 : i32
    %c0_i32_0 = arith.constant 0 : i32
    %c0_i32_1 = arith.constant 0 : i32
    return %arg0, %c0_i32, %c0_i32_0 : i32, i32, i32
  }
  func.func @transform_1(%arg0: i32) -> (i32, i32) {
    %c0_i32 = arith.constant 0 : i32
    %c0_i32_0 = arith.constant 0 : i32
    %c0_i32_1 = arith.constant 0 : i32
    return %c0_i32, %c0_i32_0 : i32, i32
  }
  func.func @transform_2(%arg0: i32) -> (i32, i32) {
    %c0_i32 = arith.constant 0 : i32
    %c0_i32_0 = arith.constant 0 : i32
    %c0_i32_1 = arith.constant 0 : i32
    return %c0_i32, %c0_i32_0 : i32, i32
  }
  func.func @transform_3(%arg0: i32) -> (i32, i32) {
    %c0_i32 = arith.constant 0 : i32
    %c0_i32_0 = arith.constant 0 : i32
    %c0_i32_1 = arith.constant 0 : i32
    return %c0_i32, %c0_i32_0 : i32, i32
  }
  func.func @transform_4(%arg0: i32) -> (i32, i32) {
    %c0_i32 = arith.constant 0 : i32
    %c0_i32_0 = arith.constant 0 : i32
    %c0_i32_1 = arith.constant 0 : i32
    return %c0_i32, %c0_i32_0 : i32, i32
  }
  func.func @transform_5(%arg0: i32) -> (i32, i32) {
    %c0_i32 = arith.constant 0 : i32
    %c0_i32_0 = arith.constant 0 : i32
    %c0_i32_1 = arith.constant 0 : i32
    return %c0_i32, %c0_i32_0 : i32, i32
  }
  func.func @transform_6(%arg0: i32) -> (i32, i32) {
    %c0_i32 = arith.constant 0 : i32
    %c0_i32_0 = arith.constant 0 : i32
    %c0_i32_1 = arith.constant 0 : i32
    return %c0_i32, %c0_i32_0 : i32, i32
  }
  func.func @transform_7(%arg0: i32) -> (i32, i32) {
    %c0_i32 = arith.constant 0 : i32
    %c0_i32_0 = arith.constant 0 : i32
    %c0_i32_1 = arith.constant 0 : i32
    return %c0_i32, %c0_i32_0 : i32, i32
  }
  func.func @transform_8(%arg0: i32) -> (i32, i32) {
    %c0_i32 = arith.constant 0 : i32
    %c0_i32_0 = arith.constant 0 : i32
    %c0_i32_1 = arith.constant 0 : i32
    return %c0_i32, %c0_i32_0 : i32, i32
  }
  func.func @transform_9(%arg0: i32) -> (i32, i32) {
    %c0_i32 = arith.constant 0 : i32
    %c0_i32_0 = arith.constant 0 : i32
    %c0_i32_1 = arith.constant 0 : i32
    return %c0_i32, %c0_i32_0 : i32, i32
  }
  func.func @transform_10(%arg0: i32) -> (i32, i32) {
    %c0_i32 = arith.constant 0 : i32
    %c0_i32_0 = arith.constant 0 : i32
    %c0_i32_1 = arith.constant 0 : i32
    return %c0_i32, %c0_i32_0 : i32, i32
  }
  func.func @transform_11(%arg0: i32) -> (i32, i32) {
    %c0_i32 = arith.constant 0 : i32
    %c0_i32_0 = arith.constant 0 : i32
    %c0_i32_1 = arith.constant 0 : i32
    return %c0_i32, %c0_i32_0 : i32, i32
  }
  func.func @transform_12(%arg0: i32) -> (i32, i32) {
    %c0_i32 = arith.constant 0 : i32
    %c0_i32_0 = arith.constant 0 : i32
    %c0_i32_1 = arith.constant 0 : i32
    return %c0_i32, %c0_i32_0 : i32, i32
  }
  func.func @transform_13(%arg0: i32) -> (i32, i32, i32) {
    %c0_i32 = arith.constant 0 : i32
    %c0_i32_0 = arith.constant 0 : i32
    %c0_i32_1 = arith.constant 0 : i32
    return %arg0, %c0_i32, %c0_i32_0 : i32, i32, i32
  }
}

</mosaic_0001>

<llo_original>
// kernel: bottleneck_forward.1
$region0: #{bottleneck_forward.1}
  #allocation0 [shape = 'u32[]', space=smem, size = 0x4, offset = 0x4, fixed_abs, tag = 'smem constant byte address 0x4 - core index']
  #allocation1 [shape = 'u32[144,128]{1,0:T(1,128)}', space=vmem, size = 0x12000, scoped, tag = 'internal scratch']
  #allocation2 [shape = 'f32[1,1]{1,0:T(1,128)S(1)}', space=vmem, size = 0x200, scoped, tag = 'scoped memory for bottleneck_forward.1']
  %s0 = inlined_call_operand.vmem [shape: f32[2,256,128], index: 0, kind: input, shape index: {}]
  %s1 = inlined_call_operand.hbm [shape: bf16[128,128], index: 1, kind: input, shape index: {}]
  %s2 = inlined_call_operand.vmem [shape: f32[1,128], index: 2, kind: input, shape index: {}]
  %s3 = inlined_call_operand.hbm [shape: bf16[1152,128], index: 3, kind: input, shape index: {}]
  %s4 = inlined_call_operand.vmem [shape: f32[1,128], index: 4, kind: input, shape index: {}]
  %s5 = inlined_call_operand.hbm [shape: bf16[128,128], index: 5, kind: input, shape index: {}]
  %s6 = inlined_call_operand.vmem [shape: f32[1,128], index: 6, kind: input, shape index: {}]
  %s7 = inlined_call_operand.hbm [shape: f32[128,128], index: 7, kind: input, shape index: {}]
  %s8 = inlined_call_operand.vmem [shape: f32[1,128], index: 8, kind: input, shape index: {}]
  %s9 = inlined_call_operand.hbm [shape: f32[128,128], index: 9, kind: input, shape index: {}]
  %s10 = inlined_call_operand.vmem [shape: f32[1,128], index: 10, kind: input, shape index: {}]
  %s11 = inlined_call_operand.vmem [shape: f32[256,512], index: 11, kind: input, shape index: {}]
  %s12 = inlined_call_operand.<no memory space> [shape: f32[1,1], index: 12, kind: input, shape index: {}]
  %s13 = inlined_call_operand.hbm [shape: f32[2,256,128], index: 13, kind: output, shape index: {}]
  %s14 = sld [smem:[#allocation0]]
  $region105: #{bottleneck_forward.1} parent=0
    _
  %s16 = ssub.s32 1, %s14
  %s17 = scalar_select 0, %s16, %s14
  %v18 = vstv %s12
  %19 = vst [vmem:[#allocation2] sm:$0x1] %v18
  $region1: #{bottleneck_forward.1} parent=0
    #allocation3 [shape = 'u8[32768]{0}', space=vmem, size = 0x8000, scoped, tag = 'input window, operand 1, single buffered']
    #allocation4 [shape = 's32[2]{0}', space=sflag, size = 0x8, scoped, tag = 'scoped memory for bottleneck_forward.1']
    #allocation5 [shape = 's32[2]{0}', space=sflag, size = 0x8, scoped, tag = 'scoped memory for bottleneck_forward.1']
    #allocation6 [shape = 'u8[294912]{0}', space=vmem, size = 0x48000, scoped, tag = 'input window, operand 3, single buffered']
    #allocation7 [shape = 's32[1]{0}', space=sflag, size = 0x4, scoped, tag = 'scoped memory for bottleneck_forward.1']
    #allocation8 [shape = 'u8[32768]{0}', space=vmem, size = 0x8000, scoped, tag = 'input window, operand 5, single buffered']
    #allocation9 [shape = 'u8[65536]{0}', space=vmem, size = 0x10000, scoped, tag = 'input window, operand 7, single buffered']
    #allocation10 [shape = 's32[1]{0}', space=sflag, size = 0x4, scoped, tag = 'scoped memory for bottleneck_forward.1']
    #allocation11 [shape = 'u8[65536]{0}', space=vmem, size = 0x10000, scoped, tag = 'input window, operand 9, single buffered']
    #allocation12 [shape = 'u8[262144]{0}', space=vmem, size = 0x40000, scoped, tag = 'output window, operand 0']
    %20 = vsyncpa [#allocation4], 0
    %21 = vsyncpa [#allocation7], 0
    %22 = vsyncpa [#allocation10], 0
    %23 = vsyncpa [#allocation5], 0
    %s24 = scalar_lea.sflag [#allocation5], 1
    %25 = vsyncpa %s24, 0
    loop: start=0, step=1, limit=4
    $region2: #{bottleneck_forward.1} parent=1 // loop_pre_header
      _
    $region3: #{bottleneck_forward.1} parent=1 // loop_header
      %s27 = sphi 0, %s31
      %p28 = scmp.ge.s32.totalorder %s27, 4
      %s37 = sphi 0, %s39
      %s40 = sphi 0, %s37
      %s41 = sphi 0, %s40
      %s57 = sphi 0, %s41
      %s61 = sphi 0, %s61
      %s63 = sphi 0, %s61
      %s64 = sphi 0, %s63
      %s78 = sphi 0, %s64
      %s82 = sphi 0, %s82
      %s84 = sphi 0, %s82
      %s85 = sphi 0, %s84
      %s99 = sphi 0, %s85
      %s103 = sphi 0, %s103
      %s105 = sphi 0, %s103
      %s106 = sphi 0, %s105
      %s120 = sphi 0, %s106
      %s124 = sphi 0, %s124
      %s126 = sphi 0, %s124
      %s127 = sphi 0, %s126
      %s141 = sphi 0, %s127
      %s145 = sphi 0, %s145
      %s147 = sphi 0, %s145
      %s148 = sphi 0, %s147
      %s162 = sphi 0, %s148
      %s166 = sphi 0, %s166
      %s168 = sphi 0, %s166
      %s169 = sphi 0, %s168
      %s183 = sphi 0, %s169
      %s187 = sphi 0, %s187
      %s189 = sphi 0, %s187
      %s190 = sphi 0, %s189
      %s204 = sphi 0, %s190
      %s208 = sphi 0, %s208
      %s210 = sphi 0, %s208
      %s211 = sphi 0, %s210
      %s225 = sphi 0, %s211
      %s229 = sphi 0, %s229
      %s231 = sphi 0, %s229
      %s232 = sphi 0, %s231
      %s246 = sphi 0, %s232
      %s250 = sphi 0, %s250
      %s252 = sphi 0, %s250
      %s253 = sphi 0, %s252
      %s267 = sphi 0, %s253
      %s271 = sphi 0, %s271
      %s273 = sphi 0, %s271
      %s274 = sphi 0, %s273
      %s288 = sphi 0, %s274
      %s292 = sphi 0, %s292
      %s294 = sphi 0, %s292
      %s295 = sphi 0, %s294
      %s309 = sphi 0, %s295
      %s315 = sphi 0, %s317
      %s318 = sphi 0, %s315
      %s319 = sphi 0, %s318
      %s335 = sphi 0, %s319
    $region4: #{bottleneck_forward.1} parent=1 // loop_header_branch
      %30 = sbr.rel (%p28) target = $region8
    $region5: #{bottleneck_forward.1} parent=1 // loop_body
      %s32 = ssub.s32 %s27, 1
      %s33 = ssub.s32 %s27, 2
      %s34 = sadd.s32 %s27, 1
      %s35 = ssub.s32 %s27, %s34
      %p36 = scmp.eq.s32.totalorder %s35, 0
      %s38 = sadd.s32 %s37, 1
      %s39 = scalar_select %p36, %s37, %s38
      %p42 = pneg %p36
      %p43 = scmp.eq.s32.totalorder %s27, 1
      %p44 = por %p42, %p43
      %p45 = scmp.ne.s32.totalorder %s37, %s40
      %p46 = scmp.eq.s32.totalorder %s27, 0
      %p47 = por %p45, %p46
      %p48 = scmp.ne.s32.totalorder %s37, %s40
      %p49 = scmp.eq.s32.totalorder %s32, 1
      %p50 = por %p48, %p49
      %p51 = scmp.ne.s32.totalorder %s40, %s41
      %p52 = scmp.eq.s32.totalorder %s32, 0
      %p53 = por %p51, %p52
      %p54 = scmp.ne.s32.totalorder %s40, %s41
      %p55 = scmp.eq.s32.totalorder %s33, 1
      %p56 = por %p54, %p55
      %p58 = scmp.ne.s32.totalorder %s41, %s57
      %p59 = scmp.eq.s32.totalorder %s33, 0
      %p60 = por %p58, %p59
      %s62 = sadd.s32 %s61, 1
      %p65 = scmp.eq.s32.totalorder %s27, 1
      %p66 = scmp.ne.s32.totalorder %s61, %s63
      %p67 = scmp.eq.s32.totalorder %s27, 0
      %p68 = por %p66, %p67
      %p69 = scmp.ne.s32.totalorder %s61, %s63
      %p70 = scmp.eq.s32.totalorder %s32, 1
      %p71 = por %p69, %p70
      %p72 = scmp.ne.s32.totalorder %s63, %s64
      %p73 = scmp.eq.s32.totalorder %s32, 0
      %p74 = por %p72, %p73
      %p75 = scmp.ne.s32.totalorder %s63, %s64
      %p76 = scmp.eq.s32.totalorder %s33, 1
      %p77 = por %p75, %p76
      %p79 = scmp.ne.s32.totalorder %s64, %s78
      %p80 = scmp.eq.s32.totalorder %s33, 0
      %p81 = por %p79, %p80
      %s83 = sadd.s32 %s82, 1
      %p86 = scmp.eq.s32.totalorder %s27, 1
      %p87 = scmp.ne.s32.totalorder %s82, %s84
      %p88 = scmp.eq.s32.totalorder %s27, 0
      %p89 = por %p87, %p88
      %p90 = scmp.ne.s32.totalorder %s82, %s84
      %p91 = scmp.eq.s32.totalorder %s32, 1
      %p92 = por %p90, %p91
      %p93 = scmp.ne.s32.totalorder %s84, %s85
      %p94 = scmp.eq.s32.totalorder %s32, 0
      %p95 = por %p93, %p94
      %p96 = scmp.ne.s32.totalorder %s84, %s85
      %p97 = scmp.eq.s32.totalorder %s33, 1
      %p98 = por %p96, %p97
      %p100 = scmp.ne.s32.totalorder %s85, %s99
      %p101 = scmp.eq.s32.totalorder %s33, 0
      %p102 = por %p100, %p101
      %s104 = sadd.s32 %s103, 1
      %p107 = scmp.eq.s32.totalorder %s27, 1
      %p108 = scmp.ne.s32.totalorder %s103, %s105
      %p109 = scmp.eq.s32.totalorder %s27, 0
      %p110 = por %p108, %p109
      %p111 = scmp.ne.s32.totalorder %s103, %s105
      %p112 = scmp.eq.s32.totalorder %s32, 1
      %p113 = por %p111, %p112
      %p114 = scmp.ne.s32.totalorder %s105, %s106
      %p115 = scmp.eq.s32.totalorder %s32, 0
      %p116 = por %p114, %p115
      %p117 = scmp.ne.s32.totalorder %s105, %s106
      %p118 = scmp.eq.s32.totalorder %s33, 1
      %p119 = por %p117, %p118
      %p121 = scmp.ne.s32.totalorder %s106, %s120
      %p122 = scmp.eq.s32.totalorder %s33, 0
      %p123 = por %p121, %p122
      %s125 = sadd.s32 %s124, 1
      %p128 = scmp.eq.s32.totalorder %s27, 1
      %p129 = scmp.ne.s32.totalorder %s124, %s126
      %p130 = scmp.eq.s32.totalorder %s27, 0
      %p131 = por %p129, %p130
      %p132 = scmp.ne.s32.totalorder %s124, %s126
      %p133 = scmp.eq.s32.totalorder %s32, 1
      %p134 = por %p132, %p133
      %p135 = scmp.ne.s32.totalorder %s126, %s127
      %p136 = scmp.eq.s32.totalorder %s32, 0
      %p137 = por %p135, %p136
      %p138 = scmp.ne.s32.totalorder %s126, %s127
      %p139 = scmp.eq.s32.totalorder %s33, 1
      %p140 = por %p138, %p139
      %p142 = scmp.ne.s32.totalorder %s127, %s141
      %p143 = scmp.eq.s32.totalorder %s33, 0
      %p144 = por %p142, %p143
      %s146 = sadd.s32 %s145, 1
      %p149 = scmp.eq.s32.totalorder %s27, 1
      %p150 = scmp.ne.s32.totalorder %s145, %s147
      %p151 = scmp.eq.s32.totalorder %s27, 0
      %p152 = por %p150, %p151
      %p153 = scmp.ne.s32.totalorder %s145, %s147
      %p154 = scmp.eq.s32.totalorder %s32, 1
      %p155 = por %p153, %p154
      %p156 = scmp.ne.s32.totalorder %s147, %s148
      %p157 = scmp.eq.s32.totalorder %s32, 0
      %p158 = por %p156, %p157
      %p159 = scmp.ne.s32.totalorder %s147, %s148
      %p160 = scmp.eq.s32.totalorder %s33, 1
      %p161 = por %p159, %p160
      %p163 = scmp.ne.s32.totalorder %s148, %s162
      %p164 = scmp.eq.s32.totalorder %s33, 0
      %p165 = por %p163, %p164
      %s167 = sadd.s32 %s166, 1
      %p170 = scmp.eq.s32.totalorder %s27, 1
      %p171 = scmp.ne.s32.totalorder %s166, %s168
      %p172 = scmp.eq.s32.totalorder %s27, 0
      %p173 = por %p171, %p172
      %p174 = scmp.ne.s32.totalorder %s166, %s168
      %p175 = scmp.eq.s32.totalorder %s32, 1
      %p176 = por %p174, %p175
      %p177 = scmp.ne.s32.totalorder %s168, %s169
      %p178 = scmp.eq.s32.totalorder %s32, 0
      %p179 = por %p177, %p178
      %p180 = scmp.ne.s32.totalorder %s168, %s169
      %p181 = scmp.eq.s32.totalorder %s33, 1
      %p182 = por %p180, %p181
      %p184 = scmp.ne.s32.totalorder %s169, %s183
      %p185 = scmp.eq.s32.totalorder %s33, 0
      %p186 = por %p184, %p185
      %s188 = sadd.s32 %s187, 1
      %p191 = scmp.eq.s32.totalorder %s27, 1
      %p192 = scmp.ne.s32.totalorder %s187, %s189
      %p193 = scmp.eq.s32.totalorder %s27, 0
      %p194 = por %p192, %p193
      %p195 = scmp.ne.s32.totalorder %s187, %s189
      %p196 = scmp.eq.s32.totalorder %s32, 1
      %p197 = por %p195, %p196
      %p198 = scmp.ne.s32.totalorder %s189, %s190
      %p199 = scmp.eq.s32.totalorder %s32, 0
      %p200 = por %p198, %p199
      %p201 = scmp.ne.s32.totalorder %s189, %s190
      %p202 = scmp.eq.s32.totalorder %s33, 1
      %p203 = por %p201, %p202
      %p205 = scmp.ne.s32.totalorder %s190, %s204
      %p206 = scmp.eq.s32.totalorder %s33, 0
      %p207 = por %p205, %p206
      %s209 = sadd.s32 %s208, 1
      %p212 = scmp.eq.s32.totalorder %s27, 1
      %p213 = scmp.ne.s32.totalorder %s208, %s210
      %p214 = scmp.eq.s32.totalorder %s27, 0
      %p215 = por %p213, %p214
      %p216 = scmp.ne.s32.totalorder %s208, %s210
      %p217 = scmp.eq.s32.totalorder %s32, 1
      %p218 = por %p216, %p217
      %p219 = scmp.ne.s32.totalorder %s210, %s211
      %p220 = scmp.eq.s32.totalorder %s32, 0
      %p221 = por %p219, %p220
      %p222 = scmp.ne.s32.totalorder %s210, %s211
      %p223 = scmp.eq.s32.totalorder %s33, 1
      %p224 = por %p222, %p223
      %p226 = scmp.ne.s32.totalorder %s211, %s225
      %p227 = scmp.eq.s32.totalorder %s33, 0
      %p228 = por %p226, %p227
      %s230 = sadd.s32 %s229, 1
      %p233 = scmp.eq.s32.totalorder %s27, 1
      %p234 = scmp.ne.s32.totalorder %s229, %s231
      %p235 = scmp.eq.s32.totalorder %s27, 0
      %p236 = por %p234, %p235
      %p237 = scmp.ne.s32.totalorder %s229, %s231
      %p238 = scmp.eq.s32.totalorder %s32, 1
      %p239 = por %p237, %p238
      %p240 = scmp.ne.s32.totalorder %s231, %s232
      %p241 = scmp.eq.s32.totalorder %s32, 0
      %p242 = por %p240, %p241
      %p243 = scmp.ne.s32.totalorder %s231, %s232
      %p244 = scmp.eq.s32.totalorder %s33, 1
      %p245 = por %p243, %p244
      %p247 = scmp.ne.s32.totalorder %s232, %s246
      %p248 = scmp.eq.s32.totalorder %s33, 0
      %p249 = por %p247, %p248
      %s251 = sadd.s32 %s250, 1
      %p254 = scmp.eq.s32.totalorder %s27, 1
      %p255 = scmp.ne.s32.totalorder %s250, %s252
      %p256 = scmp.eq.s32.totalorder %s27, 0
      %p257 = por %p255, %p256
      %p258 = scmp.ne.s32.totalorder %s250, %s252
      %p259 = scmp.eq.s32.totalorder %s32, 1
      %p260 = por %p258, %p259
      %p261 = scmp.ne.s32.totalorder %s252, %s253
      %p262 = scmp.eq.s32.totalorder %s32, 0
      %p263 = por %p261, %p262
      %p264 = scmp.ne.s32.totalorder %s252, %s253
      %p265 = scmp.eq.s32.totalorder %s33, 1
      %p266 = por %p264, %p265
      %p268 = scmp.ne.s32.totalorder %s253, %s267
      %p269 = scmp.eq.s32.totalorder %s33, 0
      %p270 = por %p268, %p269
      %s272 = sadd.s32 %s271, 1
      %p275 = scmp.eq.s32.totalorder %s27, 1
      %p276 = scmp.ne.s32.totalorder %s271, %s273
      %p277 = scmp.eq.s32.totalorder %s27, 0
      %p278 = por %p276, %p277
      %p279 = scmp.ne.s32.totalorder %s271, %s273
      %p280 = scmp.eq.s32.totalorder %s32, 1
      %p281 = por %p279, %p280
      %p282 = scmp.ne.s32.totalorder %s273, %s274
      %p283 = scmp.eq.s32.totalorder %s32, 0
      %p284 = por %p282, %p283
      %p285 = scmp.ne.s32.totalorder %s273, %s274
      %p286 = scmp.eq.s32.totalorder %s33, 1
      %p287 = por %p285, %p286
      %p289 = scmp.ne.s32.totalorder %s274, %s288
      %p290 = scmp.eq.s32.totalorder %s33, 0
      %p291 = por %p289, %p290
      %s293 = sadd.s32 %s292, 1
      %p296 = scmp.eq.s32.totalorder %s27, 1
      %p297 = scmp.ne.s32.totalorder %s292, %s294
      %p298 = scmp.eq.s32.totalorder %s27, 0
      %p299 = por %p297, %p298
      %p300 = scmp.ne.s32.totalorder %s292, %s294
      %p301 = scmp.eq.s32.totalorder %s32, 1
      %p302 = por %p300, %p301
      %p303 = scmp.ne.s32.totalorder %s294, %s295
      %p304 = scmp.eq.s32.totalorder %s32, 0
      %p305 = por %p303, %p304
      %p306 = scmp.ne.s32.totalorder %s294, %s295
      %p307 = scmp.eq.s32.totalorder %s33, 1
      %p308 = por %p306, %p307
      %p310 = scmp.ne.s32.totalorder %s295, %s309
      %p311 = scmp.eq.s32.totalorder %s33, 0
      %p312 = por %p310, %p311
      %s313 = ssub.s32 %s27, %s34
      %p314 = scmp.eq.s32.totalorder %s313, 0
      %s316 = sadd.s32 %s315, 1
      %s317 = scalar_select %p314, %s315, %s316
      %p320 = pneg %p314
      %p321 = scmp.eq.s32.totalorder %s27, 1
      %p322 = por %p320, %p321
      %p323 = scmp.ne.s32.totalorder %s315, %s318
      %p324 = scmp.eq.s32.totalorder %s27, 0
      %p325 = por %p323, %p324
      %p326 = scmp.ne.s32.totalorder %s315, %s318
      %p327 = scmp.eq.s32.totalorder %s32, 1
      %p328 = por %p326, %p327
      %p329 = scmp.ne.s32.totalorder %s318, %s319
      %p330 = scmp.eq.s32.totalorder %s32, 0
      %p331 = por %p329, %p330
      %p332 = scmp.ne.s32.totalorder %s318, %s319
      %p333 = scmp.eq.s32.totalorder %s33, 1
      %p334 = por %p332, %p333
      %p336 = scmp.ne.s32.totalorder %s319, %s335
      %p337 = scmp.eq.s32.totalorder %s33, 0
      %p338 = por %p336, %p337
      %p339 = scmp.le.s32.totalorder 1, %s27
      %p340 = scmp.lt.s32.totalorder %s27, 3
      %p341 = pnand %p339, %p340
      %p342 = pneg %p341
      // Predicated region
      $region9: #{bottleneck_forward.1} parent=5 // pred_check
        _
      $region10: #{bottleneck_forward.1} parent=5 // pred_check_branch
        %344 = sbr.rel (%p341) target = $region12
      $region11: #{bottleneck_forward.1} parent=5 // pred_region
        %s345 = ssub.s32 %s27, 1
        // Predicated region
        $region13: #{bottleneck_forward.1} parent=11 // pred_check
          %p346 = pneg %p74
        $region14: #{bottleneck_forward.1} parent=11 // pred_check_branch
          %348 = sbr.rel (%p346) target = $region16
        $region15: #{bottleneck_forward.1} parent=11 // pred_region
          %s350 = ssub.s32 1024, 1024
          %351 = vsyncadd [#allocation4], %s350
          %s352 = sshll.u32 [#allocation3], 4
          %s353 = int_to_ptr.vmem [resolvable:$true] %s352
          %358 = dma.hbm_to_vmem [thread:$0]  %s1, 1024, %s353, [#allocation4], 64, 64, 4
        $region16: #{bottleneck_forward.1} parent=11 // pred_fallthru
          _
        // Predicated region
        $region17: #{bottleneck_forward.1} parent=11 // pred_check
          %p359 = pneg %p95
        $region18: #{bottleneck_forward.1} parent=11 // pred_check_branch
          %361 = sbr.rel (%p359) target = $region20
        $region19: #{bottleneck_forward.1} parent=11 // pred_region
          _
        $region20: #{bottleneck_forward.1} parent=11 // pred_fallthru
          _
        // Predicated region
        $region21: #{bottleneck_forward.1} parent=11 // pred_check
          %p362 = pneg %p116
        $region22: #{bottleneck_forward.1} parent=11 // pred_check_branch
          %364 = sbr.rel (%p362) target = $region24
        $region23: #{bottleneck_forward.1} parent=11 // pred_region
          %s366 = ssub.s32 9216, 9216
          %367 = vsyncadd [#allocation7], %s366
          %s368 = sshll.u32 [#allocation6], 4
          %s369 = int_to_ptr.vmem [resolvable:$true] %s368
          %374 = dma.hbm_to_vmem [thread:$0]  %s3, 9216, %s369, [#allocation7], 64, 64, 4
        $region24: #{bottleneck_forward.1} parent=11 // pred_fallthru
          _
        // Predicated region
        $region25: #{bottleneck_forward.1} parent=11 // pred_check
          %p375 = pneg %p137
        $region26: #{bottleneck_forward.1} parent=11 // pred_check_branch
          %377 = sbr.rel (%p375) target = $region28
        $region27: #{bottleneck_forward.1} parent=11 // pred_region
          _
        $region28: #{bottleneck_forward.1} parent=11 // pred_fallthru
          _
        // Predicated region
        $region29: #{bottleneck_forward.1} parent=11 // pred_check
          %p378 = pneg %p158
        $region30: #{bottleneck_forward.1} parent=11 // pred_check_branch
          %380 = sbr.rel (%p378) target = $region32
        $region31: #{bottleneck_forward.1} parent=11 // pred_region
          %s382 = ssub.s32 1024, 1024
          %383 = vsyncadd [#allocation7], %s382
          %s384 = sshll.u32 [#allocation8], 4
          %s385 = int_to_ptr.vmem [resolvable:$true] %s384
          %390 = dma.hbm_to_vmem [thread:$0]  %s5, 1024, %s385, [#allocation7], 64, 64, 4
        $region32: #{bottleneck_forward.1} parent=11 // pred_fallthru
          _
        // Predicated region
        $region33: #{bottleneck_forward.1} parent=11 // pred_check
          %p391 = pneg %p179
        $region34: #{bottleneck_forward.1} parent=11 // pred_check_branch
          %393 = sbr.rel (%p391) target = $region36
        $region35: #{bottleneck_forward.1} parent=11 // pred_region
          _
        $region36: #{bottleneck_forward.1} parent=11 // pred_fallthru
          _
        // Predicated region
        $region37: #{bottleneck_forward.1} parent=11 // pred_check
          %p394 = pneg %p200
        $region38: #{bottleneck_forward.1} parent=11 // pred_check_branch
          %396 = sbr.rel (%p394) target = $region40
        $region39: #{bottleneck_forward.1} parent=11 // pred_region
          %s398 = ssub.s32 2048, 2048
          %399 = vsyncadd [#allocation10], %s398
          %s400 = sshll.u32 [#allocation9], 4
          %s401 = int_to_ptr.vmem [resolvable:$true] %s400
          %406 = dma.hbm_to_vmem [thread:$0]  %s7, 2048, %s401, [#allocation10], 128, 128, 8
        $region40: #{bottleneck_forward.1} parent=11 // pred_fallthru
          _
        // Predicated region
        $region41: #{bottleneck_forward.1} parent=11 // pred_check
          %p407 = pneg %p221
        $region42: #{bottleneck_forward.1} parent=11 // pred_check_branch
          %409 = sbr.rel (%p407) target = $region44
        $region43: #{bottleneck_forward.1} parent=11 // pred_region
          _
        $region44: #{bottleneck_forward.1} parent=11 // pred_fallthru
          _
        // Predicated region
        $region45: #{bottleneck_forward.1} parent=11 // pred_check
          %p410 = pneg %p242
        $region46: #{bottleneck_forward.1} parent=11 // pred_check_branch
          %412 = sbr.rel (%p410) target = $region48
        $region47: #{bottleneck_forward.1} parent=11 // pred_region
          %s414 = ssub.s32 2048, 2048
          %415 = vsyncadd [#allocation10], %s414
          %s416 = sshll.u32 [#allocation11], 4
          %s417 = int_to_ptr.vmem [resolvable:$true] %s416
          %422 = dma.hbm_to_vmem [thread:$0]  %s9, 2048, %s417, [#allocation10], 128, 128, 8
        $region48: #{bottleneck_forward.1} parent=11 // pred_fallthru
          _
        // Predicated region
        $region49: #{bottleneck_forward.1} parent=11 // pred_check
          %p423 = pneg %p263
        $region50: #{bottleneck_forward.1} parent=11 // pred_check_branch
          %425 = sbr.rel (%p423) target = $region52
        $region51: #{bottleneck_forward.1} parent=11 // pred_region
          _
        $region52: #{bottleneck_forward.1} parent=11 // pred_fallthru
          _
        // Predicated region
        $region53: #{bottleneck_forward.1} parent=11 // pred_check
          %p426 = pneg %p284
        $region54: #{bottleneck_forward.1} parent=11 // pred_check_branch
          %428 = sbr.rel (%p426) target = $region56
        $region55: #{bottleneck_forward.1} parent=11 // pred_region
          _
        $region56: #{bottleneck_forward.1} parent=11 // pred_fallthru
          _
        // Predicated region
        $region57: #{bottleneck_forward.1} parent=11 // pred_check
          %p429 = pneg %p305
        $region58: #{bottleneck_forward.1} parent=11 // pred_check_branch
          %431 = sbr.rel (%p429) target = $region60
        $region59: #{bottleneck_forward.1} parent=11 // pred_region
          _
        $region60: #{bottleneck_forward.1} parent=11 // pred_fallthru
          _
      $region12: #{bottleneck_forward.1} parent=5 // pred_fallthru
        _
      %p432 = scmp.lt.s32.totalorder %s27, 2
      // Predicated region
      $region61: #{bottleneck_forward.1} parent=5 // pred_check
        %p433 = pneg %p432
      $region62: #{bottleneck_forward.1} parent=5 // pred_check_branch
        %435 = sbr.rel (%p433) target = $region64
      $region63: #{bottleneck_forward.1} parent=5 // pred_region
        // Predicated region
        $region65: #{bottleneck_forward.1} parent=63 // pred_check
          %p436 = pneg %p47
        $region66: #{bottleneck_forward.1} parent=63 // pred_check_branch
          %438 = sbr.rel (%p436) target = $region68
        $region67: #{bottleneck_forward.1} parent=63 // pred_region
          %p439 = scmp.lt.s32.totalorder %s27, 1
          %s440 = scalar_select %p439, %s27, 1
          %s441 = smul.addr %s440, 32
          %s442 = smul.addr %s441, 8
          %s443 = scalar_lea.vmem %s0, %s442
        $region68: #{bottleneck_forward.1} parent=63 // pred_fallthru
          _
      $region64: #{bottleneck_forward.1} parent=5 // pred_fallthru
        _
      %p444 = scmp.le.s32.totalorder 1, %s27
      %p445 = scmp.lt.s32.totalorder %s27, 3
      %p446 = pnand %p444, %p445
      %p447 = pneg %p446
      // Predicated region
      $region69: #{bottleneck_forward.1} parent=5 // pred_check
        _
      $region70: #{bottleneck_forward.1} parent=5 // pred_check_branch
        %449 = sbr.rel (%p446) target = $region72
      $region71: #{bottleneck_forward.1} parent=5 // pred_region
        %s450 = ssub.s32 %s27, 1
        // Predicated region
        $region73: #{bottleneck_forward.1} parent=71 // pred_check
          %p451 = pneg %p74
        $region74: #{bottleneck_forward.1} parent=71 // pred_check_branch
          %453 = sbr.rel (%p451) target = $region76
        $region75: #{bottleneck_forward.1} parent=71 // pred_region
          %454 = dma.done [#allocation4], 1024
        $region76: #{bottleneck_forward.1} parent=71 // pred_fallthru
          _
        // Predicated region
        $region77: #{bottleneck_forward.1} parent=71 // pred_check
          %p455 = pneg %p116
        $region78: #{bottleneck_forward.1} parent=71 // pred_check_branch
          %457 = sbr.rel (%p455) target = $region80
        $region79: #{bottleneck_forward.1} parent=71 // pred_region
          %458 = dma.done [#allocation7], 9216
        $region80: #{bottleneck_forward.1} parent=71 // pred_fallthru
          _
        // Predicated region
        $region81: #{bottleneck_forward.1} parent=71 // pred_check
          %p459 = pneg %p158
        $region82: #{bottleneck_forward.1} parent=71 // pred_check_branch
          %461 = sbr.rel (%p459) target = $region84
        $region83: #{bottleneck_forward.1} parent=71 // pred_region
          %462 = dma.done [#allocation7], 1024
        $region84: #{bottleneck_forward.1} parent=71 // pred_fallthru
          _
        // Predicated region
        $region85: #{bottleneck_forward.1} parent=71 // pred_check
          %p463 = pneg %p200
        $region86: #{bottleneck_forward.1} parent=71 // pred_check_branch
          %465 = sbr.rel (%p463) target = $region88
        $region87: #{bottleneck_forward.1} parent=71 // pred_region
          %466 = dma.done [#allocation10], 2048
        $region88: #{bottleneck_forward.1} parent=71 // pred_fallthru
          _
        // Predicated region
        $region89: #{bottleneck_forward.1} parent=71 // pred_check
          %p467 = pneg %p242
        $region90: #{bottleneck_forward.1} parent=71 // pred_check_branch
          %469 = sbr.rel (%p467) target = $region92
        $region91: #{bottleneck_forward.1} parent=71 // pred_region
          %470 = dma.done [#allocation10], 2048
        $region92: #{bottleneck_forward.1} parent=71 // pred_fallthru
          _
        %p471 = scmp.lt.s32.totalorder %s32, 1
        %s472 = scalar_select %p471, %s32, 1
        %s473 = smul.addr %s472, 32
        %s474 = smul.addr %s473, 8
        %s475 = scalar_lea.vmem %s0, %s474
        %p476 = pneg %p53
        %p477 = pneg %p50
        %p478 = pneg %p74
        %p479 = pneg %p71
        %p480 = pneg %p95
        %p481 = pneg %p92
        %p482 = pneg %p116
        %p483 = pneg %p113
        %p484 = pneg %p137
        %p485 = pneg %p134
        %p486 = pneg %p158
        %p487 = pneg %p155
        %p488 = pneg %p179
        %p489 = pneg %p176
        %p490 = pneg %p200
        %p491 = pneg %p197
        %p492 = pneg %p221
        %p493 = pneg %p218
        %p494 = pneg %p242
        %p495 = pneg %p239
        %p496 = pneg %p263
        %p497 = pneg %p260
        %p498 = pneg %p284
        %p499 = pneg %p281
        %p500 = pneg %p305
        %p501 = pneg %p302
        %p502 = pneg %p331
        %p503 = pneg %p328
        %s504 = sand.u32 %s318, 1
        %s505 = scalar_lea.sflag [#allocation5], %s504
        %s506 = sand.u32 %s318, 1
        %s507 = smul.addr %s506, 256
        %s508 = scalar_lea.vmem [#allocation12], %s507
        %p509 = scmp.lt.s32.totalorder %s32, 1
        %s510 = scalar_select %p509, %s32, 1
        %s511 = smul.addr %s510, 32
        %s512 = smul.addr %s511, 8
        %s513 = scalar_lea.vmem %s0, %s512
        %v515 = vld [vmem:[%s513] sm:$0xff]
        %v516 = vld [vmem:[%s513 + $0x8] sm:$0xff]
        %v517 = vld [vmem:[%s513 + $0x10] sm:$0xff]
        %v518 = vld [vmem:[%s513 + $0x18] sm:$0xff]
        %v519 = vld [vmem:[%s513 + $0x20] sm:$0xff]
        %v520 = vld [vmem:[%s513 + $0x28] sm:$0xff]
        %v521 = vld [vmem:[%s513 + $0x30] sm:$0xff]
        %v522 = vld [vmem:[%s513 + $0x38] sm:$0xff]
        %v523 = vld [vmem:[%s513 + $0x40] sm:$0xff]
        %v524 = vld [vmem:[%s513 + $0x48] sm:$0xff]
        %v525 = vld [vmem:[%s513 + $0x50] sm:$0xff]
        %v526 = vld [vmem:[%s513 + $0x58] sm:$0xff]
        %v527 = vld [vmem:[%s513 + $0x60] sm:$0xff]
        %v528 = vld [vmem:[%s513 + $0x68] sm:$0xff]
        %v529 = vld [vmem:[%s513 + $0x70] sm:$0xff]
        %v530 = vld [vmem:[%s513 + $0x78] sm:$0xff]
        %v531 = vld [vmem:[%s513 + $0x80] sm:$0xff]
        %v532 = vld [vmem:[%s513 + $0x88] sm:$0xff]
        %v533 = vld [vmem:[%s513 + $0x90] sm:$0xff]
        %v534 = vld [vmem:[%s513 + $0x98] sm:$0xff]
        %v535 = vld [vmem:[%s513 + $0xa0] sm:$0xff]
        %v536 = vld [vmem:[%s513 + $0xa8] sm:$0xff]
        %v537 = vld [vmem:[%s513 + $0xb0] sm:$0xff]
        %v538 = vld [vmem:[%s513 + $0xb8] sm:$0xff]
        %v539 = vld [vmem:[%s513 + $0xc0] sm:$0xff]
        %v540 = vld [vmem:[%s513 + $0xc8] sm:$0xff]
        %v541 = vld [vmem:[%s513 + $0xd0] sm:$0xff]
        %v542 = vld [vmem:[%s513 + $0xd8] sm:$0xff]
        %v543 = vld [vmem:[%s513 + $0xe0] sm:$0xff]
        %v544 = vld [vmem:[%s513 + $0xe8] sm:$0xff]
        %v545 = vld [vmem:[%s513 + $0xf0] sm:$0xff]
        %v546 = vld [vmem:[%s513 + $0xf8] sm:$0xff]
        %v547 = vpack.c.bf16 %v516, %v515
        %v548 = vpack.c.bf16 %v518, %v517
        %v549 = vpack.c.bf16 %v520, %v519
        %v550 = vpack.c.bf16 %v522, %v521
        %v551 = vpack.c.bf16 %v524, %v523
        %v552 = vpack.c.bf16 %v526, %v525
        %v553 = vpack.c.bf16 %v528, %v527
        %v554 = vpack.c.bf16 %v530, %v529
        %v555 = vpack.c.bf16 %v532, %v531
        %v556 = vpack.c.bf16 %v534, %v533
        %v557 = vpack.c.bf16 %v536, %v535
        %v558 = vpack.c.bf16 %v538, %v537
        %v559 = vpack.c.bf16 %v540, %v539
        %v560 = vpack.c.bf16 %v542, %v541
        %v561 = vpack.c.bf16 %v544, %v543
        %v562 = vpack.c.bf16 %v546, %v545
        %v563 = vld [vmem:[#allocation3] sm:$0xf]
        %v564 = vld [vmem:[#allocation3 + $0x4] sm:$0xf]
        %v565 = vld [vmem:[#allocation3 + $0x8] sm:$0xf]
        %v566 = vld [vmem:[#allocation3 + $0xc] sm:$0xf]
        %v567 = vld [vmem:[#allocation3 + $0x10] sm:$0xf]
        %v568 = vld [vmem:[#allocation3 + $0x14] sm:$0xf]
        %v569 = vld [vmem:[#allocation3 + $0x18] sm:$0xf]
        %v570 = vld [vmem:[#allocation3 + $0x1c] sm:$0xf]
        %v571 = vld [vmem:[#allocation3 + $0x20] sm:$0xf]
        %v572 = vld [vmem:[#allocation3 + $0x24] sm:$0xf]
        %v573 = vld [vmem:[#allocation3 + $0x28] sm:$0xf]
        %v574 = vld [vmem:[#allocation3 + $0x2c] sm:$0xf]
        %v575 = vld [vmem:[#allocation3 + $0x30] sm:$0xf]
        %v576 = vld [vmem:[#allocation3 + $0x34] sm:$0xf]
        %v577 = vld [vmem:[#allocation3 + $0x38] sm:$0xf]
        %v578 = vld [vmem:[#allocation3 + $0x3c] sm:$0xf]
        %v579 = vld [vmem:[%s2] sm:$0x1]
        %v581 = vlaneseq
        %v582 = vshrl.u32 %v581, 7
        %v583 = vsub.s32 0, %v582
        %v584 = vrot.slane %v579, %v583
        %v602 = vunpack.c.l.b16 %v563
        %v603 = vunpack.c.l.b16 %v564
        %v604 = vunpack.c.l.b16 %v565
        %v605 = vunpack.c.l.b16 %v566
        %v606 = vunpack.c.l.b16 %v567
        %v607 = vunpack.c.l.b16 %v568
        %v608 = vunpack.c.l.b16 %v569
        %v609 = vunpack.c.l.b16 %v570
        %v610 = vunpack.c.l.b16 %v571
        %v611 = vunpack.c.l.b16 %v572
        %v612 = vunpack.c.l.b16 %v573
        %v613 = vunpack.c.l.b16 %v574
        %v614 = vunpack.c.l.b16 %v575
        %v615 = vunpack.c.l.b16 %v576
        %v616 = vunpack.c.l.b16 %v577
        %v617 = vunpack.c.l.b16 %v578
        %v618 = vpack.c.b16 %v603, %v602
        %v619 = vpack.c.b16 %v605, %v604
        %v620 = vpack.c.b16 %v607, %v606
        %v621 = vpack.c.b16 %v609, %v608
        %v622 = vpack.c.b16 %v611, %v610
        %v623 = vpack.c.b16 %v613, %v612
        %v624 = vpack.c.b16 %v615, %v614
        %v625 = vpack.c.b16 %v617, %v616
        %634 = vmatprep.subr.bf16.mxu0 0
        %635 = vmatpush1.bf16.msra.mxu0 %v618
        %636 = vmatprep.subr.bf16.mxu0 0
        %637 = vmatpush1.bf16.msra.mxu0 %v619
        %638 = vmatprep.subr.bf16.mxu0 0
        %639 = vmatpush1.bf16.msra.mxu0 %v620
        %640 = vmatprep.subr.bf16.mxu0 0
        %641 = vmatpush1.bf16.msra.mxu0 %v621
        %642 = vmatprep.subr.bf16.mxu0 0
        %643 = vmatpush1.bf16.msra.mxu0 %v622
        %644 = vmatprep.subr.bf16.mxu0 0
        %645 = vmatpush1.bf16.msra.mxu0 %v623
        %646 = vmatprep.subr.bf16.mxu0 0
        %647 = vmatpush1.bf16.msra.mxu0 %v624
        %648 = vmatprep.subr.bf16.mxu0 0
        %649 = vmatpush1.bf16.msra.mxu0 %v625
        %650 = vmatprep.subr.bf16.mxu0 0
        %651 = vmatpush1.bf16.msra.mxu0 0
        %652 = vmatprep.subr.bf16.mxu0 0
        %653 = vmatpush1.bf16.msra.mxu0 0
        %654 = vmatprep.subr.bf16.mxu0 0
        %655 = vmatpush1.bf16.msra.mxu0 0
        %656 = vmatprep.subr.bf16.mxu0 0
        %657 = vmatpush1.bf16.msra.mxu0 0
        %658 = vmatprep.subr.bf16.mxu0 0
        %659 = vmatpush1.bf16.msra.mxu0 0
        %660 = vmatprep.subr.bf16.mxu0 0
        %661 = vmatpush1.bf16.msra.mxu0 0
        %662 = vmatprep.subr.bf16.mxu0 0
        %663 = vmatpush1.bf16.msra.mxu0 0
        %664 = vmatprep.subr.bf16.mxu0 0
        %665 = vmatpush1.bf16.msra.mxu0 0
        %666 = vmatprep.mubr.bf16.mxu0 0
        %667 = vmatmul.mubr.bf16.gmra.mrb[0].mxu0 %v547
        %v668 = vpop.f32.mrb[0].mxu0
        %v669 = vadd.f32 %v584, %v668
        %v670 = vpop.f32.mrb[0].mxu0
        %v671 = vpop.f32.mrb[0].mxu0
        %v672 = vadd.f32 %v584, %v671
        %v673 = vpop.f32.mrb[0].mxu0
        %674 = vmatprep.mubr.bf16.mxu0 0
        %675 = vmatmul.mubr.bf16.gmra.mrb[0].mxu0 %v548
        %v676 = vpop.f32.mrb[0].mxu0
        %v677 = vadd.f32 %v584, %v676
        %v678 = vpop.f32.mrb[0].mxu0
        %v679 = vpop.f32.mrb[0].mxu0
        %v680 = vadd.f32 %v584, %v679
        %v681 = vpop.f32.mrb[0].mxu0
        %682 = vmatprep.mubr.bf16.mxu0 0
        %683 = vmatmul.mubr.bf16.gmra.mrb[0].mxu0 %v549
        %v684 = vpop.f32.mrb[0].mxu0
        %v685 = vadd.f32 %v584, %v684
        %v686 = vpop.f32.mrb[0].mxu0
        %v687 = vpop.f32.mrb[0].mxu0
        %v688 = vadd.f32 %v584, %v687
        %v689 = vpop.f32.mrb[0].mxu0
        %690 = vmatprep.mubr.bf16.mxu0 0
        %691 = vmatmul.mubr.bf16.gmra.mrb[0].mxu0 %v550
        %v692 = vpop.f32.mrb[0].mxu0
        %v693 = vadd.f32 %v584, %v692
        %v694 = vpop.f32.mrb[0].mxu0
        %v695 = vpop.f32.mrb[0].mxu0
        %v696 = vadd.f32 %v584, %v695
        %v697 = vpop.f32.mrb[0].mxu0
        %698 = vmatprep.mubr.bf16.mxu0 0
        %699 = vmatmul.mubr.bf16.gmra.mrb[0].mxu0 %v551
        %v700 = vpop.f32.mrb[0].mxu0
        %v701 = vadd.f32 %v584, %v700
        %v702 = vpop.f32.mrb[0].mxu0
        %v703 = vpop.f32.mrb[0].mxu0
        %v704 = vadd.f32 %v584, %v703
        %v705 = vpop.f32.mrb[0].mxu0
        %706 = vmatprep.mubr.bf16.mxu0 0
        %707 = vmatmul.mubr.bf16.gmra.mrb[0].mxu0 %v552
        %v708 = vpop.f32.mrb[0].mxu0
        %v709 = vadd.f32 %v584, %v708
        %v710 = vpop.f32.mrb[0].mxu0
        %v711 = vpop.f32.mrb[0].mxu0
        %v712 = vadd.f32 %v584, %v711
        %v713 = vpop.f32.mrb[0].mxu0
        %714 = vmatprep.mubr.bf16.mxu0 0
        %715 = vmatmul.mubr.bf16.gmra.mrb[0].mxu0 %v553
        %v716 = vpop.f32.mrb[0].mxu0
        %v717 = vadd.f32 %v584, %v716
        %v718 = vpop.f32.mrb[0].mxu0
        %v719 = vpop.f32.mrb[0].mxu0
        %v720 = vadd.f32 %v584, %v719
        %v721 = vpop.f32.mrb[0].mxu0
        %722 = vmatprep.mubr.bf16.mxu0 0
        %723 = vmatmul.mubr.bf16.gmra.mrb[0].mxu0 %v554
        %v724 = vpop.f32.mrb[0].mxu0
        %v725 = vadd.f32 %v584, %v724
        %v726 = vpop.f32.mrb[0].mxu0
        %v727 = vpop.f32.mrb[0].mxu0
        %v728 = vadd.f32 %v584, %v727
        %v729 = vpop.f32.mrb[0].mxu0
        %730 = vmatprep.mubr.bf16.mxu0 0
        %731 = vmatmul.mubr.bf16.gmra.mrb[0].mxu0 %v555
        %v732 = vpop.f32.mrb[0].mxu0
        %v733 = vadd.f32 %v584, %v732
        %v734 = vpop.f32.mrb[0].mxu0
        %v735 = vpop.f32.mrb[0].mxu0
        %v736 = vadd.f32 %v584, %v735
        %v737 = vpop.f32.mrb[0].mxu0
        %738 = vmatprep.mubr.bf16.mxu0 0
        %739 = vmatmul.mubr.bf16.gmra.mrb[0].mxu0 %v556
        %v740 = vpop.f32.mrb[0].mxu0
        %v741 = vadd.f32 %v584, %v740
        %v742 = vpop.f32.mrb[0].mxu0
        %v743 = vpop.f32.mrb[0].mxu0
        %v744 = vadd.f32 %v584, %v743
        %v745 = vpop.f32.mrb[0].mxu0
        %746 = vmatprep.mubr.bf16.mxu0 0
        %747 = vmatmul.mubr.bf16.gmra.mrb[0].mxu0 %v557
        %v748 = vpop.f32.mrb[0].mxu0
        %v749 = vadd.f32 %v584, %v748
        %v750 = vpop.f32.mrb[0].mxu0
        %v751 = vpop.f32.mrb[0].mxu0
        %v752 = vadd.f32 %v584, %v751
        %v753 = vpop.f32.mrb[0].mxu0
        %754 = vmatprep.mubr.bf16.mxu0 0
        %755 = vmatmul.mubr.bf16.gmra.mrb[0].mxu0 %v558
        %v756 = vpop.f32.mrb[0].mxu0
        %v757 = vadd.f32 %v584, %v756
        %v758 = vpop.f32.mrb[0].mxu0
        %v759 = vpop.f32.mrb[0].mxu0
        %v760 = vadd.f32 %v584, %v759
        %v761 = vpop.f32.mrb[0].mxu0
        %762 = vmatprep.mubr.bf16.mxu0 0
        %763 = vmatmul.mubr.bf16.gmra.mrb[0].mxu0 %v559
        %v764 = vpop.f32.mrb[0].mxu0
        %v765 = vadd.f32 %v584, %v764
        %v766 = vpop.f32.mrb[0].mxu0
        %v767 = vpop.f32.mrb[0].mxu0
        %v768 = vadd.f32 %v584, %v767
        %v769 = vpop.f32.mrb[0].mxu0
        %770 = vmatprep.mubr.bf16.mxu0 0
        %771 = vmatmul.mubr.bf16.gmra.mrb[0].mxu0 %v560
        %v772 = vpop.f32.mrb[0].mxu0
        %v773 = vadd.f32 %v584, %v772
        %v774 = vpop.f32.mrb[0].mxu0
        %v775 = vpop.f32.mrb[0].mxu0
        %v776 = vadd.f32 %v584, %v775
        %v777 = vpop.f32.mrb[0].mxu0
        %778 = vmatprep.mubr.bf16.mxu0 0
        %779 = vmatmul.mubr.bf16.gmra.mrb[0].mxu0 %v561
        %v780 = vpop.f32.mrb[0].mxu0
        %v781 = vadd.f32 %v584, %v780
        %v782 = vpop.f32.mrb[0].mxu0
        %v783 = vpop.f32.mrb[0].mxu0
        %v784 = vadd.f32 %v584, %v783
        %v785 = vpop.f32.mrb[0].mxu0
        %786 = vmatprep.mubr.bf16.mxu0 0
        %787 = vmatmul.mubr.bf16.gmra.mrb[0].mxu0 %v562
        %v788 = vpop.f32.mrb[0].mxu0
        %v789 = vadd.f32 %v584, %v788
        %v790 = vpop.f32.mrb[0].mxu0
        %v791 = vpop.f32.mrb[0].mxu0
        %v792 = vadd.f32 %v584, %v791
        %v793 = vpop.f32.mrb[0].mxu0
        %794 = vdwg.mxu0
        %v795 = vmax.f32 %v669, 0.0
        %v796 = vmax.f32 %v672, 0.0
        %v797 = vmax.f32 %v677, 0.0
        %v798 = vmax.f32 %v680, 0.0
        %v799 = vmax.f32 %v685, 0.0
        %v800 = vmax.f32 %v688, 0.0
        %v801 = vmax.f32 %v693, 0.0
        %v802 = vmax.f32 %v696, 0.0
        %v803 = vmax.f32 %v701, 0.0
        %v804 = vmax.f32 %v704, 0.0
        %v805 = vmax.f32 %v709, 0.0
        %v806 = vmax.f32 %v712, 0.0
        %v807 = vmax.f32 %v717, 0.0
        %v808 = vmax.f32 %v720, 0.0
        %v809 = vmax.f32 %v725, 0.0
        %v810 = vmax.f32 %v728, 0.0
        %v811 = vmax.f32 %v733, 0.0
        %v812 = vmax.f32 %v736, 0.0
        %v813 = vmax.f32 %v741, 0.0
        %v814 = vmax.f32 %v744, 0.0
        %v815 = vmax.f32 %v749, 0.0
        %v816 = vmax.f32 %v752, 0.0
        %v817 = vmax.f32 %v757, 0.0
        %v818 = vmax.f32 %v760, 0.0
        %v819 = vmax.f32 %v765, 0.0
        %v820 = vmax.f32 %v768, 0.0
        %v821 = vmax.f32 %v773, 0.0
        %v822 = vmax.f32 %v776, 0.0
        %v823 = vmax.f32 %v781, 0.0
        %v824 = vmax.f32 %v784, 0.0
        %v825 = vmax.f32 %v789, 0.0
        %v826 = vmax.f32 %v792, 0.0
        %v827 = vlaneseq
        %v828 = vshrl.u32 %v827, 7
        %v829 = vadd.s32 %v828, 8
        %v830 = vadd.s32 %v828, 16
        %v831 = vadd.s32 %v828, 24
        %v832 = vadd.s32 %v828, 32
        %v833 = vadd.s32 %v828, 40
        %v834 = vadd.s32 %v828, 48
        %v835 = vadd.s32 %v828, 56
        %v836 = vadd.s32 %v828, 64
        %v837 = vadd.s32 %v828, 72
        %v838 = vadd.s32 %v828, 80
        %v839 = vadd.s32 %v828, 88
        %v840 = vadd.s32 %v828, 96
        %v841 = vadd.s32 %v828, 104
        %v842 = vadd.s32 %v828, 112
        %v843 = vadd.s32 %v828, 120
        %v844 = vadd.s32 %v828, 128
        %v845 = vadd.s32 %v828, 136
        %v846 = vadd.s32 %v828, 144
        %v847 = vadd.s32 %v828, 152
        %v848 = vadd.s32 %v828, 160
        %v849 = vadd.s32 %v828, 168
        %v850 = vadd.s32 %v828, 176
        %v851 = vadd.s32 %v828, 184
        %v852 = vadd.s32 %v828, 192
        %v853 = vadd.s32 %v828, 200
        %v854 = vadd.s32 %v828, 208
        %v855 = vadd.s32 %v828, 216
        %v856 = vadd.s32 %v828, 224
        %v857 = vadd.s32 %v828, 232
        %v858 = vadd.s32 %v828, 240
        %v859 = vadd.s32 %v828, 248
        %v860 = vand.u32 %v828, 15
        %v861 = vand.u32 %v829, 15
        %v862 = vand.u32 %v830, 15
        %v863 = vand.u32 %v831, 15
        %v864 = vand.u32 %v832, 15
        %v865 = vand.u32 %v833, 15
        %v866 = vand.u32 %v834, 15
        %v867 = vand.u32 %v835, 15
        %v868 = vand.u32 %v836, 15
        %v869 = vand.u32 %v837, 15
        %v870 = vand.u32 %v838, 15
        %v871 = vand.u32 %v839, 15
        %v872 = vand.u32 %v840, 15
        %v873 = vand.u32 %v841, 15
        %v874 = vand.u32 %v842, 15
        %v875 = vand.u32 %v843, 15
        %v876 = vand.u32 %v844, 15
        %v877 = vand.u32 %v845, 15
        %v878 = vand.u32 %v846, 15
        %v879 = vand.u32 %v847, 15
        %v880 = vand.u32 %v848, 15
        %v881 = vand.u32 %v849, 15
        %v882 = vand.u32 %v850, 15
        %v883 = vand.u32 %v851, 15
        %v884 = vand.u32 %v852, 15
        %v885 = vand.u32 %v853, 15
        %v886 = vand.u32 %v854, 15
        %v887 = vand.u32 %v855, 15
        %v888 = vand.u32 %v856, 15
        %v889 = vand.u32 %v857, 15
        %v890 = vand.u32 %v858, 15
        %v891 = vand.u32 %v859, 15
        %v892 = vrot.slane %v795, 7
        %v893 = vrot.slane %v796, 7
        %v894 = vrot.slane %v797, 7
        %v895 = vrot.slane %v798, 7
        %v896 = vrot.slane %v799, 7
        %v897 = vrot.slane %v800, 7
        %v898 = vrot.slane %v801, 7
        %v899 = vrot.slane %v802, 7
        %v900 = vrot.slane %v803, 7
        %v901 = vrot.slane %v804, 7
        %v902 = vrot.slane %v805, 7
        %v903 = vrot.slane %v806, 7
        %v904 = vrot.slane %v807, 7
        %v905 = vrot.slane %v808, 7
        %v906 = vrot.slane %v809, 7
        %v907 = vrot.slane %v810, 7
        %v908 = vrot.slane %v811, 7
        %v909 = vrot.slane %v812, 7
        %v910 = vrot.slane %v813, 7
        %v911 = vrot.slane %v814, 7
        %v912 = vrot.slane %v815, 7
        %v913 = vrot.slane %v816, 7
        %v914 = vrot.slane %v817, 7
        %v915 = vrot.slane %v818, 7
        %v916 = vrot.slane %v819, 7
        %v917 = vrot.slane %v820, 7
        %v918 = vrot.slane %v821, 7
        %v919 = vrot.slane %v822, 7
        %v920 = vrot.slane %v823, 7
        %v921 = vrot.slane %v824, 7
        %v922 = vrot.slane %v825, 7
        %v923 = vrot.slane %v826, 7
        %vm924 = vcmp.lt.s32.totalorder %v828, 1
        %v925 = vsel %vm924, %v922, %v923
        %v926 = vsel %vm924, %v921, %v922
        %v927 = vsel %vm924, %v920, %v921
        %v928 = vsel %vm924, %v919, %v920
        %v929 = vsel %vm924, %v918, %v919
        %v930 = vsel %vm924, %v917, %v918
        %v931 = vsel %vm924, %v916, %v917
        %v932 = vsel %vm924, %v915, %v916
        %v933 = vsel %vm924, %v914, %v915
        %v934 = vsel %vm924, %v913, %v914
        %v935 = vsel %vm924, %v912, %v913
        %v936 = vsel %vm924, %v911, %v912
        %v937 = vsel %vm924, %v910, %v911
        %v938 = vsel %vm924, %v909, %v910
        %v939 = vsel %vm924, %v908, %v909
        %v940 = vsel %vm924, %v907, %v908
        %v941 = vsel %vm924, %v906, %v907
        %v942 = vsel %vm924, %v905, %v906
        %v943 = vsel %vm924, %v904, %v905
        %v944 = vsel %vm924, %v903, %v904
        %v945 = vsel %vm924, %v902, %v903
        %v946 = vsel %vm924, %v901, %v902
        %v947 = vsel %vm924, %v900, %v901
        %v948 = vsel %vm924, %v899, %v900
        %v949 = vsel %vm924, %v898, %v899
        %v950 = vsel %vm924, %v897, %v898
        %v951 = vsel %vm924, %v896, %v897
        %v952 = vsel %vm924, %v895, %v896
        %v953 = vsel %vm924, %v894, %v895
        %v954 = vsel %vm924, %v893, %v894
        %v955 = vsel %vm924, %v892, %v893
        %v956 = vsel %vm924, %v923, %v892
        %vm957 = vcmp.ge.s32.totalorder %v828, 16
        %vm958 = vcmp.ge.s32.totalorder %v829, 16
        %vm959 = vcmp.ge.s32.totalorder %v830, 16
        %vm960 = vcmp.ge.s32.totalorder %v831, 16
        %vm961 = vcmp.ge.s32.totalorder %v832, 16
        %vm962 = vcmp.ge.s32.totalorder %v833, 16
        %vm963 = vcmp.ge.s32.totalorder %v834, 16
        %vm964 = vcmp.ge.s32.totalorder %v835, 16
        %vm965 = vcmp.ge.s32.totalorder %v836, 16
        %vm966 = vcmp.ge.s32.totalorder %v837, 16
        %vm967 = vcmp.ge.s32.totalorder %v838, 16
        %vm968 = vcmp.ge.s32.totalorder %v839, 16
        %vm969 = vcmp.ge.s32.totalorder %v840, 16
        %vm970 = vcmp.ge.s32.totalorder %v841, 16
        %vm971 = vcmp.ge.s32.totalorder %v842, 16
        %vm972 = vcmp.ge.s32.totalorder %v843, 16
        %vm973 = vcmp.ge.s32.totalorder %v844, 16
        %vm974 = vcmp.ge.s32.totalorder %v845, 16
        %vm975 = vcmp.ge.s32.totalorder %v846, 16
        %vm976 = vcmp.ge.s32.totalorder %v847, 16
        %vm977 = vcmp.ge.s32.totalorder %v848, 16
        %vm978 = vcmp.ge.s32.totalorder %v849, 16
        %vm979 = vcmp.ge.s32.totalorder %v850, 16
        %vm980 = vcmp.ge.s32.totalorder %v851, 16
        %vm981 = vcmp.ge.s32.totalorder %v852, 16
        %vm982 = vcmp.ge.s32.totalorder %v853, 16
        %vm983 = vcmp.ge.s32.totalorder %v854, 16
        %vm984 = vcmp.ge.s32.totalorder %v855, 16
        %vm985 = vcmp.ge.s32.totalorder %v856, 16
        %vm986 = vcmp.ge.s32.totalorder %v857, 16
        %vm987 = vcmp.ge.s32.totalorder %v858, 16
        %vm988 = vcmp.ge.s32.totalorder %v859, 16
        %vm989 = vcmp.ge.s32.totalorder %v860, 1
        %vm990 = vcmp.ge.s32.totalorder %v861, 1
        %vm991 = vcmp.ge.s32.totalorder %v862, 1
        %vm992 = vcmp.ge.s32.totalorder %v863, 1
        %vm993 = vcmp.ge.s32.totalorder %v864, 1
        %vm994 = vcmp.ge.s32.totalorder %v865, 1
        %vm995 = vcmp.ge.s32.totalorder %v866, 1
        %vm996 = vcmp.ge.s32.totalorder %v867, 1
        %vm997 = vcmp.ge.s32.totalorder %v868, 1
        %vm998 = vcmp.ge.s32.totalorder %v869, 1
        %vm999 = vcmp.ge.s32.totalorder %v870, 1
        %vm1000 = vcmp.ge.s32.totalorder %v871, 1
        %vm1001 = vcmp.ge.s32.totalorder %v872, 1
        %vm1002 = vcmp.ge.s32.totalorder %v873, 1
        %vm1003 = vcmp.ge.s32.totalorder %v874, 1
        %vm1004 = vcmp.ge.s32.totalorder %v875, 1
        %vm1005 = vcmp.ge.s32.totalorder %v876, 1
        %vm1006 = vcmp.ge.s32.totalorder %v877, 1
        %vm1007 = vcmp.ge.s32.totalorder %v878, 1
        %vm1008 = vcmp.ge.s32.totalorder %v879, 1
        %vm1009 = vcmp.ge.s32.totalorder %v880, 1
        %vm1010 = vcmp.ge.s32.totalorder %v881, 1
        %vm1011 = vcmp.ge.s32.totalorder %v882, 1
        %vm1012 = vcmp.ge.s32.totalorder %v883, 1
        %vm1013 = vcmp.ge.s32.totalorder %v884, 1
        %vm1014 = vcmp.ge.s32.totalorder %v885, 1
        %vm1015 = vcmp.ge.s32.totalorder %v886, 1
        %vm1016 = vcmp.ge.s32.totalorder %v887, 1
        %vm1017 = vcmp.ge.s32.totalorder %v888, 1
        %vm1018 = vcmp.ge.s32.totalorder %v889, 1
        %vm1019 = vcmp.ge.s32.totalorder %v890, 1
        %vm1020 = vcmp.ge.s32.totalorder %v891, 1
        %vm1021 = vmand %vm957, %vm989
        %vm1022 = vmand %vm958, %vm990
        %vm1023 = vmand %vm959, %vm991
        %vm1024 = vmand %vm960, %vm992
        %vm1025 = vmand %vm961, %vm993
        %vm1026 = vmand %vm962, %vm994
        %vm1027 = vmand %vm963, %vm995
        %vm1028 = vmand %vm964, %vm996
        %vm1029 = vmand %vm965, %vm997
        %vm1030 = vmand %vm966, %vm998
        %vm1031 = vmand %vm967, %vm999
        %vm1032 = vmand %vm968, %vm1000
        %vm1033 = vmand %vm969, %vm1001
        %vm1034 = vmand %vm970, %vm1002
        %vm1035 = vmand %vm971, %vm1003
        %vm1036 = vmand %vm972, %vm1004
        %vm1037 = vmand %vm973, %vm1005
        %vm1038 = vmand %vm974, %vm1006
        %vm1039 = vmand %vm975, %vm1007
        %vm1040 = vmand %vm976, %vm1008
        %vm1041 = vmand %vm977, %vm1009
        %vm1042 = vmand %vm978, %vm1010
        %vm1043 = vmand %vm979, %vm1011
        %vm1044 = vmand %vm980, %vm1012
        %vm1045 = vmand %vm981, %vm1013
        %vm1046 = vmand %vm982, %vm1014
        %vm1047 = vmand %vm983, %vm1015
        %vm1048 = vmand %vm984, %vm1016
        %vm1049 = vmand %vm985, %vm1017
        %vm1050 = vmand %vm986, %vm1018
        %vm1051 = vmand %vm987, %vm1019
        %vm1052 = vmand %vm988, %vm1020
        %v1053 = vsel %vm1021, 1, 0
        %v1054 = vsel %vm1022, 1, 0
        %v1055 = vsel %vm1023, 1, 0
        %v1056 = vsel %vm1024, 1, 0
        %v1057 = vsel %vm1025, 1, 0
        %v1058 = vsel %vm1026, 1, 0
        %v1059 = vsel %vm1027, 1, 0
        %v1060 = vsel %vm1028, 1, 0
        %v1061 = vsel %vm1029, 1, 0
        %v1062 = vsel %vm1030, 1, 0
        %v1063 = vsel %vm1031, 1, 0
        %v1064 = vsel %vm1032, 1, 0
        %v1065 = vsel %vm1033, 1, 0
        %v1066 = vsel %vm1034, 1, 0
        %v1067 = vsel %vm1035, 1, 0
        %v1068 = vsel %vm1036, 1, 0
        %v1069 = vsel %vm1037, 1, 0
        %v1070 = vsel %vm1038, 1, 0
        %v1071 = vsel %vm1039, 1, 0
        %v1072 = vsel %vm1040, 1, 0
        %v1073 = vsel %vm1041, 1, 0
        %v1074 = vsel %vm1042, 1, 0
        %v1075 = vsel %vm1043, 1, 0
        %v1076 = vsel %vm1044, 1, 0
        %v1077 = vsel %vm1045, 1, 0
        %v1078 = vsel %vm1046, 1, 0
        %v1079 = vsel %vm1047, 1, 0
        %v1080 = vsel %vm1048, 1, 0
        %v1081 = vsel %vm1049, 1, 0
        %v1082 = vsel %vm1050, 1, 0
        %v1083 = vsel %vm1051, 1, 0
        %v1084 = vsel %vm1052, 1, 0
        %vm1085 = vcmp.eq.s32.totalorder %v1053, 1
        %vm1086 = vcmp.eq.s32.totalorder %v1054, 1
        %vm1087 = vcmp.eq.s32.totalorder %v1055, 1
        %vm1088 = vcmp.eq.s32.totalorder %v1056, 1
        %vm1089 = vcmp.eq.s32.totalorder %v1057, 1
        %vm1090 = vcmp.eq.s32.totalorder %v1058, 1
        %vm1091 = vcmp.eq.s32.totalorder %v1059, 1
        %vm1092 = vcmp.eq.s32.totalorder %v1060, 1
        %vm1093 = vcmp.eq.s32.totalorder %v1061, 1
        %vm1094 = vcmp.eq.s32.totalorder %v1062, 1
        %vm1095 = vcmp.eq.s32.totalorder %v1063, 1
        %vm1096 = vcmp.eq.s32.totalorder %v1064, 1
        %vm1097 = vcmp.eq.s32.totalorder %v1065, 1
        %vm1098 = vcmp.eq.s32.totalorder %v1066, 1
        %vm1099 = vcmp.eq.s32.totalorder %v1067, 1
        %vm1100 = vcmp.eq.s32.totalorder %v1068, 1
        %vm1101 = vcmp.eq.s32.totalorder %v1069, 1
        %vm1102 = vcmp.eq.s32.totalorder %v1070, 1
        %vm1103 = vcmp.eq.s32.totalorder %v1071, 1
        %vm1104 = vcmp.eq.s32.totalorder %v1072, 1
        %vm1105 = vcmp.eq.s32.totalorder %v1073, 1
        %vm1106 = vcmp.eq.s32.totalorder %v1074, 1
        %vm1107 = vcmp.eq.s32.totalorder %v1075, 1
        %vm1108 = vcmp.eq.s32.totalorder %v1076, 1
        %vm1109 = vcmp.eq.s32.totalorder %v1077, 1
        %vm1110 = vcmp.eq.s32.totalorder %v1078, 1
        %vm1111 = vcmp.eq.s32.totalorder %v1079, 1
        %vm1112 = vcmp.eq.s32.totalorder %v1080, 1
        %vm1113 = vcmp.eq.s32.totalorder %v1081, 1
        %vm1114 = vcmp.eq.s32.totalorder %v1082, 1
        %vm1115 = vcmp.eq.s32.totalorder %v1083, 1
        %vm1116 = vcmp.eq.s32.totalorder %v1084, 1
        %v1117 = vsel %vm1085, %v926, 0.0
        %v1118 = vsel %vm1086, %v925, 0.0
        %v1119 = vsel %vm1087, %v956, 0.0
        %v1120 = vsel %vm1088, %v955, 0.0
        %v1121 = vsel %vm1089, %v954, 0.0
        %v1122 = vsel %vm1090, %v953, 0.0
        %v1123 = vsel %vm1091, %v952, 0.0
        %v1124 = vsel %vm1092, %v951, 0.0
        %v1125 = vsel %vm1093, %v950, 0.0
        %v1126 = vsel %vm1094, %v949, 0.0
        %v1127 = vsel %vm1095, %v948, 0.0
        %v1128 = vsel %vm1096, %v947, 0.0
        %v1129 = vsel %vm1097, %v946, 0.0
        %v1130 = vsel %vm1098, %v945, 0.0
        %v1131 = vsel %vm1099, %v944, 0.0
        %v1132 = vsel %vm1100, %v943, 0.0
        %v1133 = vsel %vm1101, %v942, 0.0
        %v1134 = vsel %vm1102, %v941, 0.0
        %v1135 = vsel %vm1103, %v940, 0.0
        %v1136 = vsel %vm1104, %v939, 0.0
        %v1137 = vsel %vm1105, %v938, 0.0
        %v1138 = vsel %vm1106, %v937, 0.0
        %v1139 = vsel %vm1107, %v936, 0.0
        %v1140 = vsel %vm1108, %v935, 0.0
        %v1141 = vsel %vm1109, %v934, 0.0
        %v1142 = vsel %vm1110, %v933, 0.0
        %v1143 = vsel %vm1111, %v932, 0.0
        %v1144 = vsel %vm1112, %v931, 0.0
        %v1145 = vsel %vm1113, %v930, 0.0
        %v1146 = vsel %vm1114, %v929, 0.0
        %v1147 = vsel %vm1115, %v928, 0.0
        %v1148 = vsel %vm1116, %v927, 0.0
        %v1149 = vpack.c.bf16 %v1118, %v1117
        %v1150 = vpack.c.bf16 %v1120, %v1119
        %v1151 = vpack.c.bf16 %v1122, %v1121
        %v1152 = vpack.c.bf16 %v1124, %v1123
        %v1153 = vpack.c.bf16 %v1126, %v1125
        %v1154 = vpack.c.bf16 %v1128, %v1127
        %v1155 = vpack.c.bf16 %v1130, %v1129
        %v1156 = vpack.c.bf16 %v1132, %v1131
        %v1157 = vpack.c.bf16 %v1134, %v1133
        %v1158 = vpack.c.bf16 %v1136, %v1135
        %v1159 = vpack.c.bf16 %v1138, %v1137
        %v1160 = vpack.c.bf16 %v1140, %v1139
        %v1161 = vpack.c.bf16 %v1142, %v1141
        %v1162 = vpack.c.bf16 %v1144, %v1143
        %v1163 = vpack.c.bf16 %v1146, %v1145
        %v1164 = vpack.c.bf16 %v1148, %v1147
        %v1165 = vsel %vm957, 1, 0
        %v1166 = vsel %vm958, 1, 0
        %v1167 = vsel %vm959, 1, 0
        %v1168 = vsel %vm960, 1, 0
        %v1169 = vsel %vm961, 1, 0
        %v1170 = vsel %vm962, 1, 0
        %v1171 = vsel %vm963, 1, 0
        %v1172 = vsel %vm964, 1, 0
        %v1173 = vsel %vm965, 1, 0
        %v1174 = vsel %vm966, 1, 0
        %v1175 = vsel %vm967, 1, 0
        %v1176 = vsel %vm968, 1, 0
        %v1177 = vsel %vm969, 1, 0
        %v1178 = vsel %vm970, 1, 0
        %v1179 = vsel %vm971, 1, 0
        %v1180 = vsel %vm972, 1, 0
        %v1181 = vsel %vm973, 1, 0
        %v1182 = vsel %vm974, 1, 0
        %v1183 = vsel %vm975, 1, 0
        %v1184 = vsel %vm976, 1, 0
        %v1185 = vsel %vm977, 1, 0
        %v1186 = vsel %vm978, 1, 0
        %v1187 = vsel %vm979, 1, 0
        %v1188 = vsel %vm980, 1, 0
        %v1189 = vsel %vm981, 1, 0
        %v1190 = vsel %vm982, 1, 0
        %v1191 = vsel %vm983, 1, 0
        %v1192 = vsel %vm984, 1, 0
        %v1193 = vsel %vm985, 1, 0
        %v1194 = vsel %vm986, 1, 0
        %v1195 = vsel %vm987, 1, 0
        %v1196 = vsel %vm988, 1, 0
        %vm1197 = vcmp.eq.s32.totalorder %v1165, 1
        %vm1198 = vcmp.eq.s32.totalorder %v1166, 1
        %vm1199 = vcmp.eq.s32.totalorder %v1167, 1
        %vm1200 = vcmp.eq.s32.totalorder %v1168, 1
        %vm1201 = vcmp.eq.s32.totalorder %v1169, 1
        %vm1202 = vcmp.eq.s32.totalorder %v1170, 1
        %vm1203 = vcmp.eq.s32.totalorder %v1171, 1
        %vm1204 = vcmp.eq.s32.totalorder %v1172, 1
        %vm1205 = vcmp.eq.s32.totalorder %v1173, 1
        %vm1206 = vcmp.eq.s32.totalorder %v1174, 1
        %vm1207 = vcmp.eq.s32.totalorder %v1175, 1
        %vm1208 = vcmp.eq.s32.totalorder %v1176, 1
        %vm1209 = vcmp.eq.s32.totalorder %v1177, 1
        %vm1210 = vcmp.eq.s32.totalorder %v1178, 1
        %vm1211 = vcmp.eq.s32.totalorder %v1179, 1
        %vm1212 = vcmp.eq.s32.totalorder %v1180, 1
        %vm1213 = vcmp.eq.s32.totalorder %v1181, 1
        %vm1214 = vcmp.eq.s32.totalorder %v1182, 1
        %vm1215 = vcmp.eq.s32.totalorder %v1183, 1
        %vm1216 = vcmp.eq.s32.totalorder %v1184, 1
        %vm1217 = vcmp.eq.s32.totalorder %v1185, 1
        %vm1218 = vcmp.eq.s32.totalorder %v1186, 1
        %vm1219 = vcmp.eq.s32.totalorder %v1187, 1
        %vm1220 = vcmp.eq.s32.totalorder %v1188, 1
        %vm1221 = vcmp.eq.s32.totalorder %v1189, 1
        %vm1222 = vcmp.eq.s32.totalorder %v1190, 1
        %vm1223 = vcmp.eq.s32.totalorder %v1191, 1
        %vm1224 = vcmp.eq.s32.totalorder %v1192, 1
        %vm1225 = vcmp.eq.s32.totalorder %v1193, 1
        %vm1226 = vcmp.eq.s32.totalorder %v1194, 1
        %vm1227 = vcmp.eq.s32.totalorder %v1195, 1
        %vm1228 = vcmp.eq.s32.totalorder %v1196, 1
        %v1229 = vsel %vm1197, %v825, 0.0
        %v1230 = vsel %vm1198, %v826, 0.0
        %v1231 = vsel %vm1199, %v795, 0.0
        %v1232 = vsel %vm1200, %v796, 0.0
        %v1233 = vsel %vm1201, %v797, 0.0
        %v1234 = vsel %vm1202, %v798, 0.0
        %v1235 = vsel %vm1203, %v799, 0.0
        %v1236 = vsel %vm1204, %v800, 0.0
        %v1237 = vsel %vm1205, %v801, 0.0
        %v1238 = vsel %vm1206, %v802, 0.0
        %v1239 = vsel %vm1207, %v803, 0.0
        %v1240 = vsel %vm1208, %v804, 0.0
        %v1241 = vsel %vm1209, %v805, 0.0
        %v1242 = vsel %vm1210, %v806, 0.0
        %v1243 = vsel %vm1211, %v807, 0.0
        %v1244 = vsel %vm1212, %v808, 0.0
        %v1245 = vsel %vm1213, %v809, 0.0
        %v1246 = vsel %vm1214, %v810, 0.0
        %v1247 = vsel %vm1215, %v811, 0.0
        %v1248 = vsel %vm1216, %v812, 0.0
        %v1249 = vsel %vm1217, %v813, 0.0
        %v1250 = vsel %vm1218, %v814, 0.0
        %v1251 = vsel %vm1219, %v815, 0.0
        %v1252 = vsel %vm1220, %v816, 0.0
        %v1253 = vsel %vm1221, %v817, 0.0
        %v1254 = vsel %vm1222, %v818, 0.0
        %v1255 = vsel %vm1223, %v819, 0.0
        %v1256 = vsel %vm1224, %v820, 0.0
        %v1257 = vsel %vm1225, %v821, 0.0
        %v1258 = vsel %vm1226, %v822, 0.0
        %v1259 = vsel %vm1227, %v823, 0.0
        %v1260 = vsel %vm1228, %v824, 0.0
        %v1261 = vpack.c.bf16 %v1230, %v1229
        %v1262 = vpack.c.bf16 %v1232, %v1231
        %v1263 = vpack.c.bf16 %v1234, %v1233
        %v1264 = vpack.c.bf16 %v1236, %v1235
        %v1265 = vpack.c.bf16 %v1238, %v1237
        %v1266 = vpack.c.bf16 %v1240, %v1239
        %v1267 = vpack.c.bf16 %v1242, %v1241
        %v1268 = vpack.c.bf16 %v1244, %v1243
        %v1269 = vpack.c.bf16 %v1246, %v1245
        %v1270 = vpack.c.bf16 %v1248, %v1247
        %v1271 = vpack.c.bf16 %v1250, %v1249
        %v1272 = vpack.c.bf16 %v1252, %v1251
        %v1273 = vpack.c.bf16 %v1254, %v1253
        %v1274 = vpack.c.bf16 %v1256, %v1255
        %v1275 = vpack.c.bf16 %v1258, %v1257
        %v1276 = vpack.c.bf16 %v1260, %v1259
        %v1277 = vrot.slane %v795, 1
        %v1278 = vrot.slane %v796, 1
        %v1279 = vrot.slane %v797, 1
        %v1280 = vrot.slane %v798, 1
        %v1281 = vrot.slane %v799, 1
        %v1282 = vrot.slane %v800, 1
        %v1283 = vrot.slane %v801, 1
        %v1284 = vrot.slane %v802, 1
        %v1285 = vrot.slane %v803, 1
        %v1286 = vrot.slane %v804, 1
        %v1287 = vrot.slane %v805, 1
        %v1288 = vrot.slane %v806, 1
        %v1289 = vrot.slane %v807, 1
        %v1290 = vrot.slane %v808, 1
        %v1291 = vrot.slane %v809, 1
        %v1292 = vrot.slane %v810, 1
        %v1293 = vrot.slane %v811, 1
        %v1294 = vrot.slane %v812, 1
        %v1295 = vrot.slane %v813, 1
        %v1296 = vrot.slane %v814, 1
        %v1297 = vrot.slane %v815, 1
        %v1298 = vrot.slane %v816, 1
        %v1299 = vrot.slane %v817, 1
        %v1300 = vrot.slane %v818, 1
        %v1301 = vrot.slane %v819, 1
        %v1302 = vrot.slane %v820, 1
        %v1303 = vrot.slane %v821, 1
        %v1304 = vrot.slane %v822, 1
        %v1305 = vrot.slane %v823, 1
        %v1306 = vrot.slane %v824, 1
        %v1307 = vrot.slane %v825, 1
        %v1308 = vrot.slane %v826, 1
        %vm1309 = vcmp.lt.s32.totalorder %v828, 7
        %v1310 = vsel %vm1309, %v1307, %v1308
        %v1311 = vsel %vm1309, %v1306, %v1307
        %v1312 = vsel %vm1309, %v1305, %v1306
        %v1313 = vsel %vm1309, %v1304, %v1305
        %v1314 = vsel %vm1309, %v1303, %v1304
        %v1315 = vsel %vm1309, %v1302, %v1303
        %v1316 = vsel %vm1309, %v1301, %v1302
        %v1317 = vsel %vm1309, %v1300, %v1301
        %v1318 = vsel %vm1309, %v1299, %v1300
        %v1319 = vsel %vm1309, %v1298, %v1299
        %v1320 = vsel %vm1309, %v1297, %v1298
        %v1321 = vsel %vm1309, %v1296, %v1297
        %v1322 = vsel %vm1309, %v1295, %v1296
        %v1323 = vsel %vm1309, %v1294, %v1295
        %v1324 = vsel %vm1309, %v1293, %v1294
        %v1325 = vsel %vm1309, %v1292, %v1293
        %v1326 = vsel %vm1309, %v1291, %v1292
        %v1327 = vsel %vm1309, %v1290, %v1291
        %v1328 = vsel %vm1309, %v1289, %v1290
        %v1329 = vsel %vm1309, %v1288, %v1289
        %v1330 = vsel %vm1309, %v1287, %v1288
        %v1331 = vsel %vm1309, %v1286, %v1287
        %v1332 = vsel %vm1309, %v1285, %v1286
        %v1333 = vsel %vm1309, %v1284, %v1285
        %v1334 = vsel %vm1309, %v1283, %v1284
        %v1335 = vsel %vm1309, %v1282, %v1283
        %v1336 = vsel %vm1309, %v1281, %v1282
        %v1337 = vsel %vm1309, %v1280, %v1281
        %v1338 = vsel %vm1309, %v1279, %v1280
        %v1339 = vsel %vm1309, %v1278, %v1279
        %v1340 = vsel %vm1309, %v1277, %v1278
        %v1341 = vsel %vm1309, %v1308, %v1277
        %vm1342 = vcmp.lt.s32.totalorder %v860, 15
        %vm1343 = vcmp.lt.s32.totalorder %v861, 15
        %vm1344 = vcmp.lt.s32.totalorder %v862, 15
        %vm1345 = vcmp.lt.s32.totalorder %v863, 15
        %vm1346 = vcmp.lt.s32.totalorder %v864, 15
        %vm1347 = vcmp.lt.s32.totalorder %v865, 15
        %vm1348 = vcmp.lt.s32.totalorder %v866, 15
        %vm1349 = vcmp.lt.s32.totalorder %v867, 15
        %vm1350 = vcmp.lt.s32.totalorder %v868, 15
        %vm1351 = vcmp.lt.s32.totalorder %v869, 15
        %vm1352 = vcmp.lt.s32.totalorder %v870, 15
        %vm1353 = vcmp.lt.s32.totalorder %v871, 15
        %vm1354 = vcmp.lt.s32.totalorder %v872, 15
        %vm1355 = vcmp.lt.s32.totalorder %v873, 15
        %vm1356 = vcmp.lt.s32.totalorder %v874, 15
        %vm1357 = vcmp.lt.s32.totalorder %v875, 15
        %vm1358 = vcmp.lt.s32.totalorder %v876, 15
        %vm1359 = vcmp.lt.s32.totalorder %v877, 15
        %vm1360 = vcmp.lt.s32.totalorder %v878, 15
        %vm1361 = vcmp.lt.s32.totalorder %v879, 15
        %vm1362 = vcmp.lt.s32.totalorder %v880, 15
        %vm1363 = vcmp.lt.s32.totalorder %v881, 15
        %vm1364 = vcmp.lt.s32.totalorder %v882, 15
        %vm1365 = vcmp.lt.s32.totalorder %v883, 15
        %vm1366 = vcmp.lt.s32.totalorder %v884, 15
        %vm1367 = vcmp.lt.s32.totalorder %v885, 15
        %vm1368 = vcmp.lt.s32.totalorder %v886, 15
        %vm1369 = vcmp.lt.s32.totalorder %v887, 15
        %vm1370 = vcmp.lt.s32.totalorder %v888, 15
        %vm1371 = vcmp.lt.s32.totalorder %v889, 15
        %vm1372 = vcmp.lt.s32.totalorder %v890, 15
        %vm1373 = vcmp.lt.s32.totalorder %v891, 15
        %vm1374 = vmand %vm957, %vm1342
        %vm1375 = vmand %vm958, %vm1343
        %vm1376 = vmand %vm959, %vm1344
        %vm1377 = vmand %vm960, %vm1345
        %vm1378 = vmand %vm961, %vm1346
        %vm1379 = vmand %vm962, %vm1347
        %vm1380 = vmand %vm963, %vm1348
        %vm1381 = vmand %vm964, %vm1349
        %vm1382 = vmand %vm965, %vm1350
        %vm1383 = vmand %vm966, %vm1351
        %vm1384 = vmand %vm967, %vm1352
        %vm1385 = vmand %vm968, %vm1353
        %vm1386 = vmand %vm969, %vm1354
        %vm1387 = vmand %vm970, %vm1355
        %vm1388 = vmand %vm971, %vm1356
        %vm1389 = vmand %vm972, %vm1357
        %vm1390 = vmand %vm973, %vm1358
        %vm1391 = vmand %vm974, %vm1359
        %vm1392 = vmand %vm975, %vm1360
        %vm1393 = vmand %vm976, %vm1361
        %vm1394 = vmand %vm977, %vm1362
        %vm1395 = vmand %vm978, %vm1363
        %vm1396 = vmand %vm979, %vm1364
        %vm1397 = vmand %vm980, %vm1365
        %vm1398 = vmand %vm981, %vm1366
        %vm1399 = vmand %vm982, %vm1367
        %vm1400 = vmand %vm983, %vm1368
        %vm1401 = vmand %vm984, %vm1369
        %vm1402 = vmand %vm985, %vm1370
        %vm1403 = vmand %vm986, %vm1371
        %vm1404 = vmand %vm987, %vm1372
        %vm1405 = vmand %vm988, %vm1373
        %v1406 = vsel %vm1374, 1, 0
        %v1407 = vsel %vm1375, 1, 0
        %v1408 = vsel %vm1376, 1, 0
        %v1409 = vsel %vm1377, 1, 0
        %v1410 = vsel %vm1378, 1, 0
        %v1411 = vsel %vm1379, 1, 0
        %v1412 = vsel %vm1380, 1, 0
        %v1413 = vsel %vm1381, 1, 0
        %v1414 = vsel %vm1382, 1, 0
        %v1415 = vsel %vm1383, 1, 0
        %v1416 = vsel %vm1384, 1, 0
        %v1417 = vsel %vm1385, 1, 0
        %v1418 = vsel %vm1386, 1, 0
        %v1419 = vsel %vm1387, 1, 0
        %v1420 = vsel %vm1388, 1, 0
        %v1421 = vsel %vm1389, 1, 0
        %v1422 = vsel %vm1390, 1, 0
        %v1423 = vsel %vm1391, 1, 0
        %v1424 = vsel %vm1392, 1, 0
        %v1425 = vsel %vm1393, 1, 0
        %v1426 = vsel %vm1394, 1, 0
        %v1427 = vsel %vm1395, 1, 0
        %v1428 = vsel %vm1396, 1, 0
        %v1429 = vsel %vm1397, 1, 0
        %v1430 = vsel %vm1398, 1, 0
        %v1431 = vsel %vm1399, 1, 0
        %v1432 = vsel %vm1400, 1, 0
        %v1433 = vsel %vm1401, 1, 0
        %v1434 = vsel %vm1402, 1, 0
        %v1435 = vsel %vm1403, 1, 0
        %v1436 = vsel %vm1404, 1, 0
        %v1437 = vsel %vm1405, 1, 0
        %vm1438 = vcmp.eq.s32.totalorder %v1406, 1
        %vm1439 = vcmp.eq.s32.totalorder %v1407, 1
        %vm1440 = vcmp.eq.s32.totalorder %v1408, 1
        %vm1441 = vcmp.eq.s32.totalorder %v1409, 1
        %vm1442 = vcmp.eq.s32.totalorder %v1410, 1
        %vm1443 = vcmp.eq.s32.totalorder %v1411, 1
        %vm1444 = vcmp.eq.s32.totalorder %v1412, 1
        %vm1445 = vcmp.eq.s32.totalorder %v1413, 1
        %vm1446 = vcmp.eq.s32.totalorder %v1414, 1
        %vm1447 = vcmp.eq.s32.totalorder %v1415, 1
        %vm1448 = vcmp.eq.s32.totalorder %v1416, 1
        %vm1449 = vcmp.eq.s32.totalorder %v1417, 1
        %vm1450 = vcmp.eq.s32.totalorder %v1418, 1
        %vm1451 = vcmp.eq.s32.totalorder %v1419, 1
        %vm1452 = vcmp.eq.s32.totalorder %v1420, 1
        %vm1453 = vcmp.eq.s32.totalorder %v1421, 1
        %vm1454 = vcmp.eq.s32.totalorder %v1422, 1
        %vm1455 = vcmp.eq.s32.totalorder %v1423, 1
        %vm1456 = vcmp.eq.s32.totalorder %v1424, 1
        %vm1457 = vcmp.eq.s32.totalorder %v1425, 1
        %vm1458 = vcmp.eq.s32.totalorder %v1426, 1
        %vm1459 = vcmp.eq.s32.totalorder %v1427, 1
        %vm1460 = vcmp.eq.s32.totalorder %v1428, 1
        %vm1461 = vcmp.eq.s32.totalorder %v1429, 1
        %vm1462 = vcmp.eq.s32.totalorder %v1430, 1
        %vm1463 = vcmp.eq.s32.totalorder %v1431, 1
        %vm1464 = vcmp.eq.s32.totalorder %v1432, 1
        %vm1465 = vcmp.eq.s32.totalorder %v1433, 1
        %vm1466 = vcmp.eq.s32.totalorder %v1434, 1
        %vm1467 = vcmp.eq.s32.totalorder %v1435, 1
        %vm1468 = vcmp.eq.s32.totalorder %v1436, 1
        %vm1469 = vcmp.eq.s32.totalorder %v1437, 1
        %v1470 = vsel %vm1438, %v1310, 0.0
        %v1471 = vsel %vm1439, %v1341, 0.0
        %v1472 = vsel %vm1440, %v1340, 0.0
        %v1473 = vsel %vm1441, %v1339, 0.0
        %v1474 = vsel %vm1442, %v1338, 0.0
        %v1475 = vsel %vm1443, %v1337, 0.0
        %v1476 = vsel %vm1444, %v1336, 0.0
        %v1477 = vsel %vm1445, %v1335, 0.0
        %v1478 = vsel %vm1446, %v1334, 0.0
        %v1479 = vsel %vm1447, %v1333, 0.0
        %v1480 = vsel %vm1448, %v1332, 0.0
        %v1481 = vsel %vm1449, %v1331, 0.0
        %v1482 = vsel %vm1450, %v1330, 0.0
        %v1483 = vsel %vm1451, %v1329, 0.0
        %v1484 = vsel %vm1452, %v1328, 0.0
        %v1485 = vsel %vm1453, %v1327, 0.0
        %v1486 = vsel %vm1454, %v1326, 0.0
        %v1487 = vsel %vm1455, %v1325, 0.0
        %v1488 = vsel %vm1456, %v1324, 0.0
        %v1489 = vsel %vm1457, %v1323, 0.0
        %v1490 = vsel %vm1458, %v1322, 0.0
        %v1491 = vsel %vm1459, %v1321, 0.0
        %v1492 = vsel %vm1460, %v1320, 0.0
        %v1493 = vsel %vm1461, %v1319, 0.0
        %v1494 = vsel %vm1462, %v1318, 0.0
        %v1495 = vsel %vm1463, %v1317, 0.0
        %v1496 = vsel %vm1464, %v1316, 0.0
        %v1497 = vsel %vm1465, %v1315, 0.0
        %v1498 = vsel %vm1466, %v1314, 0.0
        %v1499 = vsel %vm1467, %v1313, 0.0
        %v1500 = vsel %vm1468, %v1312, 0.0
        %v1501 = vsel %vm1469, %v1311, 0.0
        %v1502 = vpack.c.bf16 %v1471, %v1470
        %v1503 = vpack.c.bf16 %v1473, %v1472
        %v1504 = vpack.c.bf16 %v1475, %v1474
        %v1505 = vpack.c.bf16 %v1477, %v1476
        %v1506 = vpack.c.bf16 %v1479, %v1478
        %v1507 = vpack.c.bf16 %v1481, %v1480
        %v1508 = vpack.c.bf16 %v1483, %v1482
        %v1509 = vpack.c.bf16 %v1485, %v1484
        %v1510 = vpack.c.bf16 %v1487, %v1486
        %v1511 = vpack.c.bf16 %v1489, %v1488
        %v1512 = vpack.c.bf16 %v1491, %v1490
        %v1513 = vpack.c.bf16 %v1493, %v1492
        %v1514 = vpack.c.bf16 %v1495, %v1494
        %v1515 = vpack.c.bf16 %v1497, %v1496
        %v1516 = vpack.c.bf16 %v1499, %v1498
        %v1517 = vpack.c.bf16 %v1501, %v1500
        %v1518 = vsel %vm989, 1, 0
        %v1519 = vsel %vm990, 1, 0
        %v1520 = vsel %vm991, 1, 0
        %v1521 = vsel %vm992, 1, 0
        %v1522 = vsel %vm993, 1, 0
        %v1523 = vsel %vm994, 1, 0
        %v1524 = vsel %vm995, 1, 0
        %v1525 = vsel %vm996, 1, 0
        %v1526 = vsel %vm997, 1, 0
        %v1527 = vsel %vm998, 1, 0
        %v1528 = vsel %vm999, 1, 0
        %v1529 = vsel %vm1000, 1, 0
        %v1530 = vsel %vm1001, 1, 0
        %v1531 = vsel %vm1002, 1, 0
        %v1532 = vsel %vm1003, 1, 0
        %v1533 = vsel %vm1004, 1, 0
        %v1534 = vsel %vm1005, 1, 0
        %v1535 = vsel %vm1006, 1, 0
        %v1536 = vsel %vm1007, 1, 0
        %v1537 = vsel %vm1008, 1, 0
        %v1538 = vsel %vm1009, 1, 0
        %v1539 = vsel %vm1010, 1, 0
        %v1540 = vsel %vm1011, 1, 0
        %v1541 = vsel %vm1012, 1, 0
        %v1542 = vsel %vm1013, 1, 0
        %v1543 = vsel %vm1014, 1, 0
        %v1544 = vsel %vm1015, 1, 0
        %v1545 = vsel %vm1016, 1, 0
        %v1546 = vsel %vm1017, 1, 0
        %v1547 = vsel %vm1018, 1, 0
        %v1548 = vsel %vm1019, 1, 0
        %v1549 = vsel %vm1020, 1, 0
        %vm1550 = vcmp.eq.s32.totalorder %v1518, 1
        %vm1551 = vcmp.eq.s32.totalorder %v1519, 1
        %vm1552 = vcmp.eq.s32.totalorder %v1520, 1
        %vm1553 = vcmp.eq.s32.totalorder %v1521, 1
        %vm1554 = vcmp.eq.s32.totalorder %v1522, 1
        %vm1555 = vcmp.eq.s32.totalorder %v1523, 1
        %vm1556 = vcmp.eq.s32.totalorder %v1524, 1
        %vm1557 = vcmp.eq.s32.totalorder %v1525, 1
        %vm1558 = vcmp.eq.s32.totalorder %v1526, 1
        %vm1559 = vcmp.eq.s32.totalorder %v1527, 1
        %vm1560 = vcmp.eq.s32.totalorder %v1528, 1
        %vm1561 = vcmp.eq.s32.totalorder %v1529, 1
        %vm1562 = vcmp.eq.s32.totalorder %v1530, 1
        %vm1563 = vcmp.eq.s32.totalorder %v1531, 1
        %vm1564 = vcmp.eq.s32.totalorder %v1532, 1
        %vm1565 = vcmp.eq.s32.totalorder %v1533, 1
        %vm1566 = vcmp.eq.s32.totalorder %v1534, 1
        %vm1567 = vcmp.eq.s32.totalorder %v1535, 1
        %vm1568 = vcmp.eq.s32.totalorder %v1536, 1
        %vm1569 = vcmp.eq.s32.totalorder %v1537, 1
        %vm1570 = vcmp.eq.s32.totalorder %v1538, 1
        %vm1571 = vcmp.eq.s32.totalorder %v1539, 1
        %vm1572 = vcmp.eq.s32.totalorder %v1540, 1
        %vm1573 = vcmp.eq.s32.totalorder %v1541, 1
        %vm1574 = vcmp.eq.s32.totalorder %v1542, 1
        %vm1575 = vcmp.eq.s32.totalorder %v1543, 1
        %vm1576 = vcmp.eq.s32.totalorder %v1544, 1
        %vm1577 = vcmp.eq.s32.totalorder %v1545, 1
        %vm1578 = vcmp.eq.s32.totalorder %v1546, 1
        %vm1579 = vcmp.eq.s32.totalorder %v1547, 1
        %vm1580 = vcmp.eq.s32.totalorder %v1548, 1
        %vm1581 = vcmp.eq.s32.totalorder %v1549, 1
        %v1582 = vsel %vm1550, %v956, 0.0
        %v1583 = vsel %vm1551, %v955, 0.0
        %v1584 = vsel %vm1552, %v954, 0.0
        %v1585 = vsel %vm1553, %v953, 0.0
        %v1586 = vsel %vm1554, %v952, 0.0
        %v1587 = vsel %vm1555, %v951, 0.0
        %v1588 = vsel %vm1556, %v950, 0.0
        %v1589 = vsel %vm1557, %v949, 0.0
        %v1590 = vsel %vm1558, %v948, 0.0
        %v1591 = vsel %vm1559, %v947, 0.0
        %v1592 = vsel %vm1560, %v946, 0.0
        %v1593 = vsel %vm1561, %v945, 0.0
        %v1594 = vsel %vm1562, %v944, 0.0
        %v1595 = vsel %vm1563, %v943, 0.0
        %v1596 = vsel %vm1564, %v942, 0.0
        %v1597 = vsel %vm1565, %v941, 0.0
        %v1598 = vsel %vm1566, %v940, 0.0
        %v1599 = vsel %vm1567, %v939, 0.0
        %v1600 = vsel %vm1568, %v938, 0.0
        %v1601 = vsel %vm1569, %v937, 0.0
        %v1602 = vsel %vm1570, %v936, 0.0
        %v1603 = vsel %vm1571, %v935, 0.0
        %v1604 = vsel %vm1572, %v934, 0.0
        %v1605 = vsel %vm1573, %v933, 0.0
        %v1606 = vsel %vm1574, %v932, 0.0
        %v1607 = vsel %vm1575, %v931, 0.0
        %v1608 = vsel %vm1576, %v930, 0.0
        %v1609 = vsel %vm1577, %v929, 0.0
        %v1610 = vsel %vm1578, %v928, 0.0
        %v1611 = vsel %vm1579, %v927, 0.0
        %v1612 = vsel %vm1580, %v926, 0.0
        %v1613 = vsel %vm1581, %v925, 0.0
        %v1614 = vpack.c.bf16 %v1583, %v1582
        %v1615 = vpack.c.bf16 %v1585, %v1584
        %v1616 = vpack.c.bf16 %v1587, %v1586
        %v1617 = vpack.c.bf16 %v1589, %v1588
        %v1618 = vpack.c.bf16 %v1591, %v1590
        %v1619 = vpack.c.bf16 %v1593, %v1592
        %v1620 = vpack.c.bf16 %v1595, %v1594
        %v1621 = vpack.c.bf16 %v1597, %v1596
        %v1622 = vpack.c.bf16 %v1599, %v1598
        %v1623 = vpack.c.bf16 %v1601, %v1600
        %v1624 = vpack.c.bf16 %v1603, %v1602
        %v1625 = vpack.c.bf16 %v1605, %v1604
        %v1626 = vpack.c.bf16 %v1607, %v1606
        %v1627 = vpack.c.bf16 %v1609, %v1608
        %v1628 = vpack.c.bf16 %v1611, %v1610
        %v1629 = vpack.c.bf16 %v1613, %v1612
        %v1630 = vpack.c.bf16 %v796, %v795
        %v1631 = vpack.c.bf16 %v798, %v797
        %v1632 = vpack.c.bf16 %v800, %v799
        %v1633 = vpack.c.bf16 %v802, %v801
        %v1634 = vpack.c.bf16 %v804, %v803
        %v1635 = vpack.c.bf16 %v806, %v805
        %v1636 = vpack.c.bf16 %v808, %v807
        %v1637 = vpack.c.bf16 %v810, %v809
        %v1638 = vpack.c.bf16 %v812, %v811
        %v1639 = vpack.c.bf16 %v814, %v813
        %v1640 = vpack.c.bf16 %v816, %v815
        %v1641 = vpack.c.bf16 %v818, %v817
        %v1642 = vpack.c.bf16 %v820, %v819
        %v1643 = vpack.c.bf16 %v822, %v821
        %v1644 = vpack.c.bf16 %v824, %v823
        %v1645 = vpack.c.bf16 %v826, %v825
        %v1646 = vsel %vm1342, 1, 0
        %v1647 = vsel %vm1343, 1, 0
        %v1648 = vsel %vm1344, 1, 0
        %v1649 = vsel %vm1345, 1, 0
        %v1650 = vsel %vm1346, 1, 0
        %v1651 = vsel %vm1347, 1, 0
        %v1652 = vsel %vm1348, 1, 0
        %v1653 = vsel %vm1349, 1, 0
        %v1654 = vsel %vm1350, 1, 0
        %v1655 = vsel %vm1351, 1, 0
        %v1656 = vsel %vm1352, 1, 0
        %v1657 = vsel %vm1353, 1, 0
        %v1658 = vsel %vm1354, 1, 0
        %v1659 = vsel %vm1355, 1, 0
        %v1660 = vsel %vm1356, 1, 0
        %v1661 = vsel %vm1357, 1, 0
        %v1662 = vsel %vm1358, 1, 0
        %v1663 = vsel %vm1359, 1, 0
        %v1664 = vsel %vm1360, 1, 0
        %v1665 = vsel %vm1361, 1, 0
        %v1666 = vsel %vm1362, 1, 0
        %v1667 = vsel %vm1363, 1, 0
        %v1668 = vsel %vm1364, 1, 0
        %v1669 = vsel %vm1365, 1, 0
        %v1670 = vsel %vm1366, 1, 0
        %v1671 = vsel %vm1367, 1, 0
        %v1672 = vsel %vm1368, 1, 0
        %v1673 = vsel %vm1369, 1, 0
        %v1674 = vsel %vm1370, 1, 0
        %v1675 = vsel %vm1371, 1, 0
        %v1676 = vsel %vm1372, 1, 0
        %v1677 = vsel %vm1373, 1, 0
        %vm1678 = vcmp.eq.s32.totalorder %v1646, 1
        %vm1679 = vcmp.eq.s32.totalorder %v1647, 1
        %vm1680 = vcmp.eq.s32.totalorder %v1648, 1
        %vm1681 = vcmp.eq.s32.totalorder %v1649, 1
        %vm1682 = vcmp.eq.s32.totalorder %v1650, 1
        %vm1683 = vcmp.eq.s32.totalorder %v1651, 1
        %vm1684 = vcmp.eq.s32.totalorder %v1652, 1
        %vm1685 = vcmp.eq.s32.totalorder %v1653, 1
        %vm1686 = vcmp.eq.s32.totalorder %v1654, 1
        %vm1687 = vcmp.eq.s32.totalorder %v1655, 1
        %vm1688 = vcmp.eq.s32.totalorder %v1656, 1
        %vm1689 = vcmp.eq.s32.totalorder %v1657, 1
        %vm1690 = vcmp.eq.s32.totalorder %v1658, 1
        %vm1691 = vcmp.eq.s32.totalorder %v1659, 1
        %vm1692 = vcmp.eq.s32.totalorder %v1660, 1
        %vm1693 = vcmp.eq.s32.totalorder %v1661, 1
        %vm1694 = vcmp.eq.s32.totalorder %v1662, 1
        %vm1695 = vcmp.eq.s32.totalorder %v1663, 1
        %vm1696 = vcmp.eq.s32.totalorder %v1664, 1
        %vm1697 = vcmp.eq.s32.totalorder %v1665, 1
        %vm1698 = vcmp.eq.s32.totalorder %v1666, 1
        %vm1699 = vcmp.eq.s32.totalorder %v1667, 1
        %vm1700 = vcmp.eq.s32.totalorder %v1668, 1
        %vm1701 = vcmp.eq.s32.totalorder %v1669, 1
        %vm1702 = vcmp.eq.s32.totalorder %v1670, 1
        %vm1703 = vcmp.eq.s32.totalorder %v1671, 1
        %vm1704 = vcmp.eq.s32.totalorder %v1672, 1
        %vm1705 = vcmp.eq.s32.totalorder %v1673, 1
        %vm1706 = vcmp.eq.s32.totalorder %v1674, 1
        %vm1707 = vcmp.eq.s32.totalorder %v1675, 1
        %vm1708 = vcmp.eq.s32.totalorder %v1676, 1
        %vm1709 = vcmp.eq.s32.totalorder %v1677, 1
        %v1710 = vsel %vm1678, %v1340, 0.0
        %v1711 = vsel %vm1679, %v1339, 0.0
        %v1712 = vsel %vm1680, %v1338, 0.0
        %v1713 = vsel %vm1681, %v1337, 0.0
        %v1714 = vsel %vm1682, %v1336, 0.0
        %v1715 = vsel %vm1683, %v1335, 0.0
        %v1716 = vsel %vm1684, %v1334, 0.0
        %v1717 = vsel %vm1685, %v1333, 0.0
        %v1718 = vsel %vm1686, %v1332, 0.0
        %v1719 = vsel %vm1687, %v1331, 0.0
        %v1720 = vsel %vm1688, %v1330, 0.0
        %v1721 = vsel %vm1689, %v1329, 0.0
        %v1722 = vsel %vm1690, %v1328, 0.0
        %v1723 = vsel %vm1691, %v1327, 0.0
        %v1724 = vsel %vm1692, %v1326, 0.0
        %v1725 = vsel %vm1693, %v1325, 0.0
        %v1726 = vsel %vm1694, %v1324, 0.0
        %v1727 = vsel %vm1695, %v1323, 0.0
        %v1728 = vsel %vm1696, %v1322, 0.0
        %v1729 = vsel %vm1697, %v1321, 0.0
        %v1730 = vsel %vm1698, %v1320, 0.0
        %v1731 = vsel %vm1699, %v1319, 0.0
        %v1732 = vsel %vm1700, %v1318, 0.0
        %v1733 = vsel %vm1701, %v1317, 0.0
        %v1734 = vsel %vm1702, %v1316, 0.0
        %v1735 = vsel %vm1703, %v1315, 0.0
        %v1736 = vsel %vm1704, %v1314, 0.0
        %v1737 = vsel %vm1705, %v1313, 0.0
        %v1738 = vsel %vm1706, %v1312, 0.0
        %v1739 = vsel %vm1707, %v1311, 0.0
        %v1740 = vsel %vm1708, %v1310, 0.0
        %v1741 = vsel %vm1709, %v1341, 0.0
        %v1742 = vpack.c.bf16 %v1711, %v1710
        %v1743 = vpack.c.bf16 %v1713, %v1712
        %v1744 = vpack.c.bf16 %v1715, %v1714
        %v1745 = vpack.c.bf16 %v1717, %v1716
        %v1746 = vpack.c.bf16 %v1719, %v1718
        %v1747 = vpack.c.bf16 %v1721, %v1720
        %v1748 = vpack.c.bf16 %v1723, %v1722
        %v1749 = vpack.c.bf16 %v1725, %v1724
        %v1750 = vpack.c.bf16 %v1727, %v1726
        %v1751 = vpack.c.bf16 %v1729, %v1728
        %v1752 = vpack.c.bf16 %v1731, %v1730
        %v1753 = vpack.c.bf16 %v1733, %v1732
        %v1754 = vpack.c.bf16 %v1735, %v1734
        %v1755 = vpack.c.bf16 %v1737, %v1736
        %v1756 = vpack.c.bf16 %v1739, %v1738
        %v1757 = vpack.c.bf16 %v1741, %v1740
        %vm1758 = vcmp.lt.s32.totalorder %v828, 240
        %vm1759 = vcmp.lt.s32.totalorder %v829, 240
        %vm1760 = vcmp.lt.s32.totalorder %v830, 240
        %vm1761 = vcmp.lt.s32.totalorder %v831, 240
        %vm1762 = vcmp.lt.s32.totalorder %v832, 240
        %vm1763 = vcmp.lt.s32.totalorder %v833, 240
        %vm1764 = vcmp.lt.s32.totalorder %v834, 240
        %vm1765 = vcmp.lt.s32.totalorder %v835, 240
        %vm1766 = vcmp.lt.s32.totalorder %v836, 240
        %vm1767 = vcmp.lt.s32.totalorder %v837, 240
        %vm1768 = vcmp.lt.s32.totalorder %v838, 240
        %vm1769 = vcmp.lt.s32.totalorder %v839, 240
        %vm1770 = vcmp.lt.s32.totalorder %v840, 240
        %vm1771 = vcmp.lt.s32.totalorder %v841, 240
        %vm1772 = vcmp.lt.s32.totalorder %v842, 240
        %vm1773 = vcmp.lt.s32.totalorder %v843, 240
        %vm1774 = vcmp.lt.s32.totalorder %v844, 240
        %vm1775 = vcmp.lt.s32.totalorder %v845, 240
        %vm1776 = vcmp.lt.s32.totalorder %v846, 240
        %vm1777 = vcmp.lt.s32.totalorder %v847, 240
        %vm1778 = vcmp.lt.s32.totalorder %v848, 240
        %vm1779 = vcmp.lt.s32.totalorder %v849, 240
        %vm1780 = vcmp.lt.s32.totalorder %v850, 240
        %vm1781 = vcmp.lt.s32.totalorder %v851, 240
        %vm1782 = vcmp.lt.s32.totalorder %v852, 240
        %vm1783 = vcmp.lt.s32.totalorder %v853, 240
        %vm1784 = vcmp.lt.s32.totalorder %v854, 240
        %vm1785 = vcmp.lt.s32.totalorder %v855, 240
        %vm1786 = vcmp.lt.s32.totalorder %v856, 240
        %vm1787 = vcmp.lt.s32.totalorder %v857, 240
        %vm1788 = vcmp.lt.s32.totalorder %v858, 240
        %vm1789 = vcmp.lt.s32.totalorder %v859, 240
        %vm1790 = vmand %vm1758, %vm989
        %vm1791 = vmand %vm1759, %vm990
        %vm1792 = vmand %vm1760, %vm991
        %vm1793 = vmand %vm1761, %vm992
        %vm1794 = vmand %vm1762, %vm993
        %vm1795 = vmand %vm1763, %vm994
        %vm1796 = vmand %vm1764, %vm995
        %vm1797 = vmand %vm1765, %vm996
        %vm1798 = vmand %vm1766, %vm997
        %vm1799 = vmand %vm1767, %vm998
        %vm1800 = vmand %vm1768, %vm999
        %vm1801 = vmand %vm1769, %vm1000
        %vm1802 = vmand %vm1770, %vm1001
        %vm1803 = vmand %vm1771, %vm1002
        %vm1804 = vmand %vm1772, %vm1003
        %vm1805 = vmand %vm1773, %vm1004
        %vm1806 = vmand %vm1774, %vm1005
        %vm1807 = vmand %vm1775, %vm1006
        %vm1808 = vmand %vm1776, %vm1007
        %vm1809 = vmand %vm1777, %vm1008
        %vm1810 = vmand %vm1778, %vm1009
        %vm1811 = vmand %vm1779, %vm1010
        %vm1812 = vmand %vm1780, %vm1011
        %vm1813 = vmand %vm1781, %vm1012
        %vm1814 = vmand %vm1782, %vm1013
        %vm1815 = vmand %vm1783, %vm1014
        %vm1816 = vmand %vm1784, %vm1015
        %vm1817 = vmand %vm1785, %vm1016
        %vm1818 = vmand %vm1786, %vm1017
        %vm1819 = vmand %vm1787, %vm1018
        %vm1820 = vmand %vm1788, %vm1019
        %vm1821 = vmand %vm1789, %vm1020
        %v1822 = vsel %vm1790, 1, 0
        %v1823 = vsel %vm1791, 1, 0
        %v1824 = vsel %vm1792, 1, 0
        %v1825 = vsel %vm1793, 1, 0
        %v1826 = vsel %vm1794, 1, 0
        %v1827 = vsel %vm1795, 1, 0
        %v1828 = vsel %vm1796, 1, 0
        %v1829 = vsel %vm1797, 1, 0
        %v1830 = vsel %vm1798, 1, 0
        %v1831 = vsel %vm1799, 1, 0
        %v1832 = vsel %vm1800, 1, 0
        %v1833 = vsel %vm1801, 1, 0
        %v1834 = vsel %vm1802, 1, 0
        %v1835 = vsel %vm1803, 1, 0
        %v1836 = vsel %vm1804, 1, 0
        %v1837 = vsel %vm1805, 1, 0
        %v1838 = vsel %vm1806, 1, 0
        %v1839 = vsel %vm1807, 1, 0
        %v1840 = vsel %vm1808, 1, 0
        %v1841 = vsel %vm1809, 1, 0
        %v1842 = vsel %vm1810, 1, 0
        %v1843 = vsel %vm1811, 1, 0
        %v1844 = vsel %vm1812, 1, 0
        %v1845 = vsel %vm1813, 1, 0
        %v1846 = vsel %vm1814, 1, 0
        %v1847 = vsel %vm1815, 1, 0
        %v1848 = vsel %vm1816, 1, 0
        %v1849 = vsel %vm1817, 1, 0
        %v1850 = vsel %vm1818, 1, 0
        %v1851 = vsel %vm1819, 1, 0
        %v1852 = vsel %vm1820, 1, 0
        %v1853 = vsel %vm1821, 1, 0
        %vm1854 = vcmp.eq.s32.totalorder %v1822, 1
        %vm1855 = vcmp.eq.s32.totalorder %v1823, 1
        %vm1856 = vcmp.eq.s32.totalorder %v1824, 1
        %vm1857 = vcmp.eq.s32.totalorder %v1825, 1
        %vm1858 = vcmp.eq.s32.totalorder %v1826, 1
        %vm1859 = vcmp.eq.s32.totalorder %v1827, 1
        %vm1860 = vcmp.eq.s32.totalorder %v1828, 1
        %vm1861 = vcmp.eq.s32.totalorder %v1829, 1
        %vm1862 = vcmp.eq.s32.totalorder %v1830, 1
        %vm1863 = vcmp.eq.s32.totalorder %v1831, 1
        %vm1864 = vcmp.eq.s32.totalorder %v1832, 1
        %vm1865 = vcmp.eq.s32.totalorder %v1833, 1
        %vm1866 = vcmp.eq.s32.totalorder %v1834, 1
        %vm1867 = vcmp.eq.s32.totalorder %v1835, 1
        %vm1868 = vcmp.eq.s32.totalorder %v1836, 1
        %vm1869 = vcmp.eq.s32.totalorder %v1837, 1
        %vm1870 = vcmp.eq.s32.totalorder %v1838, 1
        %vm1871 = vcmp.eq.s32.totalorder %v1839, 1
        %vm1872 = vcmp.eq.s32.totalorder %v1840, 1
        %vm1873 = vcmp.eq.s32.totalorder %v1841, 1
        %vm1874 = vcmp.eq.s32.totalorder %v1842, 1
        %vm1875 = vcmp.eq.s32.totalorder %v1843, 1
        %vm1876 = vcmp.eq.s32.totalorder %v1844, 1
        %vm1877 = vcmp.eq.s32.totalorder %v1845, 1
        %vm1878 = vcmp.eq.s32.totalorder %v1846, 1
        %vm1879 = vcmp.eq.s32.totalorder %v1847, 1
        %vm1880 = vcmp.eq.s32.totalorder %v1848, 1
        %vm1881 = vcmp.eq.s32.totalorder %v1849, 1
        %vm1882 = vcmp.eq.s32.totalorder %v1850, 1
        %vm1883 = vcmp.eq.s32.totalorder %v1851, 1
        %vm1884 = vcmp.eq.s32.totalorder %v1852, 1
        %vm1885 = vcmp.eq.s32.totalorder %v1853, 1
        %v1886 = vsel %vm1854, %v954, 0.0
        %v1887 = vsel %vm1855, %v953, 0.0
        %v1888 = vsel %vm1856, %v952, 0.0
        %v1889 = vsel %vm1857, %v951, 0.0
        %v1890 = vsel %vm1858, %v950, 0.0
        %v1891 = vsel %vm1859, %v949, 0.0
        %v1892 = vsel %vm1860, %v948, 0.0
        %v1893 = vsel %vm1861, %v947, 0.0
        %v1894 = vsel %vm1862, %v946, 0.0
        %v1895 = vsel %vm1863, %v945, 0.0
        %v1896 = vsel %vm1864, %v944, 0.0
        %v1897 = vsel %vm1865, %v943, 0.0
        %v1898 = vsel %vm1866, %v942, 0.0
        %v1899 = vsel %vm1867, %v941, 0.0
        %v1900 = vsel %vm1868, %v940, 0.0
        %v1901 = vsel %vm1869, %v939, 0.0
        %v1902 = vsel %vm1870, %v938, 0.0
        %v1903 = vsel %vm1871, %v937, 0.0
        %v1904 = vsel %vm1872, %v936, 0.0
        %v1905 = vsel %vm1873, %v935, 0.0
        %v1906 = vsel %vm1874, %v934, 0.0
        %v1907 = vsel %vm1875, %v933, 0.0
        %v1908 = vsel %vm1876, %v932, 0.0
        %v1909 = vsel %vm1877, %v931, 0.0
        %v1910 = vsel %vm1878, %v930, 0.0
        %v1911 = vsel %vm1879, %v929, 0.0
        %v1912 = vsel %vm1880, %v928, 0.0
        %v1913 = vsel %vm1881, %v927, 0.0
        %v1914 = vsel %vm1882, %v926, 0.0
        %v1915 = vsel %vm1883, %v925, 0.0
        %v1916 = vsel %vm1884, %v956, 0.0
        %v1917 = vsel %vm1885, %v955, 0.0
        %v1918 = vpack.c.bf16 %v1887, %v1886
        %v1919 = vpack.c.bf16 %v1889, %v1888
        %v1920 = vpack.c.bf16 %v1891, %v1890
        %v1921 = vpack.c.bf16 %v1893, %v1892
        %v1922 = vpack.c.bf16 %v1895, %v1894
        %v1923 = vpack.c.bf16 %v1897, %v1896
        %v1924 = vpack.c.bf16 %v1899, %v1898
        %v1925 = vpack.c.bf16 %v1901, %v1900
        %v1926 = vpack.c.bf16 %v1903, %v1902
        %v1927 = vpack.c.bf16 %v1905, %v1904
        %v1928 = vpack.c.bf16 %v1907, %v1906
        %v1929 = vpack.c.bf16 %v1909, %v1908
        %v1930 = vpack.c.bf16 %v1911, %v1910
        %v1931 = vpack.c.bf16 %v1913, %v1912
        %v1932 = vpack.c.bf16 %v1915, %v1914
        %v1933 = vpack.c.bf16 %v1917, %v1916
        %v1934 = vsel %vm1758, 1, 0
        %v1935 = vsel %vm1759, 1, 0
        %v1936 = vsel %vm1760, 1, 0
        %v1937 = vsel %vm1761, 1, 0
        %v1938 = vsel %vm1762, 1, 0
        %v1939 = vsel %vm1763, 1, 0
        %v1940 = vsel %vm1764, 1, 0
        %v1941 = vsel %vm1765, 1, 0
        %v1942 = vsel %vm1766, 1, 0
        %v1943 = vsel %vm1767, 1, 0
        %v1944 = vsel %vm1768, 1, 0
        %v1945 = vsel %vm1769, 1, 0
        %v1946 = vsel %vm1770, 1, 0
        %v1947 = vsel %vm1771, 1, 0
        %v1948 = vsel %vm1772, 1, 0
        %v1949 = vsel %vm1773, 1, 0
        %v1950 = vsel %vm1774, 1, 0
        %v1951 = vsel %vm1775, 1, 0
        %v1952 = vsel %vm1776, 1, 0
        %v1953 = vsel %vm1777, 1, 0
        %v1954 = vsel %vm1778, 1, 0
        %v1955 = vsel %vm1779, 1, 0
        %v1956 = vsel %vm1780, 1, 0
        %v1957 = vsel %vm1781, 1, 0
        %v1958 = vsel %vm1782, 1, 0
        %v1959 = vsel %vm1783, 1, 0
        %v1960 = vsel %vm1784, 1, 0
        %v1961 = vsel %vm1785, 1, 0
        %v1962 = vsel %vm1786, 1, 0
        %v1963 = vsel %vm1787, 1, 0
        %v1964 = vsel %vm1788, 1, 0
        %v1965 = vsel %vm1789, 1, 0
        %vm1966 = vcmp.eq.s32.totalorder %v1934, 1
        %vm1967 = vcmp.eq.s32.totalorder %v1935, 1
        %vm1968 = vcmp.eq.s32.totalorder %v1936, 1
        %vm1969 = vcmp.eq.s32.totalorder %v1937, 1
        %vm1970 = vcmp.eq.s32.totalorder %v1938, 1
        %vm1971 = vcmp.eq.s32.totalorder %v1939, 1
        %vm1972 = vcmp.eq.s32.totalorder %v1940, 1
        %vm1973 = vcmp.eq.s32.totalorder %v1941, 1
        %vm1974 = vcmp.eq.s32.totalorder %v1942, 1
        %vm1975 = vcmp.eq.s32.totalorder %v1943, 1
        %vm1976 = vcmp.eq.s32.totalorder %v1944, 1
        %vm1977 = vcmp.eq.s32.totalorder %v1945, 1
        %vm1978 = vcmp.eq.s32.totalorder %v1946, 1
        %vm1979 = vcmp.eq.s32.totalorder %v1947, 1
        %vm1980 = vcmp.eq.s32.totalorder %v1948, 1
        %vm1981 = vcmp.eq.s32.totalorder %v1949, 1
        %vm1982 = vcmp.eq.s32.totalorder %v1950, 1
        %vm1983 = vcmp.eq.s32.totalorder %v1951, 1
        %vm1984 = vcmp.eq.s32.totalorder %v1952, 1
        %vm1985 = vcmp.eq.s32.totalorder %v1953, 1
        %vm1986 = vcmp.eq.s32.totalorder %v1954, 1
        %vm1987 = vcmp.eq.s32.totalorder %v1955, 1
        %vm1988 = vcmp.eq.s32.totalorder %v1956, 1
        %vm1989 = vcmp.eq.s32.totalorder %v1957, 1
        %vm1990 = vcmp.eq.s32.totalorder %v1958, 1
        %vm1991 = vcmp.eq.s32.totalorder %v1959, 1
        %vm1992 = vcmp.eq.s32.totalorder %v1960, 1
        %vm1993 = vcmp.eq.s32.totalorder %v1961, 1
        %vm1994 = vcmp.eq.s32.totalorder %v1962, 1
        %vm1995 = vcmp.eq.s32.totalorder %v1963, 1
        %vm1996 = vcmp.eq.s32.totalorder %v1964, 1
        %vm1997 = vcmp.eq.s32.totalorder %v1965, 1
        %v1998 = vsel %vm1966, %v797, 0.0
        %v1999 = vsel %vm1967, %v798, 0.0
        %v2000 = vsel %vm1968, %v799, 0.0
        %v2001 = vsel %vm1969, %v800, 0.0
        %v2002 = vsel %vm1970, %v801, 0.0
        %v2003 = vsel %vm1971, %v802, 0.0
        %v2004 = vsel %vm1972, %v803, 0.0
        %v2005 = vsel %vm1973, %v804, 0.0
        %v2006 = vsel %vm1974, %v805, 0.0
        %v2007 = vsel %vm1975, %v806, 0.0
        %v2008 = vsel %vm1976, %v807, 0.0
        %v2009 = vsel %vm1977, %v808, 0.0
        %v2010 = vsel %vm1978, %v809, 0.0
        %v2011 = vsel %vm1979, %v810, 0.0
        %v2012 = vsel %vm1980, %v811, 0.0
        %v2013 = vsel %vm1981, %v812, 0.0
        %v2014 = vsel %vm1982, %v813, 0.0
        %v2015 = vsel %vm1983, %v814, 0.0
        %v2016 = vsel %vm1984, %v815, 0.0
        %v2017 = vsel %vm1985, %v816, 0.0
        %v2018 = vsel %vm1986, %v817, 0.0
        %v2019 = vsel %vm1987, %v818, 0.0
        %v2020 = vsel %vm1988, %v819, 0.0
        %v2021 = vsel %vm1989, %v820, 0.0
        %v2022 = vsel %vm1990, %v821, 0.0
        %v2023 = vsel %vm1991, %v822, 0.0
        %v2024 = vsel %vm1992, %v823, 0.0
        %v2025 = vsel %vm1993, %v824, 0.0
        %v2026 = vsel %vm1994, %v825, 0.0
        %v2027 = vsel %vm1995, %v826, 0.0
        %v2028 = vsel %vm1996, %v795, 0.0
        %v2029 = vsel %vm1997, %v796, 0.0
        %v2030 = vpack.c.bf16 %v1999, %v1998
        %v2031 = vpack.c.bf16 %v2001, %v2000
        %v2032 = vpack.c.bf16 %v2003, %v2002
        %v2033 = vpack.c.bf16 %v2005, %v2004
        %v2034 = vpack.c.bf16 %v2007, %v2006
        %v2035 = vpack.c.bf16 %v2009, %v2008
        %v2036 = vpack.c.bf16 %v2011, %v2010
        %v2037 = vpack.c.bf16 %v2013, %v2012
        %v2038 = vpack.c.bf16 %v2015, %v2014
        %v2039 = vpack.c.bf16 %v2017, %v2016
        %v2040 = vpack.c.bf16 %v2019, %v2018
        %v2041 = vpack.c.bf16 %v2021, %v2020
        %v2042 = vpack.c.bf16 %v2023, %v2022
        %v2043 = vpack.c.bf16 %v2025, %v2024
        %v2044 = vpack.c.bf16 %v2027, %v2026
        %v2045 = vpack.c.bf16 %v2029, %v2028
        %vm2046 = vmand %vm1758, %vm1342
        %vm2047 = vmand %vm1759, %vm1343
        %vm2048 = vmand %vm1760, %vm1344
        %vm2049 = vmand %vm1761, %vm1345
        %vm2050 = vmand %vm1762, %vm1346
        %vm2051 = vmand %vm1763, %vm1347
        %vm2052 = vmand %vm1764, %vm1348
        %vm2053 = vmand %vm1765, %vm1349
        %vm2054 = vmand %vm1766, %vm1350
        %vm2055 = vmand %vm1767, %vm1351
        %vm2056 = vmand %vm1768, %vm1352
        %vm2057 = vmand %vm1769, %vm1353
        %vm2058 = vmand %vm1770, %vm1354
        %vm2059 = vmand %vm1771, %vm1355
        %vm2060 = vmand %vm1772, %vm1356
        %vm2061 = vmand %vm1773, %vm1357
        %vm2062 = vmand %vm1774, %vm1358
        %vm2063 = vmand %vm1775, %vm1359
        %vm2064 = vmand %vm1776, %vm1360
        %vm2065 = vmand %vm1777, %vm1361
        %vm2066 = vmand %vm1778, %vm1362
        %vm2067 = vmand %vm1779, %vm1363
        %vm2068 = vmand %vm1780, %vm1364
        %vm2069 = vmand %vm1781, %vm1365
        %vm2070 = vmand %vm1782, %vm1366
        %vm2071 = vmand %vm1783, %vm1367
        %vm2072 = vmand %vm1784, %vm1368
        %vm2073 = vmand %vm1785, %vm1369
        %vm2074 = vmand %vm1786, %vm1370
        %vm2075 = vmand %vm1787, %vm1371
        %vm2076 = vmand %vm1788, %vm1372
        %vm2077 = vmand %vm1789, %vm1373
        %v2078 = vsel %vm2046, 1, 0
        %v2079 = vsel %vm2047, 1, 0
        %v2080 = vsel %vm2048, 1, 0
        %v2081 = vsel %vm2049, 1, 0
        %v2082 = vsel %vm2050, 1, 0
        %v2083 = vsel %vm2051, 1, 0
        %v2084 = vsel %vm2052, 1, 0
        %v2085 = vsel %vm2053, 1, 0
        %v2086 = vsel %vm2054, 1, 0
        %v2087 = vsel %vm2055, 1, 0
        %v2088 = vsel %vm2056, 1, 0
        %v2089 = vsel %vm2057, 1, 0
        %v2090 = vsel %vm2058, 1, 0
        %v2091 = vsel %vm2059, 1, 0
        %v2092 = vsel %vm2060, 1, 0
        %v2093 = vsel %vm2061, 1, 0
        %v2094 = vsel %vm2062, 1, 0
        %v2095 = vsel %vm2063, 1, 0
        %v2096 = vsel %vm2064, 1, 0
        %v2097 = vsel %vm2065, 1, 0
        %v2098 = vsel %vm2066, 1, 0
        %v2099 = vsel %vm2067, 1, 0
        %v2100 = vsel %vm2068, 1, 0
        %v2101 = vsel %vm2069, 1, 0
        %v2102 = vsel %vm2070, 1, 0
        %v2103 = vsel %vm2071, 1, 0
        %v2104 = vsel %vm2072, 1, 0
        %v2105 = vsel %vm2073, 1, 0
        %v2106 = vsel %vm2074, 1, 0
        %v2107 = vsel %vm2075, 1, 0
        %v2108 = vsel %vm2076, 1, 0
        %v2109 = vsel %vm2077, 1, 0
        %vm2110 = vcmp.eq.s32.totalorder %v2078, 1
        %vm2111 = vcmp.eq.s32.totalorder %v2079, 1
        %vm2112 = vcmp.eq.s32.totalorder %v2080, 1
        %vm2113 = vcmp.eq.s32.totalorder %v2081, 1
        %vm2114 = vcmp.eq.s32.totalorder %v2082, 1
        %vm2115 = vcmp.eq.s32.totalorder %v2083, 1
        %vm2116 = vcmp.eq.s32.totalorder %v2084, 1
        %vm2117 = vcmp.eq.s32.totalorder %v2085, 1
        %vm2118 = vcmp.eq.s32.totalorder %v2086, 1
        %vm2119 = vcmp.eq.s32.totalorder %v2087, 1
        %vm2120 = vcmp.eq.s32.totalorder %v2088, 1
        %vm2121 = vcmp.eq.s32.totalorder %v2089, 1
        %vm2122 = vcmp.eq.s32.totalorder %v2090, 1
        %vm2123 = vcmp.eq.s32.totalorder %v2091, 1
        %vm2124 = vcmp.eq.s32.totalorder %v2092, 1
        %vm2125 = vcmp.eq.s32.totalorder %v2093, 1
        %vm2126 = vcmp.eq.s32.totalorder %v2094, 1
        %vm2127 = vcmp.eq.s32.totalorder %v2095, 1
        %vm2128 = vcmp.eq.s32.totalorder %v2096, 1
        %vm2129 = vcmp.eq.s32.totalorder %v2097, 1
        %vm2130 = vcmp.eq.s32.totalorder %v2098, 1
        %vm2131 = vcmp.eq.s32.totalorder %v2099, 1
        %vm2132 = vcmp.eq.s32.totalorder %v2100, 1
        %vm2133 = vcmp.eq.s32.totalorder %v2101, 1
        %vm2134 = vcmp.eq.s32.totalorder %v2102, 1
        %vm2135 = vcmp.eq.s32.totalorder %v2103, 1
        %vm2136 = vcmp.eq.s32.totalorder %v2104, 1
        %vm2137 = vcmp.eq.s32.totalorder %v2105, 1
        %vm2138 = vcmp.eq.s32.totalorder %v2106, 1
        %vm2139 = vcmp.eq.s32.totalorder %v2107, 1
        %vm2140 = vcmp.eq.s32.totalorder %v2108, 1
        %vm2141 = vcmp.eq.s32.totalorder %v2109, 1
        %v2142 = vsel %vm2110, %v1338, 0.0
        %v2143 = vsel %vm2111, %v1337, 0.0
        %v2144 = vsel %vm2112, %v1336, 0.0
        %v2145 = vsel %vm2113, %v1335, 0.0
        %v2146 = vsel %vm2114, %v1334, 0.0
        %v2147 = vsel %vm2115, %v1333, 0.0
        %v2148 = vsel %vm2116, %v1332, 0.0
        %v2149 = vsel %vm2117, %v1331, 0.0
        %v2150 = vsel %vm2118, %v1330, 0.0
        %v2151 = vsel %vm2119, %v1329, 0.0
        %v2152 = vsel %vm2120, %v1328, 0.0
        %v2153 = vsel %vm2121, %v1327, 0.0
        %v2154 = vsel %vm2122, %v1326, 0.0
        %v2155 = vsel %vm2123, %v1325, 0.0
        %v2156 = vsel %vm2124, %v1324, 0.0
        %v2157 = vsel %vm2125, %v1323, 0.0
        %v2158 = vsel %vm2126, %v1322, 0.0
        %v2159 = vsel %vm2127, %v1321, 0.0
        %v2160 = vsel %vm2128, %v1320, 0.0
        %v2161 = vsel %vm2129, %v1319, 0.0
        %v2162 = vsel %vm2130, %v1318, 0.0
        %v2163 = vsel %vm2131, %v1317, 0.0
        %v2164 = vsel %vm2132, %v1316, 0.0
        %v2165 = vsel %vm2133, %v1315, 0.0
        %v2166 = vsel %vm2134, %v1314, 0.0
        %v2167 = vsel %vm2135, %v1313, 0.0
        %v2168 = vsel %vm2136, %v1312, 0.0
        %v2169 = vsel %vm2137, %v1311, 0.0
        %v2170 = vsel %vm2138, %v1310, 0.0
        %v2171 = vsel %vm2139, %v1341, 0.0
        %v2172 = vsel %vm2140, %v1340, 0.0
        %v2173 = vsel %vm2141, %v1339, 0.0
        %v2174 = vpack.c.bf16 %v2143, %v2142
        %v2175 = vpack.c.bf16 %v2145, %v2144
        %v2176 = vpack.c.bf16 %v2147, %v2146
        %v2177 = vpack.c.bf16 %v2149, %v2148
        %v2178 = vpack.c.bf16 %v2151, %v2150
        %v2179 = vpack.c.bf16 %v2153, %v2152
        %v2180 = vpack.c.bf16 %v2155, %v2154
        %v2181 = vpack.c.bf16 %v2157, %v2156
        %v2182 = vpack.c.bf16 %v2159, %v2158
        %v2183 = vpack.c.bf16 %v2161, %v2160
        %v2184 = vpack.c.bf16 %v2163, %v2162
        %v2185 = vpack.c.bf16 %v2165, %v2164
        %v2186 = vpack.c.bf16 %v2167, %v2166
        %v2187 = vpack.c.bf16 %v2169, %v2168
        %v2188 = vpack.c.bf16 %v2171, %v2170
        %v2189 = vpack.c.bf16 %v2173, %v2172
        %v2190 = vld [vmem:[#allocation6] sm:$0xf]
        %v2191 = vld [vmem:[#allocation6 + $0x4] sm:$0xf]
        %v2192 = vld [vmem:[#allocation6 + $0x8] sm:$0xf]
        %v2193 = vld [vmem:[#allocation6 + $0xc] sm:$0xf]
        %v2194 = vld [vmem:[#allocation6 + $0x10] sm:$0xf]
        %v2195 = vld [vmem:[#allocation6 + $0x14] sm:$0xf]
        %v2196 = vld [vmem:[#allocation6 + $0x18] sm:$0xf]
        %v2197 = vld [vmem:[#allocation6 + $0x1c] sm:$0xf]
        %v2198 = vld [vmem:[#allocation6 + $0x20] sm:$0xf]
        %v2199 = vld [vmem:[#allocation6 + $0x24] sm:$0xf]
        %v2200 = vld [vmem:[#allocation6 + $0x28] sm:$0xf]
        %v2201 = vld [vmem:[#allocation6 + $0x2c] sm:$0xf]
        %v2202 = vld [vmem:[#allocation6 + $0x30] sm:$0xf]
        %v2203 = vld [vmem:[#allocation6 + $0x34] sm:$0xf]
        %v2204 = vld [vmem:[#allocation6 + $0x38] sm:$0xf]
        %v2205 = vld [vmem:[#allocation6 + $0x3c] sm:$0xf]
        %v2206 = vld [vmem:[#allocation6 + $0x40] sm:$0xf]
        %v2207 = vld [vmem:[#allocation6 + $0x44] sm:$0xf]
        %v2208 = vld [vmem:[#allocation6 + $0x48] sm:$0xf]
        %v2209 = vld [vmem:[#allocation6 + $0x4c] sm:$0xf]
        %v2210 = vld [vmem:[#allocation6 + $0x50] sm:$0xf]
        %v2211 = vld [vmem:[#allocation6 + $0x54] sm:$0xf]
        %v2212 = vld [vmem:[#allocation6 + $0x58] sm:$0xf]
        %v2213 = vld [vmem:[#allocation6 + $0x5c] sm:$0xf]
        %v2214 = vld [vmem:[#allocation6 + $0x60] sm:$0xf]
        %v2215 = vld [vmem:[#allocation6 + $0x64] sm:$0xf]
        %v2216 = vld [vmem:[#allocation6 + $0x68] sm:$0xf]
        %v2217 = vld [vmem:[#allocation6 + $0x6c] sm:$0xf]
        %v2218 = vld [vmem:[#allocation6 + $0x70] sm:$0xf]
        %v2219 = vld [vmem:[#allocation6 + $0x74] sm:$0xf]
        %v2220 = vld [vmem:[#allocation6 + $0x78] sm:$0xf]
        %v2221 = vld [vmem:[#allocation6 + $0x7c] sm:$0xf]
        %v2222 = vld [vmem:[#allocation6 + $0x80] sm:$0xf]
        %v2223 = vld [vmem:[#allocation6 + $0x84] sm:$0xf]
        %v2224 = vld [vmem:[#allocation6 + $0x88] sm:$0xf]
        %v2225 = vld [vmem:[#allocation6 + $0x8c] sm:$0xf]
        %v2226 = vld [vmem:[#allocation6 + $0x90] sm:$0xf]
        %v2227 = vld [vmem:[#allocation6 + $0x94] sm:$0xf]
        %v2228 = vld [vmem:[#allocation6 + $0x98] sm:$0xf]
        %v2229 = vld [vmem:[#allocation6 + $0x9c] sm:$0xf]
        %v2230 = vld [vmem:[#allocation6 + $0xa0] sm:$0xf]
        %v2231 = vld [vmem:[#allocation6 + $0xa4] sm:$0xf]
        %v2232 = vld [vmem:[#allocation6 + $0xa8] sm:$0xf]
        %v2233 = vld [vmem:[#allocation6 + $0xac] sm:$0xf]
        %v2234 = vld [vmem:[#allocation6 + $0xb0] sm:$0xf]
        %v2235 = vld [vmem:[#allocation6 + $0xb4] sm:$0xf]
        %v2236 = vld [vmem:[#allocation6 + $0xb8] sm:$0xf]
        %v2237 = vld [vmem:[#allocation6 + $0xbc] sm:$0xf]
        %v2238 = vld [vmem:[#allocation6 + $0xc0] sm:$0xf]
        %v2239 = vld [vmem:[#allocation6 + $0xc4] sm:$0xf]
        %v2240 = vld [vmem:[#allocation6 + $0xc8] sm:$0xf]
        %v2241 = vld [vmem:[#allocation6 + $0xcc] sm:$0xf]
        %v2242 = vld [vmem:[#allocation6 + $0xd0] sm:$0xf]
        %v2243 = vld [vmem:[#allocation6 + $0xd4] sm:$0xf]
        %v2244 = vld [vmem:[#allocation6 + $0xd8] sm:$0xf]
        %v2245 = vld [vmem:[#allocation6 + $0xdc] sm:$0xf]
        %v2246 = vld [vmem:[#allocation6 + $0xe0] sm:$0xf]
        %v2247 = vld [vmem:[#allocation6 + $0xe4] sm:$0xf]
        %v2248 = vld [vmem:[#allocation6 + $0xe8] sm:$0xf]
        %v2249 = vld [vmem:[#allocation6 + $0xec] sm:$0xf]
        %v2250 = vld [vmem:[#allocation6 + $0xf0] sm:$0xf]
        %v2251 = vld [vmem:[#allocation6 + $0xf4] sm:$0xf]
        %v2252 = vld [vmem:[#allocation6 + $0xf8] sm:$0xf]
        %v2253 = vld [vmem:[#allocation6 + $0xfc] sm:$0xf]
        %v2254 = vld [vmem:[#allocation6 + $0x100] sm:$0xf]
        %v2255 = vld [vmem:[#allocation6 + $0x104] sm:$0xf]
        %v2256 = vld [vmem:[#allocation6 + $0x108] sm:$0xf]
        %v2257 = vld [vmem:[#allocation6 + $0x10c] sm:$0xf]
        %v2258 = vld [vmem:[#allocation6 + $0x110] sm:$0xf]
        %v2259 = vld [vmem:[#allocation6 + $0x114] sm:$0xf]
        %v2260 = vld [vmem:[#allocation6 + $0x118] sm:$0xf]
        %v2261 = vld [vmem:[#allocation6 + $0x11c] sm:$0xf]
        %v2262 = vld [vmem:[#allocation6 + $0x120] sm:$0xf]
        %v2263 = vld [vmem:[#allocation6 + $0x124] sm:$0xf]
        %v2264 = vld [vmem:[#allocation6 + $0x128] sm:$0xf]
        %v2265 = vld [vmem:[#allocation6 + $0x12c] sm:$0xf]
        %v2266 = vld [vmem:[#allocation6 + $0x130] sm:$0xf]
        %v2267 = vld [vmem:[#allocation6 + $0x134] sm:$0xf]
        %v2268 = vld [vmem:[#allocation6 + $0x138] sm:$0xf]
        %v2269 = vld [vmem:[#allocation6 + $0x13c] sm:$0xf]
        %v2270 = vld [vmem:[#allocation6 + $0x140] sm:$0xf]
        %v2271 = vld [vmem:[#allocation6 + $0x144] sm:$0xf]
        %v2272 = vld [vmem:[#allocation6 + $0x148] sm:$0xf]
        %v2273 = vld [vmem:[#allocation6 + $0x14c] sm:$0xf]
        %v2274 = vld [vmem:[#allocation6 + $0x150] sm:$0xf]
        %v2275 = vld [vmem:[#allocation6 + $0x154] sm:$0xf]
        %v2276 = vld [vmem:[#allocation6 + $0x158] sm:$0xf]
        %v2277 = vld [vmem:[#allocation6 + $0x15c] sm:$0xf]
        %v2278 = vld [vmem:[#allocation6 + $0x160] sm:$0xf]
        %v2279 = vld [vmem:[#allocation6 + $0x164] sm:$0xf]
        %v2280 = vld [vmem:[#allocation6 + $0x168] sm:$0xf]
        %v2281 = vld [vmem:[#allocation6 + $0x16c] sm:$0xf]
        %v2282 = vld [vmem:[#allocation6 + $0x170] sm:$0xf]
        %v2283 = vld [vmem:[#allocation6 + $0x174] sm:$0xf]
        %v2284 = vld [vmem:[#allocation6 + $0x178] sm:$0xf]
        %v2285 = vld [vmem:[#allocation6 + $0x17c] sm:$0xf]
        %v2286 = vld [vmem:[#allocation6 + $0x180] sm:$0xf]
        %v2287 = vld [vmem:[#allocation6 + $0x184] sm:$0xf]
        %v2288 = vld [vmem:[#allocation6 + $0x188] sm:$0xf]
        %v2289 = vld [vmem:[#allocation6 + $0x18c] sm:$0xf]
        %v2290 = vld [vmem:[#allocation6 + $0x190] sm:$0xf]
        %v2291 = vld [vmem:[#allocation6 + $0x194] sm:$0xf]
        %v2292 = vld [vmem:[#allocation6 + $0x198] sm:$0xf]
        %v2293 = vld [vmem:[#allocation6 + $0x19c] sm:$0xf]
        %v2294 = vld [vmem:[#allocation6 + $0x1a0] sm:$0xf]
        %v2295 = vld [vmem:[#allocation6 + $0x1a4] sm:$0xf]
        %v2296 = vld [vmem:[#allocation6 + $0x1a8] sm:$0xf]
        %v2297 = vld [vmem:[#allocation6 + $0x1ac] sm:$0xf]
        %v2298 = vld [vmem:[#allocation6 + $0x1b0] sm:$0xf]
        %v2299 = vld [vmem:[#allocation6 + $0x1b4] sm:$0xf]
        %v2300 = vld [vmem:[#allocation6 + $0x1b8] sm:$0xf]
        %v2301 = vld [vmem:[#allocation6 + $0x1bc] sm:$0xf]
        %v2302 = vld [vmem:[#allocation6 + $0x1c0] sm:$0xf]
        %v2303 = vld [vmem:[#allocation6 + $0x1c4] sm:$0xf]
        %v2304 = vld [vmem:[#allocation6 + $0x1c8] sm:$0xf]
        %v2305 = vld [vmem:[#allocation6 + $0x1cc] sm:$0xf]
        %v2306 = vld [vmem:[#allocation6 + $0x1d0] sm:$0xf]
        %v2307 = vld [vmem:[#allocation6 + $0x1d4] sm:$0xf]
        %v2308 = vld [vmem:[#allocation6 + $0x1d8] sm:$0xf]
        %v2309 = vld [vmem:[#allocation6 + $0x1dc] sm:$0xf]
        %v2310 = vld [vmem:[#allocation6 + $0x1e0] sm:$0xf]
        %v2311 = vld [vmem:[#allocation6 + $0x1e4] sm:$0xf]
        %v2312 = vld [vmem:[#allocation6 + $0x1e8] sm:$0xf]
        %v2313 = vld [vmem:[#allocation6 + $0x1ec] sm:$0xf]
        %v2314 = vld [vmem:[#allocation6 + $0x1f0] sm:$0xf]
        %v2315 = vld [vmem:[#allocation6 + $0x1f4] sm:$0xf]
        %v2316 = vld [vmem:[#allocation6 + $0x1f8] sm:$0xf]
        %v2317 = vld [vmem:[#allocation6 + $0x1fc] sm:$0xf]
        %v2318 = vld [vmem:[#allocation6 + $0x200] sm:$0xf]
        %v2319 = vld [vmem:[#allocation6 + $0x204] sm:$0xf]
        %v2320 = vld [vmem:[#allocation6 + $0x208] sm:$0xf]
        %v2321 = vld [vmem:[#allocation6 + $0x20c] sm:$0xf]
        %v2322 = vld [vmem:[#allocation6 + $0x210] sm:$0xf]
        %v2323 = vld [vmem:[#allocation6 + $0x214] sm:$0xf]
        %v2324 = vld [vmem:[#allocation6 + $0x218] sm:$0xf]
        %v2325 = vld [vmem:[#allocation6 + $0x21c] sm:$0xf]
        %v2326 = vld [vmem:[#allocation6 + $0x220] sm:$0xf]
        %v2327 = vld [vmem:[#allocation6 + $0x224] sm:$0xf]
        %v2328 = vld [vmem:[#allocation6 + $0x228] sm:$0xf]
        %v2329 = vld [vmem:[#allocation6 + $0x22c] sm:$0xf]
        %v2330 = vld [vmem:[#allocation6 + $0x230] sm:$0xf]
        %v2331 = vld [vmem:[#allocation6 + $0x234] sm:$0xf]
        %v2332 = vld [vmem:[#allocation6 + $0x238] sm:$0xf]
        %v2333 = vld [vmem:[#allocation6 + $0x23c] sm:$0xf]
        %v2334 = vld [vmem:[%s4] sm:$0x1]
        %v2336 = vlaneseq
        %v2337 = vshrl.u32 %v2336, 7
        %v2338 = vsub.s32 0, %v2337
        %v2339 = vrot.slane %v2334, %v2338
        %v2485 = vunpack.c.l.b16 %v2190
        %v2486 = vunpack.c.l.b16 %v2191
        %v2487 = vunpack.c.l.b16 %v2192
        %v2488 = vunpack.c.l.b16 %v2193
        %v2489 = vunpack.c.l.b16 %v2194
        %v2490 = vunpack.c.l.b16 %v2195
        %v2491 = vunpack.c.l.b16 %v2196
        %v2492 = vunpack.c.l.b16 %v2197
        %v2493 = vunpack.c.l.b16 %v2198
        %v2494 = vunpack.c.l.b16 %v2199
        %v2495 = vunpack.c.l.b16 %v2200
        %v2496 = vunpack.c.l.b16 %v2201
        %v2497 = vunpack.c.l.b16 %v2202
        %v2498 = vunpack.c.l.b16 %v2203
        %v2499 = vunpack.c.l.b16 %v2204
        %v2500 = vunpack.c.l.b16 %v2205
        %v2501 = vunpack.c.l.b16 %v2206
        %v2502 = vunpack.c.l.b16 %v2207
        %v2503 = vunpack.c.l.b16 %v2208
        %v2504 = vunpack.c.l.b16 %v2209
        %v2505 = vunpack.c.l.b16 %v2210
        %v2506 = vunpack.c.l.b16 %v2211
        %v2507 = vunpack.c.l.b16 %v2212
        %v2508 = vunpack.c.l.b16 %v2213
        %v2509 = vunpack.c.l.b16 %v2214
        %v2510 = vunpack.c.l.b16 %v2215
        %v2511 = vunpack.c.l.b16 %v2216
        %v2512 = vunpack.c.l.b16 %v2217
        %v2513 = vunpack.c.l.b16 %v2218
        %v2514 = vunpack.c.l.b16 %v2219
        %v2515 = vunpack.c.l.b16 %v2220
        %v2516 = vunpack.c.l.b16 %v2221
        %v2517 = vunpack.c.l.b16 %v2222
        %v2518 = vunpack.c.l.b16 %v2223
        %v2519 = vunpack.c.l.b16 %v2224
        %v2520 = vunpack.c.l.b16 %v2225
        %v2521 = vunpack.c.l.b16 %v2226
        %v2522 = vunpack.c.l.b16 %v2227
        %v2523 = vunpack.c.l.b16 %v2228
        %v2524 = vunpack.c.l.b16 %v2229
        %v2525 = vunpack.c.l.b16 %v2230
        %v2526 = vunpack.c.l.b16 %v2231
        %v2527 = vunpack.c.l.b16 %v2232
        %v2528 = vunpack.c.l.b16 %v2233
        %v2529 = vunpack.c.l.b16 %v2234
        %v2530 = vunpack.c.l.b16 %v2235
        %v2531 = vunpack.c.l.b16 %v2236
        %v2532 = vunpack.c.l.b16 %v2237
        %v2533 = vunpack.c.l.b16 %v2238
        %v2534 = vunpack.c.l.b16 %v2239
        %v2535 = vunpack.c.l.b16 %v2240
        %v2536 = vunpack.c.l.b16 %v2241
        %v2537 = vunpack.c.l.b16 %v2242
        %v2538 = vunpack.c.l.b16 %v2243
        %v2539 = vunpack.c.l.b16 %v2244
        %v2540 = vunpack.c.l.b16 %v2245
        %v2541 = vunpack.c.l.b16 %v2246
        %v2542 = vunpack.c.l.b16 %v2247
        %v2543 = vunpack.c.l.b16 %v2248
        %v2544 = vunpack.c.l.b16 %v2249
        %v2545 = vunpack.c.l.b16 %v2250
        %v2546 = vunpack.c.l.b16 %v2251
        %v2547 = vunpack.c.l.b16 %v2252
        %v2548 = vunpack.c.l.b16 %v2253
        %v2549 = vunpack.c.l.b16 %v2254
        %v2550 = vunpack.c.l.b16 %v2255
        %v2551 = vunpack.c.l.b16 %v2256
        %v2552 = vunpack.c.l.b16 %v2257
        %v2553 = vunpack.c.l.b16 %v2258
        %v2554 = vunpack.c.l.b16 %v2259
        %v2555 = vunpack.c.l.b16 %v2260
        %v2556 = vunpack.c.l.b16 %v2261
        %v2557 = vunpack.c.l.b16 %v2262
        %v2558 = vunpack.c.l.b16 %v2263
        %v2559 = vunpack.c.l.b16 %v2264
        %v2560 = vunpack.c.l.b16 %v2265
        %v2561 = vunpack.c.l.b16 %v2266
        %v2562 = vunpack.c.l.b16 %v2267
        %v2563 = vunpack.c.l.b16 %v2268
        %v2564 = vunpack.c.l.b16 %v2269
        %v2565 = vunpack.c.l.b16 %v2270
        %v2566 = vunpack.c.l.b16 %v2271
        %v2567 = vunpack.c.l.b16 %v2272
        %v2568 = vunpack.c.l.b16 %v2273
        %v2569 = vunpack.c.l.b16 %v2274
        %v2570 = vunpack.c.l.b16 %v2275
        %v2571 = vunpack.c.l.b16 %v2276
        %v2572 = vunpack.c.l.b16 %v2277
        %v2573 = vunpack.c.l.b16 %v2278
        %v2574 = vunpack.c.l.b16 %v2279
        %v2575 = vunpack.c.l.b16 %v2280
        %v2576 = vunpack.c.l.b16 %v2281
        %v2577 = vunpack.c.l.b16 %v2282
        %v2578 = vunpack.c.l.b16 %v2283
        %v2579 = vunpack.c.l.b16 %v2284
        %v2580 = vunpack.c.l.b16 %v2285
        %v2581 = vunpack.c.l.b16 %v2286
        %v2582 = vunpack.c.l.b16 %v2287
        %v2583 = vunpack.c.l.b16 %v2288
        %v2584 = vunpack.c.l.b16 %v2289
        %v2585 = vunpack.c.l.b16 %v2290
        %v2586 = vunpack.c.l.b16 %v2291
        %v2587 = vunpack.c.l.b16 %v2292
        %v2588 = vunpack.c.l.b16 %v2293
        %v2589 = vunpack.c.l.b16 %v2294
        %v2590 = vunpack.c.l.b16 %v2295
        %v2591 = vunpack.c.l.b16 %v2296
        %v2592 = vunpack.c.l.b16 %v2297
        %v2593 = vunpack.c.l.b16 %v2298
        %v2594 = vunpack.c.l.b16 %v2299
        %v2595 = vunpack.c.l.b16 %v2300
        %v2596 = vunpack.c.l.b16 %v2301
        %v2597 = vunpack.c.l.b16 %v2302
        %v2598 = vunpack.c.l.b16 %v2303
        %v2599 = vunpack.c.l.b16 %v2304
        %v2600 = vunpack.c.l.b16 %v2305
        %v2601 = vunpack.c.l.b16 %v2306
        %v2602 = vunpack.c.l.b16 %v2307
        %v2603 = vunpack.c.l.b16 %v2308
        %v2604 = vunpack.c.l.b16 %v2309
        %v2605 = vunpack.c.l.b16 %v2310
        %v2606 = vunpack.c.l.b16 %v2311
        %v2607 = vunpack.c.l.b16 %v2312
        %v2608 = vunpack.c.l.b16 %v2313
        %v2609 = vunpack.c.l.b16 %v2314
        %v2610 = vunpack.c.l.b16 %v2315
        %v2611 = vunpack.c.l.b16 %v2316
        %v2612 = vunpack.c.l.b16 %v2317
        %v2613 = vunpack.c.l.b16 %v2318
        %v2614 = vunpack.c.l.b16 %v2319
        %v2615 = vunpack.c.l.b16 %v2320
        %v2616 = vunpack.c.l.b16 %v2321
        %v2617 = vunpack.c.l.b16 %v2322
        %v2618 = vunpack.c.l.b16 %v2323
        %v2619 = vunpack.c.l.b16 %v2324
        %v2620 = vunpack.c.l.b16 %v2325
        %v2621 = vunpack.c.l.b16 %v2326
        %v2622 = vunpack.c.l.b16 %v2327
        %v2623 = vunpack.c.l.b16 %v2328
        %v2624 = vunpack.c.l.b16 %v2329
        %v2625 = vunpack.c.l.b16 %v2330
        %v2626 = vunpack.c.l.b16 %v2331
        %v2627 = vunpack.c.l.b16 %v2332
        %v2628 = vunpack.c.l.b16 %v2333
        %v2629 = vpack.c.b16 %v2486, %v2485
        %v2630 = vpack.c.b16 %v2488, %v2487
        %v2631 = vpack.c.b16 %v2490, %v2489
        %v2632 = vpack.c.b16 %v2492, %v2491
        %v2633 = vpack.c.b16 %v2494, %v2493
        %v2634 = vpack.c.b16 %v2496, %v2495
        %v2635 = vpack.c.b16 %v2498, %v2497
        %v2636 = vpack.c.b16 %v2500, %v2499
        %v2637 = vpack.c.b16 %v2502, %v2501
        %v2638 = vpack.c.b16 %v2504, %v2503
        %v2639 = vpack.c.b16 %v2506, %v2505
        %v2640 = vpack.c.b16 %v2508, %v2507
        %v2641 = vpack.c.b16 %v2510, %v2509
        %v2642 = vpack.c.b16 %v2512, %v2511
        %v2643 = vpack.c.b16 %v2514, %v2513
        %v2644 = vpack.c.b16 %v2516, %v2515
        %v2645 = vpack.c.b16 %v2518, %v2517
        %v2646 = vpack.c.b16 %v2520, %v2519
        %v2647 = vpack.c.b16 %v2522, %v2521
        %v2648 = vpack.c.b16 %v2524, %v2523
        %v2649 = vpack.c.b16 %v2526, %v2525
        %v2650 = vpack.c.b16 %v2528, %v2527
        %v2651 = vpack.c.b16 %v2530, %v2529
        %v2652 = vpack.c.b16 %v2532, %v2531
        %v2653 = vpack.c.b16 %v2534, %v2533
        %v2654 = vpack.c.b16 %v2536, %v2535
        %v2655 = vpack.c.b16 %v2538, %v2537
        %v2656 = vpack.c.b16 %v2540, %v2539
        %v2657 = vpack.c.b16 %v2542, %v2541
        %v2658 = vpack.c.b16 %v2544, %v2543
        %v2659 = vpack.c.b16 %v2546, %v2545
        %v2660 = vpack.c.b16 %v2548, %v2547
        %v2661 = vpack.c.b16 %v2550, %v2549
        %v2662 = vpack.c.b16 %v2552, %v2551
        %v2663 = vpack.c.b16 %v2554, %v2553
        %v2664 = vpack.c.b16 %v2556, %v2555
        %v2665 = vpack.c.b16 %v2558, %v2557
        %v2666 = vpack.c.b16 %v2560, %v2559
        %v2667 = vpack.c.b16 %v2562, %v2561
        %v2668 = vpack.c.b16 %v2564, %v2563
        %v2669 = vpack.c.b16 %v2566, %v2565
        %v2670 = vpack.c.b16 %v2568, %v2567
        %v2671 = vpack.c.b16 %v2570, %v2569
        %v2672 = vpack.c.b16 %v2572, %v2571
        %v2673 = vpack.c.b16 %v2574, %v2573
        %v2674 = vpack.c.b16 %v2576, %v2575
        %v2675 = vpack.c.b16 %v2578, %v2577
        %v2676 = vpack.c.b16 %v2580, %v2579
        %v2677 = vpack.c.b16 %v2582, %v2581
        %v2678 = vpack.c.b16 %v2584, %v2583
        %v2679 = vpack.c.b16 %v2586, %v2585
        %v2680 = vpack.c.b16 %v2588, %v2587
        %v2681 = vpack.c.b16 %v2590, %v2589
        %v2682 = vpack.c.b16 %v2592, %v2591
        %v2683 = vpack.c.b16 %v2594, %v2593
        %v2684 = vpack.c.b16 %v2596, %v2595
        %v2685 = vpack.c.b16 %v2598, %v2597
        %v2686 = vpack.c.b16 %v2600, %v2599
        %v2687 = vpack.c.b16 %v2602, %v2601
        %v2688 = vpack.c.b16 %v2604, %v2603
        %v2689 = vpack.c.b16 %v2606, %v2605
        %v2690 = vpack.c.b16 %v2608, %v2607
        %v2691 = vpack.c.b16 %v2610, %v2609
        %v2692 = vpack.c.b16 %v2612, %v2611
        %v2693 = vpack.c.b16 %v2614, %v2613
        %v2694 = vpack.c.b16 %v2616, %v2615
        %v2695 = vpack.c.b16 %v2618, %v2617
        %v2696 = vpack.c.b16 %v2620, %v2619
        %v2697 = vpack.c.b16 %v2622, %v2621
        %v2698 = vpack.c.b16 %v2624, %v2623
        %v2699 = vpack.c.b16 %v2626, %v2625
        %v2700 = vpack.c.b16 %v2628, %v2627
        %2773 = vmatprep.subr.bf16.mxu0 0
        %2774 = vmatpush1.bf16.msra.mxu0 %v2629
        %2775 = vmatprep.subr.bf16.mxu0 0
        %2776 = vmatpush1.bf16.msra.mxu0 %v2630
        %2777 = vmatprep.subr.bf16.mxu0 0
        %2778 = vmatpush1.bf16.msra.mxu0 %v2631
        %2779 = vmatprep.subr.bf16.mxu0 0
        %2780 = vmatpush1.bf16.msra.mxu0 %v2632
        %2781 = vmatprep.subr.bf16.mxu0 0
        %2782 = vmatpush1.bf16.msra.mxu0 %v2633
        %2783 = vmatprep.subr.bf16.mxu0 0
        %2784 = vmatpush1.bf16.msra.mxu0 %v2634
        %2785 = vmatprep.subr.bf16.mxu0 0
        %2786 = vmatpush1.bf16.msra.mxu0 %v2635
        %2787 = vmatprep.subr.bf16.mxu0 0
        %2788 = vmatpush1.bf16.msra.mxu0 %v2636
        %2789 = vmatprep.subr.bf16.mxu0 0
        %2790 = vmatpush1.bf16.msra.mxu0 %v2637
        %2791 = vmatprep.subr.bf16.mxu0 0
        %2792 = vmatpush1.bf16.msra.mxu0 %v2638
        %2793 = vmatprep.subr.bf16.mxu0 0
        %2794 = vmatpush1.bf16.msra.mxu0 %v2639
        %2795 = vmatprep.subr.bf16.mxu0 0
        %2796 = vmatpush1.bf16.msra.mxu0 %v2640
        %2797 = vmatprep.subr.bf16.mxu0 0
        %2798 = vmatpush1.bf16.msra.mxu0 %v2641
        %2799 = vmatprep.subr.bf16.mxu0 0
        %2800 = vmatpush1.bf16.msra.mxu0 %v2642
        %2801 = vmatprep.subr.bf16.mxu0 0
        %2802 = vmatpush1.bf16.msra.mxu0 %v2643
        %2803 = vmatprep.subr.bf16.mxu0 0
        %2804 = vmatpush1.bf16.msra.mxu0 %v2644
        %2805 = vmatprep.mubr.bf16.mxu0 %v1261
        %2806 = vmatmul.mubr.bf16.gmra.mrb[0].mxu0 %v1149
        %v2807 = vpop.f32.mrb[0].mxu0
        %v2808 = vadd.f32 %v2339, %v2807
        %v2809 = vpop.f32.mrb[0].mxu0
        %v2810 = vpop.f32.mrb[0].mxu0
        %v2811 = vadd.f32 %v2339, %v2810
        %v2812 = vpop.f32.mrb[0].mxu0
        %2813 = vmatprep.mubr.bf16.mxu0 %v1262
        %2814 = vmatmul.mubr.bf16.gmra.mrb[0].mxu0 %v1150
        %v2815 = vpop.f32.mrb[0].mxu0
        %v2816 = vadd.f32 %v2339, %v2815
        %v2817 = vpop.f32.mrb[0].mxu0
        %v2818 = vpop.f32.mrb[0].mxu0
        %v2819 = vadd.f32 %v2339, %v2818
        %v2820 = vpop.f32.mrb[0].mxu0
        %2821 = vmatprep.mubr.bf16.mxu0 %v1263
        %2822 = vmatmul.mubr.bf16.gmra.mrb[0].mxu0 %v1151
        %v2823 = vpop.f32.mrb[0].mxu0
        %v2824 = vadd.f32 %v2339, %v2823
        %v2825 = vpop.f32.mrb[0].mxu0
        %v2826 = vpop.f32.mrb[0].mxu0
        %v2827 = vadd.f32 %v2339, %v2826
        %v2828 = vpop.f32.mrb[0].mxu0
        %2829 = vmatprep.mubr.bf16.mxu0 %v1264
        %2830 = vmatmul.mubr.bf16.gmra.mrb[0].mxu0 %v1152
        %v2831 = vpop.f32.mrb[0].mxu0
        %v2832 = vadd.f32 %v2339, %v2831
        %v2833 = vpop.f32.mrb[0].mxu0
        %v2834 = vpop.f32.mrb[0].mxu0
        %v2835 = vadd.f32 %v2339, %v2834
        %v2836 = vpop.f32.mrb[0].mxu0
        %2837 = vmatprep.mubr.bf16.mxu0 %v1265
        %2838 = vmatmul.mubr.bf16.gmra.mrb[0].mxu0 %v1153
        %v2839 = vpop.f32.mrb[0].mxu0
        %v2840 = vadd.f32 %v2339, %v2839
        %v2841 = vpop.f32.mrb[0].mxu0
        %v2842 = vpop.f32.mrb[0].mxu0
        %v2843 = vadd.f32 %v2339, %v2842
        %v2844 = vpop.f32.mrb[0].mxu0
        %2845 = vmatprep.mubr.bf16.mxu0 %v1266
        %2846 = vmatmul.mubr.bf16.gmra.mrb[0].mxu0 %v1154
        %v2847 = vpop.f32.mrb[0].mxu0
        %v2848 = vadd.f32 %v2339, %v2847
        %v2849 = vpop.f32.mrb[0].mxu0
        %v2850 = vpop.f32.mrb[0].mxu0
        %v2851 = vadd.f32 %v2339, %v2850
        %v2852 = vpop.f32.mrb[0].mxu0
        %2853 = vmatprep.mubr.bf16.mxu0 %v1267
        %2854 = vmatmul.mubr.bf16.gmra.mrb[0].mxu0 %v1155
        %v2855 = vpop.f32.mrb[0].mxu0
        %v2856 = vadd.f32 %v2339, %v2855
        %v2857 = vpop.f32.mrb[0].mxu0
        %v2858 = vpop.f32.mrb[0].mxu0
        %v2859 = vadd.f32 %v2339, %v2858
        %v2860 = vpop.f32.mrb[0].mxu0
        %2861 = vmatprep.mubr.bf16.mxu0 %v1268
        %2862 = vmatmul.mubr.bf16.gmra.mrb[0].mxu0 %v1156
        %v2863 = vpop.f32.mrb[0].mxu0
        %v2864 = vadd.f32 %v2339, %v2863
        %v2865 = vpop.f32.mrb[0].mxu0
        %v2866 = vpop.f32.mrb[0].mxu0
        %v2867 = vadd.f32 %v2339, %v2866
        %v2868 = vpop.f32.mrb[0].mxu0
        %2869 = vmatprep.mubr.bf16.mxu0 %v1269
        %2870 = vmatmul.mubr.bf16.gmra.mrb[0].mxu0 %v1157
        %v2871 = vpop.f32.mrb[0].mxu0
        %v2872 = vadd.f32 %v2339, %v2871
        %v2873 = vpop.f32.mrb[0].mxu0
        %v2874 = vpop.f32.mrb[0].mxu0
        %v2875 = vadd.f32 %v2339, %v2874
        %v2876 = vpop.f32.mrb[0].mxu0
        %2877 = vmatprep.mubr.bf16.mxu0 %v1270
        %2878 = vmatmul.mubr.bf16.gmra.mrb[0].mxu0 %v1158
        %v2879 = vpop.f32.mrb[0].mxu0
        %v2880 = vadd.f32 %v2339, %v2879
        %v2881 = vpop.f32.mrb[0].mxu0
        %v2882 = vpop.f32.mrb[0].mxu0
        %v2883 = vadd.f32 %v2339, %v2882
        %v2884 = vpop.f32.mrb[0].mxu0
        %2885 = vmatprep.mubr.bf16.mxu0 %v1271
        %2886 = vmatmul.mubr.bf16.gmra.mrb[0].mxu0 %v1159
        %v2887 = vpop.f32.mrb[0].mxu0
        %v2888 = vadd.f32 %v2339, %v2887
        %v2889 = vpop.f32.mrb[0].mxu0
        %v2890 = vpop.f32.mrb[0].mxu0
        %v2891 = vadd.f32 %v2339, %v2890
        %v2892 = vpop.f32.mrb[0].mxu0
        %2893 = vmatprep.mubr.bf16.mxu0 %v1272
        %2894 = vmatmul.mubr.bf16.gmra.mrb[0].mxu0 %v1160
        %v2895 = vpop.f32.mrb[0].mxu0
        %v2896 = vadd.f32 %v2339, %v2895
        %v2897 = vpop.f32.mrb[0].mxu0
        %v2898 = vpop.f32.mrb[0].mxu0
        %v2899 = vadd.f32 %v2339, %v2898
        %v2900 = vpop.f32.mrb[0].mxu0
        %2901 = vmatprep.mubr.bf16.mxu0 %v1273
        %2902 = vmatmul.mubr.bf16.gmra.mrb[0].mxu0 %v1161
        %v2903 = vpop.f32.mrb[0].mxu0
        %v2904 = vadd.f32 %v2339, %v2903
        %v2905 = vpop.f32.mrb[0].mxu0
        %v2906 = vpop.f32.mrb[0].mxu0
        %v2907 = vadd.f32 %v2339, %v2906
        %v2908 = vpop.f32.mrb[0].mxu0
        %2909 = vmatprep.mubr.bf16.mxu0 %v1274
        %2910 = vmatmul.mubr.bf16.gmra.mrb[0].mxu0 %v1162
        %v2911 = vpop.f32.mrb[0].mxu0
        %v2912 = vadd.f32 %v2339, %v2911
        %v2913 = vpop.f32.mrb[0].mxu0
        %v2914 = vpop.f32.mrb[0].mxu0
        %v2915 = vadd.f32 %v2339, %v2914
        %v2916 = vpop.f32.mrb[0].mxu0
        %2917 = vmatprep.mubr.bf16.mxu0 %v1275
        %2918 = vmatmul.mubr.bf16.gmra.mrb[0].mxu0 %v1163
        %v2919 = vpop.f32.mrb[0].mxu0
        %v2920 = vadd.f32 %v2339, %v2919
        %v2921 = vpop.f32.mrb[0].mxu0
        %v2922 = vpop.f32.mrb[0].mxu0
        %v2923 = vadd.f32 %v2339, %v2922
        %v2924 = vpop.f32.mrb[0].mxu0
        %2925 = vmatprep.mubr.bf16.mxu0 %v1276
        %2926 = vmatmul.mubr.bf16.gmra.mrb[0].mxu0 %v1164
        %v2927 = vpop.f32.mrb[0].mxu0
        %v2928 = vadd.f32 %v2339, %v2927
        %v2929 = vpop.f32.mrb[0].mxu0
        %v2930 = vpop.f32.mrb[0].mxu0
        %v2931 = vadd.f32 %v2339, %v2930
        %v2932 = vpop.f32.mrb[0].mxu0
        %2933 = vdwg.mxu0
        %2934 = vmatprep.subr.bf16.mxu0 0
        %2935 = vmatpush1.bf16.msra.mxu0 %v2645
        %2936 = vmatprep.subr.bf16.mxu0 0
        %2937 = vmatpush1.bf16.msra.mxu0 %v2646
        %2938 = vmatprep.subr.bf16.mxu0 0
        %2939 = vmatpush1.bf16.msra.mxu0 %v2647
        %2940 = vmatprep.subr.bf16.mxu0 0
        %2941 = vmatpush1.bf16.msra.mxu0 %v2648
        %2942 = vmatprep.subr.bf16.mxu0 0
        %2943 = vmatpush1.bf16.msra.mxu0 %v2649
        %2944 = vmatprep.subr.bf16.mxu0 0
        %2945 = vmatpush1.bf16.msra.mxu0 %v2650
        %2946 = vmatprep.subr.bf16.mxu0 0
        %2947 = vmatpush1.bf16.msra.mxu0 %v2651
        %2948 = vmatprep.subr.bf16.mxu0 0
        %2949 = vmatpush1.bf16.msra.mxu0 %v2652
        %2950 = vmatprep.subr.bf16.mxu0 0
        %2951 = vmatpush1.bf16.msra.mxu0 %v2653
        %2952 = vmatprep.subr.bf16.mxu0 0
        %2953 = vmatpush1.bf16.msra.mxu0 %v2654
        %2954 = vmatprep.subr.bf16.mxu0 0
        %2955 = vmatpush1.bf16.msra.mxu0 %v2655
        %2956 = vmatprep.subr.bf16.mxu0 0
        %2957 = vmatpush1.bf16.msra.mxu0 %v2656
        %2958 = vmatprep.subr.bf16.mxu0 0
        %2959 = vmatpush1.bf16.msra.mxu0 %v2657
        %2960 = vmatprep.subr.bf16.mxu0 0
        %2961 = vmatpush1.bf16.msra.mxu0 %v2658
        %2962 = vmatprep.subr.bf16.mxu0 0
        %2963 = vmatpush1.bf16.msra.mxu0 %v2659
        %2964 = vmatprep.subr.bf16.mxu0 0
        %2965 = vmatpush1.bf16.msra.mxu0 %v2660
        %2966 = vmatprep.mubr.bf16.mxu0 %v1614
        %2967 = vmatmul.mubr.bf16.gmra.mrb[0].mxu0 %v1502
        %v2968 = vpop.f32.mrb[0].mxu0
        %v2969 = vadd.f32 %v2808, %v2968
        %v2970 = vpop.f32.mrb[0].mxu0
        %v2971 = vpop.f32.mrb[0].mxu0
        %v2972 = vadd.f32 %v2811, %v2971
        %v2973 = vpop.f32.mrb[0].mxu0
        %2974 = vmatprep.mubr.bf16.mxu0 %v1615
        %2975 = vmatmul.mubr.bf16.gmra.mrb[0].mxu0 %v1503
        %v2976 = vpop.f32.mrb[0].mxu0
        %v2977 = vadd.f32 %v2816, %v2976
        %v2978 = vpop.f32.mrb[0].mxu0
        %v2979 = vpop.f32.mrb[0].mxu0
        %v2980 = vadd.f32 %v2819, %v2979
        %v2981 = vpop.f32.mrb[0].mxu0
        %2982 = vmatprep.mubr.bf16.mxu0 %v1616
        %2983 = vmatmul.mubr.bf16.gmra.mrb[0].mxu0 %v1504
        %v2984 = vpop.f32.mrb[0].mxu0
        %v2985 = vadd.f32 %v2824, %v2984
        %v2986 = vpop.f32.mrb[0].mxu0
        %v2987 = vpop.f32.mrb[0].mxu0
        %v2988 = vadd.f32 %v2827, %v2987
        %v2989 = vpop.f32.mrb[0].mxu0
        %2990 = vmatprep.mubr.bf16.mxu0 %v1617
        %2991 = vmatmul.mubr.bf16.gmra.mrb[0].mxu0 %v1505
        %v2992 = vpop.f32.mrb[0].mxu0
        %v2993 = vadd.f32 %v2832, %v2992
        %v2994 = vpop.f32.mrb[0].mxu0
        %v2995 = vpop.f32.mrb[0].mxu0
        %v2996 = vadd.f32 %v2835, %v2995
        %v2997 = vpop.f32.mrb[0].mxu0
        %2998 = vmatprep.mubr.bf16.mxu0 %v1618
        %2999 = vmatmul.mubr.bf16.gmra.mrb[0].mxu0 %v1506
        %v3000 = vpop.f32.mrb[0].mxu0
        %v3001 = vadd.f32 %v2840, %v3000
        %v3002 = vpop.f32.mrb[0].mxu0
        %v3003 = vpop.f32.mrb[0].mxu0
        %v3004 = vadd.f32 %v2843, %v3003
        %v3005 = vpop.f32.mrb[0].mxu0
        %3006 = vmatprep.mubr.bf16.mxu0 %v1619
        %3007 = vmatmul.mubr.bf16.gmra.mrb[0].mxu0 %v1507
        %v3008 = vpop.f32.mrb[0].mxu0
        %v3009 = vadd.f32 %v2848, %v3008
        %v3010 = vpop.f32.mrb[0].mxu0
        %v3011 = vpop.f32.mrb[0].mxu0
        %v3012 = vadd.f32 %v2851, %v3011
        %v3013 = vpop.f32.mrb[0].mxu0
        %3014 = vmatprep.mubr.bf16.mxu0 %v1620
        %3015 = vmatmul.mubr.bf16.gmra.mrb[0].mxu0 %v1508
        %v3016 = vpop.f32.mrb[0].mxu0
        %v3017 = vadd.f32 %v2856, %v3016
        %v3018 = vpop.f32.mrb[0].mxu0
        %v3019 = vpop.f32.mrb[0].mxu0
        %v3020 = vadd.f32 %v2859, %v3019
        %v3021 = vpop.f32.mrb[0].mxu0
        %3022 = vmatprep.mubr.bf16.mxu0 %v1621
        %3023 = vmatmul.mubr.bf16.gmra.mrb[0].mxu0 %v1509
        %v3024 = vpop.f32.mrb[0].mxu0
        %v3025 = vadd.f32 %v2864, %v3024
        %v3026 = vpop.f32.mrb[0].mxu0
        %v3027 = vpop.f32.mrb[0].mxu0
        %v3028 = vadd.f32 %v2867, %v3027
        %v3029 = vpop.f32.mrb[0].mxu0
        %3030 = vmatprep.mubr.bf16.mxu0 %v1622
        %3031 = vmatmul.mubr.bf16.gmra.mrb[0].mxu0 %v1510
        %v3032 = vpop.f32.mrb[0].mxu0
        %v3033 = vadd.f32 %v2872, %v3032
        %v3034 = vpop.f32.mrb[0].mxu0
        %v3035 = vpop.f32.mrb[0].mxu0
        %v3036 = vadd.f32 %v2875, %v3035
        %v3037 = vpop.f32.mrb[0].mxu0
        %3038 = vmatprep.mubr.bf16.mxu0 %v1623
        %3039 = vmatmul.mubr.bf16.gmra.mrb[0].mxu0 %v1511
        %v3040 = vpop.f32.mrb[0].mxu0
        %v3041 = vadd.f32 %v2880, %v3040
        %v3042 = vpop.f32.mrb[0].mxu0
        %v3043 = vpop.f32.mrb[0].mxu0
        %v3044 = vadd.f32 %v2883, %v3043
        %v3045 = vpop.f32.mrb[0].mxu0
        %3046 = vmatprep.mubr.bf16.mxu0 %v1624
        %3047 = vmatmul.mubr.bf16.gmra.mrb[0].mxu0 %v1512
        %v3048 = vpop.f32.mrb[0].mxu0
        %v3049 = vadd.f32 %v2888, %v3048
        %v3050 = vpop.f32.mrb[0].mxu0
        %v3051 = vpop.f32.mrb[0].mxu0
        %v3052 = vadd.f32 %v2891, %v3051
        %v3053 = vpop.f32.mrb[0].mxu0
        %3054 = vmatprep.mubr.bf16.mxu0 %v1625
        %3055 = vmatmul.mubr.bf16.gmra.mrb[0].mxu0 %v1513
        %v3056 = vpop.f32.mrb[0].mxu0
        %v3057 = vadd.f32 %v2896, %v3056
        %v3058 = vpop.f32.mrb[0].mxu0
        %v3059 = vpop.f32.mrb[0].mxu0
        %v3060 = vadd.f32 %v2899, %v3059
        %v3061 = vpop.f32.mrb[0].mxu0
        %3062 = vmatprep.mubr.bf16.mxu0 %v1626
        %3063 = vmatmul.mubr.bf16.gmra.mrb[0].mxu0 %v1514
        %v3064 = vpop.f32.mrb[0].mxu0
        %v3065 = vadd.f32 %v2904, %v3064
        %v3066 = vpop.f32.mrb[0].mxu0
        %v3067 = vpop.f32.mrb[0].mxu0
        %v3068 = vadd.f32 %v2907, %v3067
        %v3069 = vpop.f32.mrb[0].mxu0
        %3070 = vmatprep.mubr.bf16.mxu0 %v1627
        %3071 = vmatmul.mubr.bf16.gmra.mrb[0].mxu0 %v1515
        %v3072 = vpop.f32.mrb[0].mxu0
        %v3073 = vadd.f32 %v2912, %v3072
        %v3074 = vpop.f32.mrb[0].mxu0
        %v3075 = vpop.f32.mrb[0].mxu0
        %v3076 = vadd.f32 %v2915, %v3075
        %v3077 = vpop.f32.mrb[0].mxu0
        %3078 = vmatprep.mubr.bf16.mxu0 %v1628
        %3079 = vmatmul.mubr.bf16.gmra.mrb[0].mxu0 %v1516
        %v3080 = vpop.f32.mrb[0].mxu0
        %v3081 = vadd.f32 %v2920, %v3080
        %v3082 = vpop.f32.mrb[0].mxu0
        %v3083 = vpop.f32.mrb[0].mxu0
        %v3084 = vadd.f32 %v2923, %v3083
        %v3085 = vpop.f32.mrb[0].mxu0
        %3086 = vmatprep.mubr.bf16.mxu0 %v1629
        %3087 = vmatmul.mubr.bf16.gmra.mrb[0].mxu0 %v1517
        %v3088 = vpop.f32.mrb[0].mxu0
        %v3089 = vadd.f32 %v2928, %v3088
        %v3090 = vpop.f32.mrb[0].mxu0
        %v3091 = vpop.f32.mrb[0].mxu0
        %v3092 = vadd.f32 %v2931, %v3091
        %v3093 = vpop.f32.mrb[0].mxu0
        %3094 = vdwg.mxu0
        %3095 = vmatprep.subr.bf16.mxu0 0
        %3096 = vmatpush1.bf16.msra.mxu0 %v2661
        %3097 = vmatprep.subr.bf16.mxu0 0
        %3098 = vmatpush1.bf16.msra.mxu0 %v2662
        %3099 = vmatprep.subr.bf16.mxu0 0
        %3100 = vmatpush1.bf16.msra.mxu0 %v2663
        %3101 = vmatprep.subr.bf16.mxu0 0
        %3102 = vmatpush1.bf16.msra.mxu0 %v2664
        %3103 = vmatprep.subr.bf16.mxu0 0
        %3104 = vmatpush1.bf16.msra.mxu0 %v2665
        %3105 = vmatprep.subr.bf16.mxu0 0
        %3106 = vmatpush1.bf16.msra.mxu0 %v2666
        %3107 = vmatprep.subr.bf16.mxu0 0
        %3108 = vmatpush1.bf16.msra.mxu0 %v2667
        %3109 = vmatprep.subr.bf16.mxu0 0
        %3110 = vmatpush1.bf16.msra.mxu0 %v2668
        %3111 = vmatprep.subr.bf16.mxu0 0
        %3112 = vmatpush1.bf16.msra.mxu0 %v2669
        %3113 = vmatprep.subr.bf16.mxu0 0
        %3114 = vmatpush1.bf16.msra.mxu0 %v2670
        %3115 = vmatprep.subr.bf16.mxu0 0
        %3116 = vmatpush1.bf16.msra.mxu0 %v2671
        %3117 = vmatprep.subr.bf16.mxu0 0
        %3118 = vmatpush1.bf16.msra.mxu0 %v2672
        %3119 = vmatprep.subr.bf16.mxu0 0
        %3120 = vmatpush1.bf16.msra.mxu0 %v2673
        %3121 = vmatprep.subr.bf16.mxu0 0
        %3122 = vmatpush1.bf16.msra.mxu0 %v2674
        %3123 = vmatprep.subr.bf16.mxu0 0
        %3124 = vmatpush1.bf16.msra.mxu0 %v2675
        %3125 = vmatprep.subr.bf16.mxu0 0
        %3126 = vmatpush1.bf16.msra.mxu0 %v2676
        %3127 = vmatprep.mubr.bf16.mxu0 %v1742
        %3128 = vmatmul.mubr.bf16.gmra.mrb[0].mxu0 %v1630
        %v3129 = vpop.f32.mrb[0].mxu0
        %v3130 = vadd.f32 %v2969, %v3129
        %v3131 = vpop.f32.mrb[0].mxu0
        %v3132 = vpop.f32.mrb[0].mxu0
        %v3133 = vadd.f32 %v2972, %v3132
        %v3134 = vpop.f32.mrb[0].mxu0
        %3135 = vmatprep.mubr.bf16.mxu0 %v1743
        %3136 = vmatmul.mubr.bf16.gmra.mrb[0].mxu0 %v1631
        %v3137 = vpop.f32.mrb[0].mxu0
        %v3138 = vadd.f32 %v2977, %v3137
        %v3139 = vpop.f32.mrb[0].mxu0
        %v3140 = vpop.f32.mrb[0].mxu0
        %v3141 = vadd.f32 %v2980, %v3140
        %v3142 = vpop.f32.mrb[0].mxu0
        %3143 = vmatprep.mubr.bf16.mxu0 %v1744
        %3144 = vmatmul.mubr.bf16.gmra.mrb[0].mxu0 %v1632
        %v3145 = vpop.f32.mrb[0].mxu0
        %v3146 = vadd.f32 %v2985, %v3145
        %v3147 = vpop.f32.mrb[0].mxu0
        %v3148 = vpop.f32.mrb[0].mxu0
        %v3149 = vadd.f32 %v2988, %v3148
        %v3150 = vpop.f32.mrb[0].mxu0
        %3151 = vmatprep.mubr.bf16.mxu0 %v1745
        %3152 = vmatmul.mubr.bf16.gmra.mrb[0].mxu0 %v1633
        %v3153 = vpop.f32.mrb[0].mxu0
        %v3154 = vadd.f32 %v2993, %v3153
        %v3155 = vpop.f32.mrb[0].mxu0
        %v3156 = vpop.f32.mrb[0].mxu0
        %v3157 = vadd.f32 %v2996, %v3156
        %v3158 = vpop.f32.mrb[0].mxu0
        %3159 = vmatprep.mubr.bf16.mxu0 %v1746
        %3160 = vmatmul.mubr.bf16.gmra.mrb[0].mxu0 %v1634
        %v3161 = vpop.f32.mrb[0].mxu0
        %v3162 = vadd.f32 %v3001, %v3161
        %v3163 = vpop.f32.mrb[0].mxu0
        %v3164 = vpop.f32.mrb[0].mxu0
        %v3165 = vadd.f32 %v3004, %v3164
        %v3166 = vpop.f32.mrb[0].mxu0
        %3167 = vmatprep.mubr.bf16.mxu0 %v1747
        %3168 = vmatmul.mubr.bf16.gmra.mrb[0].mxu0 %v1635
        %v3169 = vpop.f32.mrb[0].mxu0
        %v3170 = vadd.f32 %v3009, %v3169
        %v3171 = vpop.f32.mrb[0].mxu0
        %v3172 = vpop.f32.mrb[0].mxu0
        %v3173 = vadd.f32 %v3012, %v3172
        %v3174 = vpop.f32.mrb[0].mxu0
        %3175 = vmatprep.mubr.bf16.mxu0 %v1748
        %3176 = vmatmul.mubr.bf16.gmra.mrb[0].mxu0 %v1636
        %v3177 = vpop.f32.mrb[0].mxu0
        %v3178 = vadd.f32 %v3017, %v3177
        %v3179 = vpop.f32.mrb[0].mxu0
        %v3180 = vpop.f32.mrb[0].mxu0
        %v3181 = vadd.f32 %v3020, %v3180
        %v3182 = vpop.f32.mrb[0].mxu0
        %3183 = vmatprep.mubr.bf16.mxu0 %v1749
        %3184 = vmatmul.mubr.bf16.gmra.mrb[0].mxu0 %v1637
        %v3185 = vpop.f32.mrb[0].mxu0
        %v3186 = vadd.f32 %v3025, %v3185
        %v3187 = vpop.f32.mrb[0].mxu0
        %v3188 = vpop.f32.mrb[0].mxu0
        %v3189 = vadd.f32 %v3028, %v3188
        %v3190 = vpop.f32.mrb[0].mxu0
        %3191 = vmatprep.mubr.bf16.mxu0 %v1750
        %3192 = vmatmul.mubr.bf16.gmra.mrb[0].mxu0 %v1638
        %v3193 = vpop.f32.mrb[0].mxu0
        %v3194 = vadd.f32 %v3033, %v3193
        %v3195 = vpop.f32.mrb[0].mxu0
        %v3196 = vpop.f32.mrb[0].mxu0
        %v3197 = vadd.f32 %v3036, %v3196
        %v3198 = vpop.f32.mrb[0].mxu0
        %3199 = vmatprep.mubr.bf16.mxu0 %v1751
        %3200 = vmatmul.mubr.bf16.gmra.mrb[0].mxu0 %v1639
        %v3201 = vpop.f32.mrb[0].mxu0
        %v3202 = vadd.f32 %v3041, %v3201
        %v3203 = vpop.f32.mrb[0].mxu0
        %v3204 = vpop.f32.mrb[0].mxu0
        %v3205 = vadd.f32 %v3044, %v3204
        %v3206 = vpop.f32.mrb[0].mxu0
        %3207 = vmatprep.mubr.bf16.mxu0 %v1752
        %3208 = vmatmul.mubr.bf16.gmra.mrb[0].mxu0 %v1640
        %v3209 = vpop.f32.mrb[0].mxu0
        %v3210 = vadd.f32 %v3049, %v3209
        %v3211 = vpop.f32.mrb[0].mxu0
        %v3212 = vpop.f32.mrb[0].mxu0
        %v3213 = vadd.f32 %v3052, %v3212
        %v3214 = vpop.f32.mrb[0].mxu0
        %3215 = vmatprep.mubr.bf16.mxu0 %v1753
        %3216 = vmatmul.mubr.bf16.gmra.mrb[0].mxu0 %v1641
        %v3217 = vpop.f32.mrb[0].mxu0
        %v3218 = vadd.f32 %v3057, %v3217
        %v3219 = vpop.f32.mrb[0].mxu0
        %v3220 = vpop.f32.mrb[0].mxu0
        %v3221 = vadd.f32 %v3060, %v3220
        %v3222 = vpop.f32.mrb[0].mxu0
        %3223 = vmatprep.mubr.bf16.mxu0 %v1754
        %3224 = vmatmul.mubr.bf16.gmra.mrb[0].mxu0 %v1642
        %v3225 = vpop.f32.mrb[0].mxu0
        %v3226 = vadd.f32 %v3065, %v3225
        %v3227 = vpop.f32.mrb[0].mxu0
        %v3228 = vpop.f32.mrb[0].mxu0
        %v3229 = vadd.f32 %v3068, %v3228
        %v3230 = vpop.f32.mrb[0].mxu0
        %3231 = vmatprep.mubr.bf16.mxu0 %v1755
        %3232 = vmatmul.mubr.bf16.gmra.mrb[0].mxu0 %v1643
        %v3233 = vpop.f32.mrb[0].mxu0
        %v3234 = vadd.f32 %v3073, %v3233
        %v3235 = vpop.f32.mrb[0].mxu0
        %v3236 = vpop.f32.mrb[0].mxu0
        %v3237 = vadd.f32 %v3076, %v3236
        %v3238 = vpop.f32.mrb[0].mxu0
        %3239 = vmatprep.mubr.bf16.mxu0 %v1756
        %3240 = vmatmul.mubr.bf16.gmra.mrb[0].mxu0 %v1644
        %v3241 = vpop.f32.mrb[0].mxu0
        %v3242 = vadd.f32 %v3081, %v3241
        %v3243 = vpop.f32.mrb[0].mxu0
        %v3244 = vpop.f32.mrb[0].mxu0
        %v3245 = vadd.f32 %v3084, %v3244
        %v3246 = vpop.f32.mrb[0].mxu0
        %3247 = vmatprep.mubr.bf16.mxu0 %v1757
        %3248 = vmatmul.mubr.bf16.gmra.mrb[0].mxu0 %v1645
        %v3249 = vpop.f32.mrb[0].mxu0
        %v3250 = vadd.f32 %v3089, %v3249
        %v3251 = vpop.f32.mrb[0].mxu0
        %v3252 = vpop.f32.mrb[0].mxu0
        %v3253 = vadd.f32 %v3092, %v3252
        %v3254 = vpop.f32.mrb[0].mxu0
        %3255 = vdwg.mxu0
        %3256 = vmatprep.subr.bf16.mxu0 0
        %3257 = vmatpush1.bf16.msra.mxu0 %v2677
        %3258 = vmatprep.subr.bf16.mxu0 0
        %3259 = vmatpush1.bf16.msra.mxu0 %v2678
        %3260 = vmatprep.subr.bf16.mxu0 0
        %3261 = vmatpush1.bf16.msra.mxu0 %v2679
        %3262 = vmatprep.subr.bf16.mxu0 0
        %3263 = vmatpush1.bf16.msra.mxu0 %v2680
        %3264 = vmatprep.subr.bf16.mxu0 0
        %3265 = vmatpush1.bf16.msra.mxu0 %v2681
        %3266 = vmatprep.subr.bf16.mxu0 0
        %3267 = vmatpush1.bf16.msra.mxu0 %v2682
        %3268 = vmatprep.subr.bf16.mxu0 0
        %3269 = vmatpush1.bf16.msra.mxu0 %v2683
        %3270 = vmatprep.subr.bf16.mxu0 0
        %3271 = vmatpush1.bf16.msra.mxu0 %v2684
        %3272 = vmatprep.subr.bf16.mxu0 0
        %3273 = vmatpush1.bf16.msra.mxu0 %v2685
        %3274 = vmatprep.subr.bf16.mxu0 0
        %3275 = vmatpush1.bf16.msra.mxu0 %v2686
        %3276 = vmatprep.subr.bf16.mxu0 0
        %3277 = vmatpush1.bf16.msra.mxu0 %v2687
        %3278 = vmatprep.subr.bf16.mxu0 0
        %3279 = vmatpush1.bf16.msra.mxu0 %v2688
        %3280 = vmatprep.subr.bf16.mxu0 0
        %3281 = vmatpush1.bf16.msra.mxu0 %v2689
        %3282 = vmatprep.subr.bf16.mxu0 0
        %3283 = vmatpush1.bf16.msra.mxu0 %v2690
        %3284 = vmatprep.subr.bf16.mxu0 0
        %3285 = vmatpush1.bf16.msra.mxu0 %v2691
        %3286 = vmatprep.subr.bf16.mxu0 0
        %3287 = vmatpush1.bf16.msra.mxu0 %v2692
        %3288 = vmatprep.mubr.bf16.mxu0 %v2030
        %3289 = vmatmul.mubr.bf16.gmra.mrb[0].mxu0 %v1918
        %v3290 = vpop.f32.mrb[0].mxu0
        %v3291 = vadd.f32 %v3130, %v3290
        %v3292 = vpop.f32.mrb[0].mxu0
        %v3293 = vpop.f32.mrb[0].mxu0
        %v3294 = vadd.f32 %v3133, %v3293
        %v3295 = vpop.f32.mrb[0].mxu0
        %3296 = vmatprep.mubr.bf16.mxu0 %v2031
        %3297 = vmatmul.mubr.bf16.gmra.mrb[0].mxu0 %v1919
        %v3298 = vpop.f32.mrb[0].mxu0
        %v3299 = vadd.f32 %v3138, %v3298
        %v3300 = vpop.f32.mrb[0].mxu0
        %v3301 = vpop.f32.mrb[0].mxu0
        %v3302 = vadd.f32 %v3141, %v3301
        %v3303 = vpop.f32.mrb[0].mxu0
        %3304 = vmatprep.mubr.bf16.mxu0 %v2032
        %3305 = vmatmul.mubr.bf16.gmra.mrb[0].mxu0 %v1920
        %v3306 = vpop.f32.mrb[0].mxu0
        %v3307 = vadd.f32 %v3146, %v3306
        %v3308 = vpop.f32.mrb[0].mxu0
        %v3309 = vpop.f32.mrb[0].mxu0
        %v3310 = vadd.f32 %v3149, %v3309
        %v3311 = vpop.f32.mrb[0].mxu0
        %3312 = vmatprep.mubr.bf16.mxu0 %v2033
        %3313 = vmatmul.mubr.bf16.gmra.mrb[0].mxu0 %v1921
        %v3314 = vpop.f32.mrb[0].mxu0
        %v3315 = vadd.f32 %v3154, %v3314
        %v3316 = vpop.f32.mrb[0].mxu0
        %v3317 = vpop.f32.mrb[0].mxu0
        %v3318 = vadd.f32 %v3157, %v3317
        %v3319 = vpop.f32.mrb[0].mxu0
        %3320 = vmatprep.mubr.bf16.mxu0 %v2034
        %3321 = vmatmul.mubr.bf16.gmra.mrb[0].mxu0 %v1922
        %v3322 = vpop.f32.mrb[0].mxu0
        %v3323 = vadd.f32 %v3162, %v3322
        %v3324 = vpop.f32.mrb[0].mxu0
        %v3325 = vpop.f32.mrb[0].mxu0
        %v3326 = vadd.f32 %v3165, %v3325
        %v3327 = vpop.f32.mrb[0].mxu0
        %3328 = vmatprep.mubr.bf16.mxu0 %v2035
        %3329 = vmatmul.mubr.bf16.gmra.mrb[0].mxu0 %v1923
        %v3330 = vpop.f32.mrb[0].mxu0
        %v3331 = vadd.f32 %v3170, %v3330
        %v3332 = vpop.f32.mrb[0].mxu0
        %v3333 = vpop.f32.mrb[0].mxu0
        %v3334 = vadd.f32 %v3173, %v3333
        %v3335 = vpop.f32.mrb[0].mxu0
        %3336 = vmatprep.mubr.bf16.mxu0 %v2036
        %3337 = vmatmul.mubr.bf16.gmra.mrb[0].mxu0 %v1924
        %v3338 = vpop.f32.mrb[0].mxu0
        %v3339 = vadd.f32 %v3178, %v3338
        %v3340 = vpop.f32.mrb[0].mxu0
        %v3341 = vpop.f32.mrb[0].mxu0
        %v3342 = vadd.f32 %v3181, %v3341
        %v3343 = vpop.f32.mrb[0].mxu0
        %3344 = vmatprep.mubr.bf16.mxu0 %v2037
        %3345 = vmatmul.mubr.bf16.gmra.mrb[0].mxu0 %v1925
        %v3346 = vpop.f32.mrb[0].mxu0
        %v3347 = vadd.f32 %v3186, %v3346
        %v3348 = vpop.f32.mrb[0].mxu0
        %v3349 = vpop.f32.mrb[0].mxu0
        %v3350 = vadd.f32 %v3189, %v3349
        %v3351 = vpop.f32.mrb[0].mxu0
        %3352 = vmatprep.mubr.bf16.mxu0 %v2038
        %3353 = vmatmul.mubr.bf16.gmra.mrb[0].mxu0 %v1926
        %v3354 = vpop.f32.mrb[0].mxu0
        %v3355 = vadd.f32 %v3194, %v3354
        %v3356 = vpop.f32.mrb[0].mxu0
        %v3357 = vpop.f32.mrb[0].mxu0
        %v3358 = vadd.f32 %v3197, %v3357
        %v3359 = vpop.f32.mrb[0].mxu0
        %3360 = vmatprep.mubr.bf16.mxu0 %v2039
        %3361 = vmatmul.mubr.bf16.gmra.mrb[0].mxu0 %v1927
        %v3362 = vpop.f32.mrb[0].mxu0
        %v3363 = vadd.f32 %v3202, %v3362
        %v3364 = vpop.f32.mrb[0].mxu0
        %v3365 = vpop.f32.mrb[0].mxu0
        %v3366 = vadd.f32 %v3205, %v3365
        %v3367 = vpop.f32.mrb[0].mxu0
        %3368 = vmatprep.mubr.bf16.mxu0 %v2040
        %3369 = vmatmul.mubr.bf16.gmra.mrb[0].mxu0 %v1928
        %v3370 = vpop.f32.mrb[0].mxu0
        %v3371 = vadd.f32 %v3210, %v3370
        %v3372 = vpop.f32.mrb[0].mxu0
        %v3373 = vpop.f32.mrb[0].mxu0
        %v3374 = vadd.f32 %v3213, %v3373
        %v3375 = vpop.f32.mrb[0].mxu0
        %3376 = vmatprep.mubr.bf16.mxu0 %v2041
        %3377 = vmatmul.mubr.bf16.gmra.mrb[0].mxu0 %v1929
        %v3378 = vpop.f32.mrb[0].mxu0
        %v3379 = vadd.f32 %v3218, %v3378
        %v3380 = vpop.f32.mrb[0].mxu0
        %v3381 = vpop.f32.mrb[0].mxu0
        %v3382 = vadd.f32 %v3221, %v3381
        %v3383 = vpop.f32.mrb[0].mxu0
        %3384 = vmatprep.mubr.bf16.mxu0 %v2042
        %3385 = vmatmul.mubr.bf16.gmra.mrb[0].mxu0 %v1930
        %v3386 = vpop.f32.mrb[0].mxu0
        %v3387 = vadd.f32 %v3226, %v3386
        %v3388 = vpop.f32.mrb[0].mxu0
        %v3389 = vpop.f32.mrb[0].mxu0
        %v3390 = vadd.f32 %v3229, %v3389
        %v3391 = vpop.f32.mrb[0].mxu0
        %3392 = vmatprep.mubr.bf16.mxu0 %v2043
        %3393 = vmatmul.mubr.bf16.gmra.mrb[0].mxu0 %v1931
        %v3394 = vpop.f32.mrb[0].mxu0
        %v3395 = vadd.f32 %v3234, %v3394
        %v3396 = vpop.f32.mrb[0].mxu0
        %v3397 = vpop.f32.mrb[0].mxu0
        %v3398 = vadd.f32 %v3237, %v3397
        %v3399 = vpop.f32.mrb[0].mxu0
        %3400 = vmatprep.mubr.bf16.mxu0 %v2044
        %3401 = vmatmul.mubr.bf16.gmra.mrb[0].mxu0 %v1932
        %v3402 = vpop.f32.mrb[0].mxu0
        %v3403 = vadd.f32 %v3242, %v3402
        %v3404 = vpop.f32.mrb[0].mxu0
        %v3405 = vpop.f32.mrb[0].mxu0
        %v3406 = vadd.f32 %v3245, %v3405
        %v3407 = vpop.f32.mrb[0].mxu0
        %3408 = vmatprep.mubr.bf16.mxu0 %v2045
        %3409 = vmatmul.mubr.bf16.gmra.mrb[0].mxu0 %v1933
        %v3410 = vpop.f32.mrb[0].mxu0
        %v3411 = vadd.f32 %v3250, %v3410
        %v3412 = vpop.f32.mrb[0].mxu0
        %v3413 = vpop.f32.mrb[0].mxu0
        %v3414 = vadd.f32 %v3253, %v3413
        %v3415 = vpop.f32.mrb[0].mxu0
        %3416 = vdwg.mxu0
        %3417 = vmatprep.subr.bf16.mxu0 0
        %3418 = vmatpush1.bf16.msra.mxu0 %v2693
        %3419 = vmatprep.subr.bf16.mxu0 0
        %3420 = vmatpush1.bf16.msra.mxu0 %v2694
        %3421 = vmatprep.subr.bf16.mxu0 0
        %3422 = vmatpush1.bf16.msra.mxu0 %v2695
        %3423 = vmatprep.subr.bf16.mxu0 0
        %3424 = vmatpush1.bf16.msra.mxu0 %v2696
        %3425 = vmatprep.subr.bf16.mxu0 0
        %3426 = vmatpush1.bf16.msra.mxu0 %v2697
        %3427 = vmatprep.subr.bf16.mxu0 0
        %3428 = vmatpush1.bf16.msra.mxu0 %v2698
        %3429 = vmatprep.subr.bf16.mxu0 0
        %3430 = vmatpush1.bf16.msra.mxu0 %v2699
        %3431 = vmatprep.subr.bf16.mxu0 0
        %3432 = vmatpush1.bf16.msra.mxu0 %v2700
        %3433 = vmatprep.subr.bf16.mxu0 0
        %3434 = vmatpush1.bf16.msra.mxu0 0
        %3435 = vmatprep.subr.bf16.mxu0 0
        %3436 = vmatpush1.bf16.msra.mxu0 0
        %3437 = vmatprep.subr.bf16.mxu0 0
        %3438 = vmatpush1.bf16.msra.mxu0 0
        %3439 = vmatprep.subr.bf16.mxu0 0
        %3440 = vmatpush1.bf16.msra.mxu0 0
        %3441 = vmatprep.subr.bf16.mxu0 0
        %3442 = vmatpush1.bf16.msra.mxu0 0
        %3443 = vmatprep.subr.bf16.mxu0 0
        %3444 = vmatpush1.bf16.msra.mxu0 0
        %3445 = vmatprep.subr.bf16.mxu0 0
        %3446 = vmatpush1.bf16.msra.mxu0 0
        %3447 = vmatprep.subr.bf16.mxu0 0
        %3448 = vmatpush1.bf16.msra.mxu0 0
        %3449 = vmatprep.mubr.bf16.mxu0 0
        %3450 = vmatmul.mubr.bf16.gmra.mrb[0].mxu0 %v2174
        %v3451 = vpop.f32.mrb[0].mxu0
        %v3452 = vadd.f32 %v3291, %v3451
        %v3453 = vpop.f32.mrb[0].mxu0
        %v3454 = vpop.f32.mrb[0].mxu0
        %v3455 = vadd.f32 %v3294, %v3454
        %v3456 = vpop.f32.mrb[0].mxu0
        %3457 = vmatprep.mubr.bf16.mxu0 0
        %3458 = vmatmul.mubr.bf16.gmra.mrb[0].mxu0 %v2175
        %v3459 = vpop.f32.mrb[0].mxu0
        %v3460 = vadd.f32 %v3299, %v3459
        %v3461 = vpop.f32.mrb[0].mxu0
        %v3462 = vpop.f32.mrb[0].mxu0
        %v3463 = vadd.f32 %v3302, %v3462
        %v3464 = vpop.f32.mrb[0].mxu0
        %3465 = vmatprep.mubr.bf16.mxu0 0
        %3466 = vmatmul.mubr.bf16.gmra.mrb[0].mxu0 %v2176
        %v3467 = vpop.f32.mrb[0].mxu0
        %v3468 = vadd.f32 %v3307, %v3467
        %v3469 = vpop.f32.mrb[0].mxu0
        %v3470 = vpop.f32.mrb[0].mxu0
        %v3471 = vadd.f32 %v3310, %v3470
        %v3472 = vpop.f32.mrb[0].mxu0
        %3473 = vmatprep.mubr.bf16.mxu0 0
        %3474 = vmatmul.mubr.bf16.gmra.mrb[0].mxu0 %v2177
        %v3475 = vpop.f32.mrb[0].mxu0
        %v3476 = vadd.f32 %v3315, %v3475
        %v3477 = vpop.f32.mrb[0].mxu0
        %v3478 = vpop.f32.mrb[0].mxu0
        %v3479 = vadd.f32 %v3318, %v3478
        %v3480 = vpop.f32.mrb[0].mxu0
        %3481 = vmatprep.mubr.bf16.mxu0 0
        %3482 = vmatmul.mubr.bf16.gmra.mrb[0].mxu0 %v2178
        %v3483 = vpop.f32.mrb[0].mxu0
        %v3484 = vadd.f32 %v3323, %v3483
        %v3485 = vpop.f32.mrb[0].mxu0
        %v3486 = vpop.f32.mrb[0].mxu0
        %v3487 = vadd.f32 %v3326, %v3486
        %v3488 = vpop.f32.mrb[0].mxu0
        %3489 = vmatprep.mubr.bf16.mxu0 0
        %3490 = vmatmul.mubr.bf16.gmra.mrb[0].mxu0 %v2179
        %v3491 = vpop.f32.mrb[0].mxu0
        %v3492 = vadd.f32 %v3331, %v3491
        %v3493 = vpop.f32.mrb[0].mxu0
        %v3494 = vpop.f32.mrb[0].mxu0
        %v3495 = vadd.f32 %v3334, %v3494
        %v3496 = vpop.f32.mrb[0].mxu0
        %3497 = vmatprep.mubr.bf16.mxu0 0
        %3498 = vmatmul.mubr.bf16.gmra.mrb[0].mxu0 %v2180
        %v3499 = vpop.f32.mrb[0].mxu0
        %v3500 = vadd.f32 %v3339, %v3499
        %v3501 = vpop.f32.mrb[0].mxu0
        %v3502 = vpop.f32.mrb[0].mxu0
        %v3503 = vadd.f32 %v3342, %v3502
        %v3504 = vpop.f32.mrb[0].mxu0
        %3505 = vmatprep.mubr.bf16.mxu0 0
        %3506 = vmatmul.mubr.bf16.gmra.mrb[0].mxu0 %v2181
        %v3507 = vpop.f32.mrb[0].mxu0
        %v3508 = vadd.f32 %v3347, %v3507
        %v3509 = vpop.f32.mrb[0].mxu0
        %v3510 = vpop.f32.mrb[0].mxu0
        %v3511 = vadd.f32 %v3350, %v3510
        %v3512 = vpop.f32.mrb[0].mxu0
        %3513 = vmatprep.mubr.bf16.mxu0 0
        %3514 = vmatmul.mubr.bf16.gmra.mrb[0].mxu0 %v2182
        %v3515 = vpop.f32.mrb[0].mxu0
        %v3516 = vadd.f32 %v3355, %v3515
        %v3517 = vpop.f32.mrb[0].mxu0
        %v3518 = vpop.f32.mrb[0].mxu0
        %v3519 = vadd.f32 %v3358, %v3518
        %v3520 = vpop.f32.mrb[0].mxu0
        %3521 = vmatprep.mubr.bf16.mxu0 0
        %3522 = vmatmul.mubr.bf16.gmra.mrb[0].mxu0 %v2183
        %v3523 = vpop.f32.mrb[0].mxu0
        %v3524 = vadd.f32 %v3363, %v3523
        %v3525 = vpop.f32.mrb[0].mxu0
        %v3526 = vpop.f32.mrb[0].mxu0
        %v3527 = vadd.f32 %v3366, %v3526
        %v3528 = vpop.f32.mrb[0].mxu0
        %3529 = vmatprep.mubr.bf16.mxu0 0
        %3530 = vmatmul.mubr.bf16.gmra.mrb[0].mxu0 %v2184
        %v3531 = vpop.f32.mrb[0].mxu0
        %v3532 = vadd.f32 %v3371, %v3531
        %v3533 = vpop.f32.mrb[0].mxu0
        %v3534 = vpop.f32.mrb[0].mxu0
        %v3535 = vadd.f32 %v3374, %v3534
        %v3536 = vpop.f32.mrb[0].mxu0
        %3537 = vmatprep.mubr.bf16.mxu0 0
        %3538 = vmatmul.mubr.bf16.gmra.mrb[0].mxu0 %v2185
        %v3539 = vpop.f32.mrb[0].mxu0
        %v3540 = vadd.f32 %v3379, %v3539
        %v3541 = vpop.f32.mrb[0].mxu0
        %v3542 = vpop.f32.mrb[0].mxu0
        %v3543 = vadd.f32 %v3382, %v3542
        %v3544 = vpop.f32.mrb[0].mxu0
        %3545 = vmatprep.mubr.bf16.mxu0 0
        %3546 = vmatmul.mubr.bf16.gmra.mrb[0].mxu0 %v2186
        %v3547 = vpop.f32.mrb[0].mxu0
        %v3548 = vadd.f32 %v3387, %v3547
        %v3549 = vpop.f32.mrb[0].mxu0
        %v3550 = vpop.f32.mrb[0].mxu0
        %v3551 = vadd.f32 %v3390, %v3550
        %v3552 = vpop.f32.mrb[0].mxu0
        %3553 = vmatprep.mubr.bf16.mxu0 0
        %3554 = vmatmul.mubr.bf16.gmra.mrb[0].mxu0 %v2187
        %v3555 = vpop.f32.mrb[0].mxu0
        %v3556 = vadd.f32 %v3395, %v3555
        %v3557 = vpop.f32.mrb[0].mxu0
        %v3558 = vpop.f32.mrb[0].mxu0
        %v3559 = vadd.f32 %v3398, %v3558
        %v3560 = vpop.f32.mrb[0].mxu0
        %3561 = vmatprep.mubr.bf16.mxu0 0
        %3562 = vmatmul.mubr.bf16.gmra.mrb[0].mxu0 %v2188
        %v3563 = vpop.f32.mrb[0].mxu0
        %v3564 = vadd.f32 %v3403, %v3563
        %v3565 = vpop.f32.mrb[0].mxu0
        %v3566 = vpop.f32.mrb[0].mxu0
        %v3567 = vadd.f32 %v3406, %v3566
        %v3568 = vpop.f32.mrb[0].mxu0
        %3569 = vmatprep.mubr.bf16.mxu0 0
        %3570 = vmatmul.mubr.bf16.gmra.mrb[0].mxu0 %v2189
        %v3571 = vpop.f32.mrb[0].mxu0
        %v3572 = vadd.f32 %v3411, %v3571
        %v3573 = vpop.f32.mrb[0].mxu0
        %v3574 = vpop.f32.mrb[0].mxu0
        %v3575 = vadd.f32 %v3414, %v3574
        %v3576 = vpop.f32.mrb[0].mxu0
        %3577 = vdwg.mxu0
        %v3578 = vmax.f32 %v3452, 0.0
        %v3579 = vmax.f32 %v3455, 0.0
        %v3580 = vmax.f32 %v3460, 0.0
        %v3581 = vmax.f32 %v3463, 0.0
        %v3582 = vmax.f32 %v3468, 0.0
        %v3583 = vmax.f32 %v3471, 0.0
        %v3584 = vmax.f32 %v3476, 0.0
        %v3585 = vmax.f32 %v3479, 0.0
        %v3586 = vmax.f32 %v3484, 0.0
        %v3587 = vmax.f32 %v3487, 0.0
        %v3588 = vmax.f32 %v3492, 0.0
        %v3589 = vmax.f32 %v3495, 0.0
        %v3590 = vmax.f32 %v3500, 0.0
        %v3591 = vmax.f32 %v3503, 0.0
        %v3592 = vmax.f32 %v3508, 0.0
        %v3593 = vmax.f32 %v3511, 0.0
        %v3594 = vmax.f32 %v3516, 0.0
        %v3595 = vmax.f32 %v3519, 0.0
        %v3596 = vmax.f32 %v3524, 0.0
        %v3597 = vmax.f32 %v3527, 0.0
        %v3598 = vmax.f32 %v3532, 0.0
        %v3599 = vmax.f32 %v3535, 0.0
        %v3600 = vmax.f32 %v3540, 0.0
        %v3601 = vmax.f32 %v3543, 0.0
        %v3602 = vmax.f32 %v3548, 0.0
        %v3603 = vmax.f32 %v3551, 0.0
        %v3604 = vmax.f32 %v3556, 0.0
        %v3605 = vmax.f32 %v3559, 0.0
        %v3606 = vmax.f32 %v3564, 0.0
        %v3607 = vmax.f32 %v3567, 0.0
        %v3608 = vmax.f32 %v3572, 0.0
        %v3609 = vmax.f32 %v3575, 0.0
        %v3610 = vpack.c.bf16 %v3579, %v3578
        %v3611 = vpack.c.bf16 %v3581, %v3580
        %v3612 = vpack.c.bf16 %v3583, %v3582
        %v3613 = vpack.c.bf16 %v3585, %v3584
        %v3614 = vpack.c.bf16 %v3587, %v3586
        %v3615 = vpack.c.bf16 %v3589, %v3588
        %v3616 = vpack.c.bf16 %v3591, %v3590
        %v3617 = vpack.c.bf16 %v3593, %v3592
        %v3618 = vpack.c.bf16 %v3595, %v3594
        %v3619 = vpack.c.bf16 %v3597, %v3596
        %v3620 = vpack.c.bf16 %v3599, %v3598
        %v3621 = vpack.c.bf16 %v3601, %v3600
        %v3622 = vpack.c.bf16 %v3603, %v3602
        %v3623 = vpack.c.bf16 %v3605, %v3604
        %v3624 = vpack.c.bf16 %v3607, %v3606
        %v3625 = vpack.c.bf16 %v3609, %v3608
        %v3626 = vld [vmem:[#allocation8] sm:$0xf]
        %v3627 = vld [vmem:[#allocation8 + $0x4] sm:$0xf]
        %v3628 = vld [vmem:[#allocation8 + $0x8] sm:$0xf]
        %v3629 = vld [vmem:[#allocation8 + $0xc] sm:$0xf]
        %v3630 = vld [vmem:[#allocation8 + $0x10] sm:$0xf]
        %v3631 = vld [vmem:[#allocation8 + $0x14] sm:$0xf]
        %v3632 = vld [vmem:[#allocation8 + $0x18] sm:$0xf]
        %v3633 = vld [vmem:[#allocation8 + $0x1c] sm:$0xf]
        %v3634 = vld [vmem:[#allocation8 + $0x20] sm:$0xf]
        %v3635 = vld [vmem:[#allocation8 + $0x24] sm:$0xf]
        %v3636 = vld [vmem:[#allocation8 + $0x28] sm:$0xf]
        %v3637 = vld [vmem:[#allocation8 + $0x2c] sm:$0xf]
        %v3638 = vld [vmem:[#allocation8 + $0x30] sm:$0xf]
        %v3639 = vld [vmem:[#allocation8 + $0x34] sm:$0xf]
        %v3640 = vld [vmem:[#allocation8 + $0x38] sm:$0xf]
        %v3641 = vld [vmem:[#allocation8 + $0x3c] sm:$0xf]
        %v3642 = vld [vmem:[%s6] sm:$0x1]
        %v3644 = vlaneseq
        %v3645 = vshrl.u32 %v3644, 7
        %v3646 = vsub.s32 0, %v3645
        %v3647 = vrot.slane %v3642, %v3646
        %v3665 = vunpack.c.l.b16 %v3626
        %v3666 = vunpack.c.l.b16 %v3627
        %v3667 = vunpack.c.l.b16 %v3628
        %v3668 = vunpack.c.l.b16 %v3629
        %v3669 = vunpack.c.l.b16 %v3630
        %v3670 = vunpack.c.l.b16 %v3631
        %v3671 = vunpack.c.l.b16 %v3632
        %v3672 = vunpack.c.l.b16 %v3633
        %v3673 = vunpack.c.l.b16 %v3634
        %v3674 = vunpack.c.l.b16 %v3635
        %v3675 = vunpack.c.l.b16 %v3636
        %v3676 = vunpack.c.l.b16 %v3637
        %v3677 = vunpack.c.l.b16 %v3638
        %v3678 = vunpack.c.l.b16 %v3639
        %v3679 = vunpack.c.l.b16 %v3640
        %v3680 = vunpack.c.l.b16 %v3641
        %v3681 = vpack.c.b16 %v3666, %v3665
        %v3682 = vpack.c.b16 %v3668, %v3667
        %v3683 = vpack.c.b16 %v3670, %v3669
        %v3684 = vpack.c.b16 %v3672, %v3671
        %v3685 = vpack.c.b16 %v3674, %v3673
        %v3686 = vpack.c.b16 %v3676, %v3675
        %v3687 = vpack.c.b16 %v3678, %v3677
        %v3688 = vpack.c.b16 %v3680, %v3679
        %3697 = vmatprep.subr.bf16.mxu0 0
        %3698 = vmatpush1.bf16.msra.mxu0 %v3681
        %3699 = vmatprep.subr.bf16.mxu0 0
        %3700 = vmatpush1.bf16.msra.mxu0 %v3682
        %3701 = vmatprep.subr.bf16.mxu0 0
        %3702 = vmatpush1.bf16.msra.mxu0 %v3683
        %3703 = vmatprep.subr.bf16.mxu0 0
        %3704 = vmatpush1.bf16.msra.mxu0 %v3684
        %3705 = vmatprep.subr.bf16.mxu0 0
        %3706 = vmatpush1.bf16.msra.mxu0 %v3685
        %3707 = vmatprep.subr.bf16.mxu0 0
        %3708 = vmatpush1.bf16.msra.mxu0 %v3686
        %3709 = vmatprep.subr.bf16.mxu0 0
        %3710 = vmatpush1.bf16.msra.mxu0 %v3687
        %3711 = vmatprep.subr.bf16.mxu0 0
        %3712 = vmatpush1.bf16.msra.mxu0 %v3688
        %3713 = vmatprep.subr.bf16.mxu0 0
        %3714 = vmatpush1.bf16.msra.mxu0 0
        %3715 = vmatprep.subr.bf16.mxu0 0
        %3716 = vmatpush1.bf16.msra.mxu0 0
        %3717 = vmatprep.subr.bf16.mxu0 0
        %3718 = vmatpush1.bf16.msra.mxu0 0
        %3719 = vmatprep.subr.bf16.mxu0 0
        %3720 = vmatpush1.bf16.msra.mxu0 0
        %3721 = vmatprep.subr.bf16.mxu0 0
        %3722 = vmatpush1.bf16.msra.mxu0 0
        %3723 = vmatprep.subr.bf16.mxu0 0
        %3724 = vmatpush1.bf16.msra.mxu0 0
        %3725 = vmatprep.subr.bf16.mxu0 0
        %3726 = vmatpush1.bf16.msra.mxu0 0
        %3727 = vmatprep.subr.bf16.mxu0 0
        %3728 = vmatpush1.bf16.msra.mxu0 0
        %3729 = vmatprep.mubr.bf16.mxu0 0
        %3730 = vmatmul.mubr.bf16.gmra.mrb[0].mxu0 %v3610
        %v3731 = vpop.f32.mrb[0].mxu0
        %v3732 = vadd.f32 %v3647, %v3731
        %v3733 = vpop.f32.mrb[0].mxu0
        %v3734 = vpop.f32.mrb[0].mxu0
        %v3735 = vadd.f32 %v3647, %v3734
        %v3736 = vpop.f32.mrb[0].mxu0
        %3737 = vmatprep.mubr.bf16.mxu0 0
        %3738 = vmatmul.mubr.bf16.gmra.mrb[0].mxu0 %v3611
        %v3739 = vpop.f32.mrb[0].mxu0
        %v3740 = vadd.f32 %v3647, %v3739
        %v3741 = vpop.f32.mrb[0].mxu0
        %v3742 = vpop.f32.mrb[0].mxu0
        %v3743 = vadd.f32 %v3647, %v3742
        %v3744 = vpop.f32.mrb[0].mxu0
        %3745 = vmatprep.mubr.bf16.mxu0 0
        %3746 = vmatmul.mubr.bf16.gmra.mrb[0].mxu0 %v3612
        %v3747 = vpop.f32.mrb[0].mxu0
        %v3748 = vadd.f32 %v3647, %v3747
        %v3749 = vpop.f32.mrb[0].mxu0
        %v3750 = vpop.f32.mrb[0].mxu0
        %v3751 = vadd.f32 %v3647, %v3750
        %v3752 = vpop.f32.mrb[0].mxu0
        %3753 = vmatprep.mubr.bf16.mxu0 0
        %3754 = vmatmul.mubr.bf16.gmra.mrb[0].mxu0 %v3613
        %v3755 = vpop.f32.mrb[0].mxu0
        %v3756 = vadd.f32 %v3647, %v3755
        %v3757 = vpop.f32.mrb[0].mxu0
        %v3758 = vpop.f32.mrb[0].mxu0
        %v3759 = vadd.f32 %v3647, %v3758
        %v3760 = vpop.f32.mrb[0].mxu0
        %3761 = vmatprep.mubr.bf16.mxu0 0
        %3762 = vmatmul.mubr.bf16.gmra.mrb[0].mxu0 %v3614
        %v3763 = vpop.f32.mrb[0].mxu0
        %v3764 = vadd.f32 %v3647, %v3763
        %v3765 = vpop.f32.mrb[0].mxu0
        %v3766 = vpop.f32.mrb[0].mxu0
        %v3767 = vadd.f32 %v3647, %v3766
        %v3768 = vpop.f32.mrb[0].mxu0
        %3769 = vmatprep.mubr.bf16.mxu0 0
        %3770 = vmatmul.mubr.bf16.gmra.mrb[0].mxu0 %v3615
        %v3771 = vpop.f32.mrb[0].mxu0
        %v3772 = vadd.f32 %v3647, %v3771
        %v3773 = vpop.f32.mrb[0].mxu0
        %v3774 = vpop.f32.mrb[0].mxu0
        %v3775 = vadd.f32 %v3647, %v3774
        %v3776 = vpop.f32.mrb[0].mxu0
        %3777 = vmatprep.mubr.bf16.mxu0 0
        %3778 = vmatmul.mubr.bf16.gmra.mrb[0].mxu0 %v3616
        %v3779 = vpop.f32.mrb[0].mxu0
        %v3780 = vadd.f32 %v3647, %v3779
        %v3781 = vpop.f32.mrb[0].mxu0
        %v3782 = vpop.f32.mrb[0].mxu0
        %v3783 = vadd.f32 %v3647, %v3782
        %v3784 = vpop.f32.mrb[0].mxu0
        %3785 = vmatprep.mubr.bf16.mxu0 0
        %3786 = vmatmul.mubr.bf16.gmra.mrb[0].mxu0 %v3617
        %v3787 = vpop.f32.mrb[0].mxu0
        %v3788 = vadd.f32 %v3647, %v3787
        %v3789 = vpop.f32.mrb[0].mxu0
        %v3790 = vpop.f32.mrb[0].mxu0
        %v3791 = vadd.f32 %v3647, %v3790
        %v3792 = vpop.f32.mrb[0].mxu0
        %3793 = vmatprep.mubr.bf16.mxu0 0
        %3794 = vmatmul.mubr.bf16.gmra.mrb[0].mxu0 %v3618
        %v3795 = vpop.f32.mrb[0].mxu0
        %v3796 = vadd.f32 %v3647, %v3795
        %v3797 = vpop.f32.mrb[0].mxu0
        %v3798 = vpop.f32.mrb[0].mxu0
        %v3799 = vadd.f32 %v3647, %v3798
        %v3800 = vpop.f32.mrb[0].mxu0
        %3801 = vmatprep.mubr.bf16.mxu0 0
        %3802 = vmatmul.mubr.bf16.gmra.mrb[0].mxu0 %v3619
        %v3803 = vpop.f32.mrb[0].mxu0
        %v3804 = vadd.f32 %v3647, %v3803
        %v3805 = vpop.f32.mrb[0].mxu0
        %v3806 = vpop.f32.mrb[0].mxu0
        %v3807 = vadd.f32 %v3647, %v3806
        %v3808 = vpop.f32.mrb[0].mxu0
        %3809 = vmatprep.mubr.bf16.mxu0 0
        %3810 = vmatmul.mubr.bf16.gmra.mrb[0].mxu0 %v3620
        %v3811 = vpop.f32.mrb[0].mxu0
        %v3812 = vadd.f32 %v3647, %v3811
        %v3813 = vpop.f32.mrb[0].mxu0
        %v3814 = vpop.f32.mrb[0].mxu0
        %v3815 = vadd.f32 %v3647, %v3814
        %v3816 = vpop.f32.mrb[0].mxu0
        %3817 = vmatprep.mubr.bf16.mxu0 0
        %3818 = vmatmul.mubr.bf16.gmra.mrb[0].mxu0 %v3621
        %v3819 = vpop.f32.mrb[0].mxu0
        %v3820 = vadd.f32 %v3647, %v3819
        %v3821 = vpop.f32.mrb[0].mxu0
        %v3822 = vpop.f32.mrb[0].mxu0
        %v3823 = vadd.f32 %v3647, %v3822
        %v3824 = vpop.f32.mrb[0].mxu0
        %3825 = vmatprep.mubr.bf16.mxu0 0
        %3826 = vmatmul.mubr.bf16.gmra.mrb[0].mxu0 %v3622
        %v3827 = vpop.f32.mrb[0].mxu0
        %v3828 = vadd.f32 %v3647, %v3827
        %v3829 = vpop.f32.mrb[0].mxu0
        %v3830 = vpop.f32.mrb[0].mxu0
        %v3831 = vadd.f32 %v3647, %v3830
        %v3832 = vpop.f32.mrb[0].mxu0
        %3833 = vmatprep.mubr.bf16.mxu0 0
        %3834 = vmatmul.mubr.bf16.gmra.mrb[0].mxu0 %v3623
        %v3835 = vpop.f32.mrb[0].mxu0
        %v3836 = vadd.f32 %v3647, %v3835
        %v3837 = vpop.f32.mrb[0].mxu0
        %v3838 = vpop.f32.mrb[0].mxu0
        %v3839 = vadd.f32 %v3647, %v3838
        %v3840 = vpop.f32.mrb[0].mxu0
        %3841 = vmatprep.mubr.bf16.mxu0 0
        %3842 = vmatmul.mubr.bf16.gmra.mrb[0].mxu0 %v3624
        %v3843 = vpop.f32.mrb[0].mxu0
        %v3844 = vadd.f32 %v3647, %v3843
        %v3845 = vpop.f32.mrb[0].mxu0
        %v3846 = vpop.f32.mrb[0].mxu0
        %v3847 = vadd.f32 %v3647, %v3846
        %v3848 = vpop.f32.mrb[0].mxu0
        %3849 = vmatprep.mubr.bf16.mxu0 0
        %3850 = vmatmul.mubr.bf16.gmra.mrb[0].mxu0 %v3625
        %v3851 = vpop.f32.mrb[0].mxu0
        %v3852 = vadd.f32 %v3647, %v3851
        %v3853 = vpop.f32.mrb[0].mxu0
        %v3854 = vpop.f32.mrb[0].mxu0
        %v3855 = vadd.f32 %v3647, %v3854
        %v3856 = vpop.f32.mrb[0].mxu0
        %3857 = vdwg.mxu0
        %v3858 = vadd.f32 %v3732, %v3735
        %v3859 = vadd.f32 %v3858, %v3740
        %v3860 = vadd.f32 %v3859, %v3743
        %v3861 = vadd.f32 %v3860, %v3748
        %v3862 = vadd.f32 %v3861, %v3751
        %v3863 = vadd.f32 %v3862, %v3756
        %v3864 = vadd.f32 %v3863, %v3759
        %v3865 = vadd.f32 %v3864, %v3764
        %v3866 = vadd.f32 %v3865, %v3767
        %v3867 = vadd.f32 %v3866, %v3772
        %v3868 = vadd.f32 %v3867, %v3775
        %v3869 = vadd.f32 %v3868, %v3780
        %v3870 = vadd.f32 %v3869, %v3783
        %v3871 = vadd.f32 %v3870, %v3788
        %v3872 = vadd.f32 %v3871, %v3791
        %v3873 = vadd.f32 %v3872, %v3796
        %v3874 = vadd.f32 %v3873, %v3799
        %v3875 = vadd.f32 %v3874, %v3804
        %v3876 = vadd.f32 %v3875, %v3807
        %v3877 = vadd.f32 %v3876, %v3812
        %v3878 = vadd.f32 %v3877, %v3815
        %v3879 = vadd.f32 %v3878, %v3820
        %v3880 = vadd.f32 %v3879, %v3823
        %v3881 = vadd.f32 %v3880, %v3828
        %v3882 = vadd.f32 %v3881, %v3831
        %v3883 = vadd.f32 %v3882, %v3836
        %v3884 = vadd.f32 %v3883, %v3839
        %v3885 = vadd.f32 %v3884, %v3844
        %v3886 = vadd.f32 %v3885, %v3847
        %v3887 = vadd.f32 %v3886, %v3852
        %v3888 = vadd.f32 %v3887, %v3855
        %v3889 = vrot.slane %v3888, 4
        %v3890 = vadd.f32 %v3888, %v3889
        %v3891 = vrot.slane %v3890, 2
        %v3892 = vadd.f32 %v3890, %v3891
        %v3893 = vrot.slane %v3892, 1
        %v3894 = vadd.f32 %v3892, %v3893
        %v3895 = vrcp.pop 256.0
        %v3896 = vmul.f32 %v3894, %v3895
        %v3897 = vmax.f32 %v3732, %v3748
        %v3898 = vmax.f32 %v3735, %v3751
        %v3899 = vmax.f32 %v3740, %v3756
        %v3900 = vmax.f32 %v3743, %v3759
        %v3901 = vmax.f32 %v3897, %v3764
        %v3902 = vmax.f32 %v3898, %v3767
        %v3903 = vmax.f32 %v3899, %v3772
        %v3904 = vmax.f32 %v3900, %v3775
        %v3905 = vmax.f32 %v3901, %v3780
        %v3906 = vmax.f32 %v3902, %v3783
        %v3907 = vmax.f32 %v3903, %v3788
        %v3908 = vmax.f32 %v3904, %v3791
        %v3909 = vmax.f32 %v3905, %v3796
        %v3910 = vmax.f32 %v3906, %v3799
        %v3911 = vmax.f32 %v3907, %v3804
        %v3912 = vmax.f32 %v3908, %v3807
        %v3913 = vmax.f32 %v3909, %v3812
        %v3914 = vmax.f32 %v3910, %v3815
        %v3915 = vmax.f32 %v3911, %v3820
        %v3916 = vmax.f32 %v3912, %v3823
        %v3917 = vmax.f32 %v3913, %v3828
        %v3918 = vmax.f32 %v3914, %v3831
        %v3919 = vmax.f32 %v3915, %v3836
        %v3920 = vmax.f32 %v3916, %v3839
        %v3921 = vmax.f32 %v3917, %v3844
        %v3922 = vmax.f32 %v3918, %v3847
        %v3923 = vmax.f32 %v3919, %v3852
        %v3924 = vmax.f32 %v3920, %v3855
        %v3925 = vmax.f32 %v3921, %v3922
        %v3926 = vmax.f32 %v3923, %v3924
        %v3927 = vmax.f32 %v3925, %v3926
        %v3928 = vrot.slane %v3927, 4
        %v3929 = vmax.f32 %v3927, %v3928
        %v3930 = vrot.slane %v3929, 2
        %v3931 = vmax.f32 %v3929, %v3930
        %v3932 = vrot.slane %v3931, 1
        %v3933 = vmax.f32 %v3931, %v3932
        %vm3934 = vcmask 1040384
        %v3935 = vsel %vm3934, %v3896, %v3933
        %v3936 = vld [vmem:[#allocation9] sm:$0xff]
        %v3937 = vld [vmem:[#allocation9 + $0x8] sm:$0xff]
        %v3938 = vld [vmem:[#allocation9 + $0x10] sm:$0xff]
        %v3939 = vld [vmem:[#allocation9 + $0x18] sm:$0xff]
        %v3940 = vld [vmem:[#allocation9 + $0x20] sm:$0xff]
        %v3941 = vld [vmem:[#allocation9 + $0x28] sm:$0xff]
        %v3942 = vld [vmem:[#allocation9 + $0x30] sm:$0xff]
        %v3943 = vld [vmem:[#allocation9 + $0x38] sm:$0xff]
        %v3944 = vld [vmem:[#allocation9 + $0x40] sm:$0xff]
        %v3945 = vld [vmem:[#allocation9 + $0x48] sm:$0xff]
        %v3946 = vld [vmem:[#allocation9 + $0x50] sm:$0xff]
        %v3947 = vld [vmem:[#allocation9 + $0x58] sm:$0xff]
        %v3948 = vld [vmem:[#allocation9 + $0x60] sm:$0xff]
        %v3949 = vld [vmem:[#allocation9 + $0x68] sm:$0xff]
        %v3950 = vld [vmem:[#allocation9 + $0x70] sm:$0xff]
        %v3951 = vld [vmem:[#allocation9 + $0x78] sm:$0xff]
        %v3952 = vld [vmem:[%s8] sm:$0x1]
        %v3954 = vlaneseq
        %v3955 = vshrl.u32 %v3954, 7
        %v3956 = vsub.s32 0, %v3955
        %v3957 = vrot.slane %v3952, %v3956
        %3959 = vmatprep.subr.mxu0 0.0
        %3960 = vmatpush1.msra.mxu0 %v3936
        %3961 = vmatprep.subr.mxu0 0.0
        %3962 = vmatpush1.msra.mxu0 %v3937
        %3963 = vmatprep.subr.mxu0 0.0
        %3964 = vmatpush1.msra.mxu0 %v3938
        %3965 = vmatprep.subr.mxu0 0.0
        %3966 = vmatpush1.msra.mxu0 %v3939
        %3967 = vmatprep.subr.mxu0 0.0
        %3968 = vmatpush1.msra.mxu0 %v3940
        %3969 = vmatprep.subr.mxu0 0.0
        %3970 = vmatpush1.msra.mxu0 %v3941
        %3971 = vmatprep.subr.mxu0 0.0
        %3972 = vmatpush1.msra.mxu0 %v3942
        %3973 = vmatprep.subr.mxu0 0.0
        %3974 = vmatpush1.msra.mxu0 %v3943
        %3975 = vmatprep.subr.mxu0 0.0
        %3976 = vmatpush1.msra.mxu0 %v3944
        %3977 = vmatprep.subr.mxu0 0.0
        %3978 = vmatpush1.msra.mxu0 %v3945
        %3979 = vmatprep.subr.mxu0 0.0
        %3980 = vmatpush1.msra.mxu0 %v3946
        %3981 = vmatprep.subr.mxu0 0.0
        %3982 = vmatpush1.msra.mxu0 %v3947
        %3983 = vmatprep.subr.mxu0 0.0
        %3984 = vmatpush1.msra.mxu0 %v3948
        %3985 = vmatprep.subr.mxu0 0.0
        %3986 = vmatpush1.msra.mxu0 %v3949
        %3987 = vmatprep.subr.mxu0 0.0
        %3988 = vmatpush1.msra.mxu0 %v3950
        %3989 = vmatprep.subr.mxu0 0.0
        %3990 = vmatpush1.msra.mxu0 %v3951
        %3991 = vmatprep.subr.mxu0 0.0
        %3992 = vmatpush1.msra.mxu0 0.0
        %3993 = vmatprep.subr.mxu0 0.0
        %3994 = vmatpush1.msra.mxu0 0.0
        %3995 = vmatprep.subr.mxu0 0.0
        %3996 = vmatpush1.msra.mxu0 0.0
        %3997 = vmatprep.subr.mxu0 0.0
        %3998 = vmatpush1.msra.mxu0 0.0
        %3999 = vmatprep.subr.mxu0 0.0
        %4000 = vmatpush1.msra.mxu0 0.0
        %4001 = vmatprep.subr.mxu0 0.0
        %4002 = vmatpush1.msra.mxu0 0.0
        %4003 = vmatprep.subr.mxu0 0.0
        %4004 = vmatpush1.msra.mxu0 0.0
        %4005 = vmatprep.subr.mxu0 0.0
        %4006 = vmatpush1.msra.mxu0 0.0
        %4007 = vmatprep.subr.mxu0 0.0
        %4008 = vmatpush1.msra.mxu0 0.0
        %4009 = vmatprep.subr.mxu0 0.0
        %4010 = vmatpush1.msra.mxu0 0.0
        %4011 = vmatprep.subr.mxu0 0.0
        %4012 = vmatpush1.msra.mxu0 0.0
        %4013 = vmatprep.subr.mxu0 0.0
        %4014 = vmatpush1.msra.mxu0 0.0
        %4015 = vmatprep.subr.mxu0 0.0
        %4016 = vmatpush1.msra.mxu0 0.0
        %4017 = vmatprep.subr.mxu0 0.0
        %4018 = vmatpush1.msra.mxu0 0.0
        %4019 = vmatprep.subr.mxu0 0.0
        %4020 = vmatpush1.msra.mxu0 0.0
        %4021 = vmatprep.subr.mxu0 0.0
        %4022 = vmatpush1.msra.mxu0 0.0
        %4023 = vmatprep.mubr.f32.mxu0 0.0
        %4024 = vmatmul.mubr.f32.gmra.mrb[0].mxu0 %v3935
        %v4025 = vpop.f32.mrb[0].mxu0
        %v4026 = vadd.f32 %v3957, %v4025
        %v4027 = vpop.f32.mrb[0].mxu0
        %4028 = vdwg.mxu0
        %v4029 = vmax.f32 %v4026, 0.0
        %v4030 = vld [vmem:[#allocation11] sm:$0xff]
        %v4031 = vld [vmem:[#allocation11 + $0x8] sm:$0xff]
        %v4032 = vld [vmem:[#allocation11 + $0x10] sm:$0xff]
        %v4033 = vld [vmem:[#allocation11 + $0x18] sm:$0xff]
        %v4034 = vld [vmem:[#allocation11 + $0x20] sm:$0xff]
        %v4035 = vld [vmem:[#allocation11 + $0x28] sm:$0xff]
        %v4036 = vld [vmem:[#allocation11 + $0x30] sm:$0xff]
        %v4037 = vld [vmem:[#allocation11 + $0x38] sm:$0xff]
        %v4038 = vld [vmem:[#allocation11 + $0x40] sm:$0xff]
        %v4039 = vld [vmem:[#allocation11 + $0x48] sm:$0xff]
        %v4040 = vld [vmem:[#allocation11 + $0x50] sm:$0xff]
        %v4041 = vld [vmem:[#allocation11 + $0x58] sm:$0xff]
        %v4042 = vld [vmem:[#allocation11 + $0x60] sm:$0xff]
        %v4043 = vld [vmem:[#allocation11 + $0x68] sm:$0xff]
        %v4044 = vld [vmem:[#allocation11 + $0x70] sm:$0xff]
        %v4045 = vld [vmem:[#allocation11 + $0x78] sm:$0xff]
        %v4046 = vld [vmem:[%s10] sm:$0x1]
        %v4048 = vlaneseq
        %v4049 = vshrl.u32 %v4048, 7
        %v4050 = vsub.s32 0, %v4049
        %v4051 = vrot.slane %v4046, %v4050
        %4053 = vmatprep.subr.mxu0 0.0
        %4054 = vmatpush1.msra.mxu0 %v4030
        %4055 = vmatprep.subr.mxu0 0.0
        %4056 = vmatpush1.msra.mxu0 %v4031
        %4057 = vmatprep.subr.mxu0 0.0
        %4058 = vmatpush1.msra.mxu0 %v4032
        %4059 = vmatprep.subr.mxu0 0.0
        %4060 = vmatpush1.msra.mxu0 %v4033
        %4061 = vmatprep.subr.mxu0 0.0
        %4062 = vmatpush1.msra.mxu0 %v4034
        %4063 = vmatprep.subr.mxu0 0.0
        %4064 = vmatpush1.msra.mxu0 %v4035
        %4065 = vmatprep.subr.mxu0 0.0
        %4066 = vmatpush1.msra.mxu0 %v4036
        %4067 = vmatprep.subr.mxu0 0.0
        %4068 = vmatpush1.msra.mxu0 %v4037
        %4069 = vmatprep.subr.mxu0 0.0
        %4070 = vmatpush1.msra.mxu0 %v4038
        %4071 = vmatprep.subr.mxu0 0.0
        %4072 = vmatpush1.msra.mxu0 %v4039
        %4073 = vmatprep.subr.mxu0 0.0
        %4074 = vmatpush1.msra.mxu0 %v4040
        %4075 = vmatprep.subr.mxu0 0.0
        %4076 = vmatpush1.msra.mxu0 %v4041
        %4077 = vmatprep.subr.mxu0 0.0
        %4078 = vmatpush1.msra.mxu0 %v4042
        %4079 = vmatprep.subr.mxu0 0.0
        %4080 = vmatpush1.msra.mxu0 %v4043
        %4081 = vmatprep.subr.mxu0 0.0
        %4082 = vmatpush1.msra.mxu0 %v4044
        %4083 = vmatprep.subr.mxu0 0.0
        %4084 = vmatpush1.msra.mxu0 %v4045
        %4085 = vmatprep.subr.mxu0 0.0
        %4086 = vmatpush1.msra.mxu0 0.0
        %4087 = vmatprep.subr.mxu0 0.0
        %4088 = vmatpush1.msra.mxu0 0.0
        %4089 = vmatprep.subr.mxu0 0.0
        %4090 = vmatpush1.msra.mxu0 0.0
        %4091 = vmatprep.subr.mxu0 0.0
        %4092 = vmatpush1.msra.mxu0 0.0
        %4093 = vmatprep.subr.mxu0 0.0
        %4094 = vmatpush1.msra.mxu0 0.0
        %4095 = vmatprep.subr.mxu0 0.0
        %4096 = vmatpush1.msra.mxu0 0.0
        %4097 = vmatprep.subr.mxu0 0.0
        %4098 = vmatpush1.msra.mxu0 0.0
        %4099 = vmatprep.subr.mxu0 0.0
        %4100 = vmatpush1.msra.mxu0 0.0
        %4101 = vmatprep.subr.mxu0 0.0
        %4102 = vmatpush1.msra.mxu0 0.0
        %4103 = vmatprep.subr.mxu0 0.0
        %4104 = vmatpush1.msra.mxu0 0.0
        %4105 = vmatprep.subr.mxu0 0.0
        %4106 = vmatpush1.msra.mxu0 0.0
        %4107 = vmatprep.subr.mxu0 0.0
        %4108 = vmatpush1.msra.mxu0 0.0
        %4109 = vmatprep.subr.mxu0 0.0
        %4110 = vmatpush1.msra.mxu0 0.0
        %4111 = vmatprep.subr.mxu0 0.0
        %4112 = vmatpush1.msra.mxu0 0.0
        %4113 = vmatprep.subr.mxu0 0.0
        %4114 = vmatpush1.msra.mxu0 0.0
        %4115 = vmatprep.subr.mxu0 0.0
        %4116 = vmatpush1.msra.mxu0 0.0
        %4117 = vmatprep.mubr.f32.mxu0 0.0
        %4118 = vmatmul.mubr.f32.gmra.mrb[0].mxu0 %v4029
        %v4119 = vpop.f32.mrb[0].mxu0
        %v4120 = vadd.f32 %v4051, %v4119
        %v4121 = vpop.f32.mrb[0].mxu0
        %4122 = vdwg.mxu0
        %v4124 = vrot.slane %v4120, 1
        %v4126 = vadd.f32 %v4120, %v4124
        %v4127 = vsub.f32 0.0, %v4126
        %v4128 = vmul.f32 %v4127, 1.442695
        %v4129 = vpow.pop %v4128
        %v4130 = vadd.f32 %v4129, 1.0
        %v4131 = vrcp.pop %v4130
        %v4132 = vmul.f32 1.0, %v4131
        %v4133 = vlaneseq
        %v4134 = vshrl.u32 %v4133, 7
        %v4135 = vsub.s32 0, %v4134
        %v4136 = vrot.slane %v4132, %v4135
        %v4137 = vmul.f32 %v3732, %v4136
        %v4138 = vmul.f32 %v3735, %v4136
        %v4139 = vmul.f32 %v3740, %v4136
        %v4140 = vmul.f32 %v3743, %v4136
        %v4141 = vmul.f32 %v3748, %v4136
        %v4142 = vmul.f32 %v3751, %v4136
        %v4143 = vmul.f32 %v3756, %v4136
        %v4144 = vmul.f32 %v3759, %v4136
        %v4145 = vmul.f32 %v3764, %v4136
        %v4146 = vmul.f32 %v3767, %v4136
        %v4147 = vmul.f32 %v3772, %v4136
        %v4148 = vmul.f32 %v3775, %v4136
        %v4149 = vmul.f32 %v3780, %v4136
        %v4150 = vmul.f32 %v3783, %v4136
        %v4151 = vmul.f32 %v3788, %v4136
        %v4152 = vmul.f32 %v3791, %v4136
        %v4153 = vmul.f32 %v3796, %v4136
        %v4154 = vmul.f32 %v3799, %v4136
        %v4155 = vmul.f32 %v3804, %v4136
        %v4156 = vmul.f32 %v3807, %v4136
        %v4157 = vmul.f32 %v3812, %v4136
        %v4158 = vmul.f32 %v3815, %v4136
        %v4159 = vmul.f32 %v3820, %v4136
        %v4160 = vmul.f32 %v3823, %v4136
        %v4161 = vmul.f32 %v3828, %v4136
        %v4162 = vmul.f32 %v3831, %v4136
        %v4163 = vmul.f32 %v3836, %v4136
        %v4164 = vmul.f32 %v3839, %v4136
        %v4165 = vmul.f32 %v3844, %v4136
        %v4166 = vmul.f32 %v3847, %v4136
        %v4167 = vmul.f32 %v3852, %v4136
        %v4168 = vmul.f32 %v3855, %v4136
        %v4169 = vlaneseq
        %v4170 = vand.u32 %v4169, 127
        %vm4171 = vcmp.lt.s32.totalorder %v4170, 64
        %v4172 = vsel %vm4171, 1, 0
        %vm4173 = vcmp.eq.s32.totalorder %v4172, 1
        %v4174 = vsel %vm4173, %v4137, -1e+30
        %v4175 = vsel %vm4173, %v4138, -1e+30
        %v4176 = vsel %vm4173, %v4139, -1e+30
        %v4177 = vsel %vm4173, %v4140, -1e+30
        %v4178 = vsel %vm4173, %v4141, -1e+30
        %v4179 = vsel %vm4173, %v4142, -1e+30
        %v4180 = vsel %vm4173, %v4143, -1e+30
        %v4181 = vsel %vm4173, %v4144, -1e+30
        %v4182 = vsel %vm4173, %v4145, -1e+30
        %v4183 = vsel %vm4173, %v4146, -1e+30
        %v4184 = vsel %vm4173, %v4147, -1e+30
        %v4185 = vsel %vm4173, %v4148, -1e+30
        %v4186 = vsel %vm4173, %v4149, -1e+30
        %v4187 = vsel %vm4173, %v4150, -1e+30
        %v4188 = vsel %vm4173, %v4151, -1e+30
        %v4189 = vsel %vm4173, %v4152, -1e+30
        %v4190 = vsel %vm4173, %v4153, -1e+30
        %v4191 = vsel %vm4173, %v4154, -1e+30
        %v4192 = vsel %vm4173, %v4155, -1e+30
        %v4193 = vsel %vm4173, %v4156, -1e+30
        %v4194 = vsel %vm4173, %v4157, -1e+30
        %v4195 = vsel %vm4173, %v4158, -1e+30
        %v4196 = vsel %vm4173, %v4159, -1e+30
        %v4197 = vsel %vm4173, %v4160, -1e+30
        %v4198 = vsel %vm4173, %v4161, -1e+30
        %v4199 = vsel %vm4173, %v4162, -1e+30
        %v4200 = vsel %vm4173, %v4163, -1e+30
        %v4201 = vsel %vm4173, %v4164, -1e+30
        %v4202 = vsel %vm4173, %v4165, -1e+30
        %v4203 = vsel %vm4173, %v4166, -1e+30
        %v4204 = vsel %vm4173, %v4167, -1e+30
        %v4205 = vsel %vm4173, %v4168, -1e+30
        %4206 = vmax.xlane.f32.xlu0 %v4174
        %v4207 = vpop.xlane.xlu0 %4206
        %4208 = vmax.xlane.f32.xlu0 %v4175
        %v4209 = vpop.xlane.xlu0 %4208
        %4210 = vmax.xlane.f32.xlu0 %v4176
        %v4211 = vpop.xlane.xlu0 %4210
        %4212 = vmax.xlane.f32.xlu0 %v4177
        %v4213 = vpop.xlane.xlu0 %4212
        %4214 = vmax.xlane.f32.xlu0 %v4178
        %v4215 = vpop.xlane.xlu0 %4214
        %4216 = vmax.xlane.f32.xlu0 %v4179
        %v4217 = vpop.xlane.xlu0 %4216
        %4218 = vmax.xlane.f32.xlu0 %v4180
        %v4219 = vpop.xlane.xlu0 %4218
        %4220 = vmax.xlane.f32.xlu0 %v4181
        %v4221 = vpop.xlane.xlu0 %4220
        %4222 = vmax.xlane.f32.xlu0 %v4182
        %v4223 = vpop.xlane.xlu0 %4222
        %4224 = vmax.xlane.f32.xlu0 %v4183
        %v4225 = vpop.xlane.xlu0 %4224
        %4226 = vmax.xlane.f32.xlu0 %v4184
        %v4227 = vpop.xlane.xlu0 %4226
        %4228 = vmax.xlane.f32.xlu0 %v4185
        %v4229 = vpop.xlane.xlu0 %4228
        %4230 = vmax.xlane.f32.xlu0 %v4186
        %v4231 = vpop.xlane.xlu0 %4230
        %4232 = vmax.xlane.f32.xlu0 %v4187
        %v4233 = vpop.xlane.xlu0 %4232
        %4234 = vmax.xlane.f32.xlu0 %v4188
        %v4235 = vpop.xlane.xlu0 %4234
        %4236 = vmax.xlane.f32.xlu0 %v4189
        %v4237 = vpop.xlane.xlu0 %4236
        %4238 = vmax.xlane.f32.xlu0 %v4190
        %v4239 = vpop.xlane.xlu0 %4238
        %4240 = vmax.xlane.f32.xlu0 %v4191
        %v4241 = vpop.xlane.xlu0 %4240
        %4242 = vmax.xlane.f32.xlu0 %v4192
        %v4243 = vpop.xlane.xlu0 %4242
        %4244 = vmax.xlane.f32.xlu0 %v4193
        %v4245 = vpop.xlane.xlu0 %4244
        %4246 = vmax.xlane.f32.xlu0 %v4194
        %v4247 = vpop.xlane.xlu0 %4246
        %4248 = vmax.xlane.f32.xlu0 %v4195
        %v4249 = vpop.xlane.xlu0 %4248
        %4250 = vmax.xlane.f32.xlu0 %v4196
        %v4251 = vpop.xlane.xlu0 %4250
        %4252 = vmax.xlane.f32.xlu0 %v4197
        %v4253 = vpop.xlane.xlu0 %4252
        %4254 = vmax.xlane.f32.xlu0 %v4198
        %v4255 = vpop.xlane.xlu0 %4254
        %4256 = vmax.xlane.f32.xlu0 %v4199
        %v4257 = vpop.xlane.xlu0 %4256
        %4258 = vmax.xlane.f32.xlu0 %v4200
        %v4259 = vpop.xlane.xlu0 %4258
        %4260 = vmax.xlane.f32.xlu0 %v4201
        %v4261 = vpop.xlane.xlu0 %4260
        %4262 = vmax.xlane.f32.xlu0 %v4202
        %v4263 = vpop.xlane.xlu0 %4262
        %4264 = vmax.xlane.f32.xlu0 %v4203
        %v4265 = vpop.xlane.xlu0 %4264
        %4266 = vmax.xlane.f32.xlu0 %v4204
        %v4267 = vpop.xlane.xlu0 %4266
        %4268 = vmax.xlane.f32.xlu0 %v4205
        %v4269 = vpop.xlane.xlu0 %4268
        %4270 = vadd.xlane.f32.xlu0 %v4137
        %v4271 = vpop.xlane.xlu0 %4270
        %4272 = vadd.xlane.f32.xlu0 %v4138
        %v4273 = vpop.xlane.xlu0 %4272
        %4274 = vadd.xlane.f32.xlu0 %v4139
        %v4275 = vpop.xlane.xlu0 %4274
        %4276 = vadd.xlane.f32.xlu0 %v4140
        %v4277 = vpop.xlane.xlu0 %4276
        %4278 = vadd.xlane.f32.xlu0 %v4141
        %v4279 = vpop.xlane.xlu0 %4278
        %4280 = vadd.xlane.f32.xlu0 %v4142
        %v4281 = vpop.xlane.xlu0 %4280
        %4282 = vadd.xlane.f32.xlu0 %v4143
        %v4283 = vpop.xlane.xlu0 %4282
        %4284 = vadd.xlane.f32.xlu0 %v4144
        %v4285 = vpop.xlane.xlu0 %4284
        %4286 = vadd.xlane.f32.xlu0 %v4145
        %v4287 = vpop.xlane.xlu0 %4286
        %4288 = vadd.xlane.f32.xlu0 %v4146
        %v4289 = vpop.xlane.xlu0 %4288
        %4290 = vadd.xlane.f32.xlu0 %v4147
        %v4291 = vpop.xlane.xlu0 %4290
        %4292 = vadd.xlane.f32.xlu0 %v4148
        %v4293 = vpop.xlane.xlu0 %4292
        %4294 = vadd.xlane.f32.xlu0 %v4149
        %v4295 = vpop.xlane.xlu0 %4294
        %4296 = vadd.xlane.f32.xlu0 %v4150
        %v4297 = vpop.xlane.xlu0 %4296
        %4298 = vadd.xlane.f32.xlu0 %v4151
        %v4299 = vpop.xlane.xlu0 %4298
        %4300 = vadd.xlane.f32.xlu0 %v4152
        %v4301 = vpop.xlane.xlu0 %4300
        %4302 = vadd.xlane.f32.xlu0 %v4153
        %v4303 = vpop.xlane.xlu0 %4302
        %4304 = vadd.xlane.f32.xlu0 %v4154
        %v4305 = vpop.xlane.xlu0 %4304
        %4306 = vadd.xlane.f32.xlu0 %v4155
        %v4307 = vpop.xlane.xlu0 %4306
        %4308 = vadd.xlane.f32.xlu0 %v4156
        %v4309 = vpop.xlane.xlu0 %4308
        %4310 = vadd.xlane.f32.xlu0 %v4157
        %v4311 = vpop.xlane.xlu0 %4310
        %4312 = vadd.xlane.f32.xlu0 %v4158
        %v4313 = vpop.xlane.xlu0 %4312
        %4314 = vadd.xlane.f32.xlu0 %v4159
        %v4315 = vpop.xlane.xlu0 %4314
        %4316 = vadd.xlane.f32.xlu0 %v4160
        %v4317 = vpop.xlane.xlu0 %4316
        %4318 = vadd.xlane.f32.xlu0 %v4161
        %v4319 = vpop.xlane.xlu0 %4318
        %4320 = vadd.xlane.f32.xlu0 %v4162
        %v4321 = vpop.xlane.xlu0 %4320
        %4322 = vadd.xlane.f32.xlu0 %v4163
        %v4323 = vpop.xlane.xlu0 %4322
        %4324 = vadd.xlane.f32.xlu0 %v4164
        %v4325 = vpop.xlane.xlu0 %4324
        %4326 = vadd.xlane.f32.xlu0 %v4165
        %v4327 = vpop.xlane.xlu0 %4326
        %4328 = vadd.xlane.f32.xlu0 %v4166
        %v4329 = vpop.xlane.xlu0 %4328
        %4330 = vadd.xlane.f32.xlu0 %v4167
        %v4331 = vpop.xlane.xlu0 %4330
        %4332 = vadd.xlane.f32.xlu0 %v4168
        %v4333 = vpop.xlane.xlu0 %4332
        %v4334 = vmul.f32 %v4271, 0.015625
        %v4335 = vmul.f32 %v4273, 0.015625
        %v4336 = vmul.f32 %v4275, 0.015625
        %v4337 = vmul.f32 %v4277, 0.015625
        %v4338 = vmul.f32 %v4279, 0.015625
        %v4339 = vmul.f32 %v4281, 0.015625
        %v4340 = vmul.f32 %v4283, 0.015625
        %v4341 = vmul.f32 %v4285, 0.015625
        %v4342 = vmul.f32 %v4287, 0.015625
        %v4343 = vmul.f32 %v4289, 0.015625
        %v4344 = vmul.f32 %v4291, 0.015625
        %v4345 = vmul.f32 %v4293, 0.015625
        %v4346 = vmul.f32 %v4295, 0.015625
        %v4347 = vmul.f32 %v4297, 0.015625
        %v4348 = vmul.f32 %v4299, 0.015625
        %v4349 = vmul.f32 %v4301, 0.015625
        %v4350 = vmul.f32 %v4303, 0.015625
        %v4351 = vmul.f32 %v4305, 0.015625
        %v4352 = vmul.f32 %v4307, 0.015625
        %v4353 = vmul.f32 %v4309, 0.015625
        %v4354 = vmul.f32 %v4311, 0.015625
        %v4355 = vmul.f32 %v4313, 0.015625
        %v4356 = vmul.f32 %v4315, 0.015625
        %v4357 = vmul.f32 %v4317, 0.015625
        %v4358 = vmul.f32 %v4319, 0.015625
        %v4359 = vmul.f32 %v4321, 0.015625
        %v4360 = vmul.f32 %v4323, 0.015625
        %v4361 = vmul.f32 %v4325, 0.015625
        %v4362 = vmul.f32 %v4327, 0.015625
        %v4363 = vmul.f32 %v4329, 0.015625
        %v4364 = vmul.f32 %v4331, 0.015625
        %v4365 = vmul.f32 %v4333, 0.015625
        %v4366 = vld [vmem:[%s11] sm:$0xff]
        %v4367 = vld [vmem:[%s11 + $0x8] sm:$0xff]
        %v4368 = vld [vmem:[%s11 + $0x10] sm:$0xff]
        %v4369 = vld [vmem:[%s11 + $0x18] sm:$0xff]
        %v4370 = vld [vmem:[%s11 + $0x20] sm:$0xff]
        %v4371 = vld [vmem:[%s11 + $0x28] sm:$0xff]
        %v4372 = vld [vmem:[%s11 + $0x30] sm:$0xff]
        %v4373 = vld [vmem:[%s11 + $0x38] sm:$0xff]
        %v4374 = vld [vmem:[%s11 + $0x40] sm:$0xff]
        %v4375 = vld [vmem:[%s11 + $0x48] sm:$0xff]
        %v4376 = vld [vmem:[%s11 + $0x50] sm:$0xff]
        %v4377 = vld [vmem:[%s11 + $0x58] sm:$0xff]
        %v4378 = vld [vmem:[%s11 + $0x60] sm:$0xff]
        %v4379 = vld [vmem:[%s11 + $0x68] sm:$0xff]
        %v4380 = vld [vmem:[%s11 + $0x70] sm:$0xff]
        %v4381 = vld [vmem:[%s11 + $0x78] sm:$0xff]
        %v4382 = vld [vmem:[%s11 + $0x80] sm:$0xff]
        %v4383 = vld [vmem:[%s11 + $0x88] sm:$0xff]
        %v4384 = vld [vmem:[%s11 + $0x90] sm:$0xff]
        %v4385 = vld [vmem:[%s11 + $0x98] sm:$0xff]
        %v4386 = vld [vmem:[%s11 + $0xa0] sm:$0xff]
        %v4387 = vld [vmem:[%s11 + $0xa8] sm:$0xff]
        %v4388 = vld [vmem:[%s11 + $0xb0] sm:$0xff]
        %v4389 = vld [vmem:[%s11 + $0xb8] sm:$0xff]
        %v4390 = vld [vmem:[%s11 + $0xc0] sm:$0xff]
        %v4391 = vld [vmem:[%s11 + $0xc8] sm:$0xff]
        %v4392 = vld [vmem:[%s11 + $0xd0] sm:$0xff]
        %v4393 = vld [vmem:[%s11 + $0xd8] sm:$0xff]
        %v4394 = vld [vmem:[%s11 + $0xe0] sm:$0xff]
        %v4395 = vld [vmem:[%s11 + $0xe8] sm:$0xff]
        %v4396 = vld [vmem:[%s11 + $0xf0] sm:$0xff]
        %v4397 = vld [vmem:[%s11 + $0xf8] sm:$0xff]
        %v4398 = vld [vmem:[%s11 + $0x100] sm:$0xff]
        %v4399 = vld [vmem:[%s11 + $0x108] sm:$0xff]
        %v4400 = vld [vmem:[%s11 + $0x110] sm:$0xff]
        %v4401 = vld [vmem:[%s11 + $0x118] sm:$0xff]
        %v4402 = vld [vmem:[%s11 + $0x120] sm:$0xff]
        %v4403 = vld [vmem:[%s11 + $0x128] sm:$0xff]
        %v4404 = vld [vmem:[%s11 + $0x130] sm:$0xff]
        %v4405 = vld [vmem:[%s11 + $0x138] sm:$0xff]
        %v4406 = vld [vmem:[%s11 + $0x140] sm:$0xff]
        %v4407 = vld [vmem:[%s11 + $0x148] sm:$0xff]
        %v4408 = vld [vmem:[%s11 + $0x150] sm:$0xff]
        %v4409 = vld [vmem:[%s11 + $0x158] sm:$0xff]
        %v4410 = vld [vmem:[%s11 + $0x160] sm:$0xff]
        %v4411 = vld [vmem:[%s11 + $0x168] sm:$0xff]
        %v4412 = vld [vmem:[%s11 + $0x170] sm:$0xff]
        %v4413 = vld [vmem:[%s11 + $0x178] sm:$0xff]
        %v4414 = vld [vmem:[%s11 + $0x180] sm:$0xff]
        %v4415 = vld [vmem:[%s11 + $0x188] sm:$0xff]
        %v4416 = vld [vmem:[%s11 + $0x190] sm:$0xff]
        %v4417 = vld [vmem:[%s11 + $0x198] sm:$0xff]
        %v4418 = vld [vmem:[%s11 + $0x1a0] sm:$0xff]
        %v4419 = vld [vmem:[%s11 + $0x1a8] sm:$0xff]
        %v4420 = vld [vmem:[%s11 + $0x1b0] sm:$0xff]
        %v4421 = vld [vmem:[%s11 + $0x1b8] sm:$0xff]
        %v4422 = vld [vmem:[%s11 + $0x1c0] sm:$0xff]
        %v4423 = vld [vmem:[%s11 + $0x1c8] sm:$0xff]
        %v4424 = vld [vmem:[%s11 + $0x1d0] sm:$0xff]
        %v4425 = vld [vmem:[%s11 + $0x1d8] sm:$0xff]
        %v4426 = vld [vmem:[%s11 + $0x1e0] sm:$0xff]
        %v4427 = vld [vmem:[%s11 + $0x1e8] sm:$0xff]
        %v4428 = vld [vmem:[%s11 + $0x1f0] sm:$0xff]
        %v4429 = vld [vmem:[%s11 + $0x1f8] sm:$0xff]
        %v4430 = vld [vmem:[%s11 + $0x200] sm:$0xff]
        %v4431 = vld [vmem:[%s11 + $0x208] sm:$0xff]
        %v4432 = vld [vmem:[%s11 + $0x210] sm:$0xff]
        %v4433 = vld [vmem:[%s11 + $0x218] sm:$0xff]
        %v4434 = vld [vmem:[%s11 + $0x220] sm:$0xff]
        %v4435 = vld [vmem:[%s11 + $0x228] sm:$0xff]
        %v4436 = vld [vmem:[%s11 + $0x230] sm:$0xff]
        %v4437 = vld [vmem:[%s11 + $0x238] sm:$0xff]
        %v4438 = vld [vmem:[%s11 + $0x240] sm:$0xff]
        %v4439 = vld [vmem:[%s11 + $0x248] sm:$0xff]
        %v4440 = vld [vmem:[%s11 + $0x250] sm:$0xff]
        %v4441 = vld [vmem:[%s11 + $0x258] sm:$0xff]
        %v4442 = vld [vmem:[%s11 + $0x260] sm:$0xff]
        %v4443 = vld [vmem:[%s11 + $0x268] sm:$0xff]
        %v4444 = vld [vmem:[%s11 + $0x270] sm:$0xff]
        %v4445 = vld [vmem:[%s11 + $0x278] sm:$0xff]
        %v4446 = vld [vmem:[%s11 + $0x280] sm:$0xff]
        %v4447 = vld [vmem:[%s11 + $0x288] sm:$0xff]
        %v4448 = vld [vmem:[%s11 + $0x290] sm:$0xff]
        %v4449 = vld [vmem:[%s11 + $0x298] sm:$0xff]
        %v4450 = vld [vmem:[%s11 + $0x2a0] sm:$0xff]
        %v4451 = vld [vmem:[%s11 + $0x2a8] sm:$0xff]
        %v4452 = vld [vmem:[%s11 + $0x2b0] sm:$0xff]
        %v4453 = vld [vmem:[%s11 + $0x2b8] sm:$0xff]
        %v4454 = vld [vmem:[%s11 + $0x2c0] sm:$0xff]
        %v4455 = vld [vmem:[%s11 + $0x2c8] sm:$0xff]
        %v4456 = vld [vmem:[%s11 + $0x2d0] sm:$0xff]
        %v4457 = vld [vmem:[%s11 + $0x2d8] sm:$0xff]
        %v4458 = vld [vmem:[%s11 + $0x2e0] sm:$0xff]
        %v4459 = vld [vmem:[%s11 + $0x2e8] sm:$0xff]
        %v4460 = vld [vmem:[%s11 + $0x2f0] sm:$0xff]
        %v4461 = vld [vmem:[%s11 + $0x2f8] sm:$0xff]
        %v4462 = vld [vmem:[%s11 + $0x300] sm:$0xff]
        %v4463 = vld [vmem:[%s11 + $0x308] sm:$0xff]
        %v4464 = vld [vmem:[%s11 + $0x310] sm:$0xff]
        %v4465 = vld [vmem:[%s11 + $0x318] sm:$0xff]
        %v4466 = vld [vmem:[%s11 + $0x320] sm:$0xff]
        %v4467 = vld [vmem:[%s11 + $0x328] sm:$0xff]
        %v4468 = vld [vmem:[%s11 + $0x330] sm:$0xff]
        %v4469 = vld [vmem:[%s11 + $0x338] sm:$0xff]
        %v4470 = vld [vmem:[%s11 + $0x340] sm:$0xff]
        %v4471 = vld [vmem:[%s11 + $0x348] sm:$0xff]
        %v4472 = vld [vmem:[%s11 + $0x350] sm:$0xff]
        %v4473 = vld [vmem:[%s11 + $0x358] sm:$0xff]
        %v4474 = vld [vmem:[%s11 + $0x360] sm:$0xff]
        %v4475 = vld [vmem:[%s11 + $0x368] sm:$0xff]
        %v4476 = vld [vmem:[%s11 + $0x370] sm:$0xff]
        %v4477 = vld [vmem:[%s11 + $0x378] sm:$0xff]
        %v4478 = vld [vmem:[%s11 + $0x380] sm:$0xff]
        %v4479 = vld [vmem:[%s11 + $0x388] sm:$0xff]
        %v4480 = vld [vmem:[%s11 + $0x390] sm:$0xff]
        %v4481 = vld [vmem:[%s11 + $0x398] sm:$0xff]
        %v4482 = vld [vmem:[%s11 + $0x3a0] sm:$0xff]
        %v4483 = vld [vmem:[%s11 + $0x3a8] sm:$0xff]
        %v4484 = vld [vmem:[%s11 + $0x3b0] sm:$0xff]
        %v4485 = vld [vmem:[%s11 + $0x3b8] sm:$0xff]
        %v4486 = vld [vmem:[%s11 + $0x3c0] sm:$0xff]
        %v4487 = vld [vmem:[%s11 + $0x3c8] sm:$0xff]
        %v4488 = vld [vmem:[%s11 + $0x3d0] sm:$0xff]
        %v4489 = vld [vmem:[%s11 + $0x3d8] sm:$0xff]
        %v4490 = vld [vmem:[%s11 + $0x3e0] sm:$0xff]
        %v4491 = vld [vmem:[%s11 + $0x3e8] sm:$0xff]
        %v4492 = vld [vmem:[%s11 + $0x3f0] sm:$0xff]
        %v4493 = vld [vmem:[%s11 + $0x3f8] sm:$0xff]
        %v4494 = vld [vmem:[#allocation2] sm:$0x1]
        %v4496 = vlaneseq
        %v4497 = vshrl.u32 %v4496, 7
        %v4498 = vsub.s32 0, %v4497
        %v4499 = vrot.slane %v4494, %v4498
        %4501 = vmatprep.subr.mxu0 0.0
        %4502 = vmatpush1.msra.mxu0 %v4207
        %4503 = vmatprep.subr.mxu0 0.0
        %4504 = vmatpush1.msra.mxu0 %v4209
        %4505 = vmatprep.subr.mxu0 0.0
        %4506 = vmatpush1.msra.mxu0 %v4211
        %4507 = vmatprep.subr.mxu0 0.0
        %4508 = vmatpush1.msra.mxu0 %v4213
        %4509 = vmatprep.subr.mxu0 0.0
        %4510 = vmatpush1.msra.mxu0 %v4215
        %4511 = vmatprep.subr.mxu0 0.0
        %4512 = vmatpush1.msra.mxu0 %v4217
        %4513 = vmatprep.subr.mxu0 0.0
        %4514 = vmatpush1.msra.mxu0 %v4219
        %4515 = vmatprep.subr.mxu0 0.0
        %4516 = vmatpush1.msra.mxu0 %v4221
        %4517 = vmatprep.subr.mxu0 0.0
        %4518 = vmatpush1.msra.mxu0 %v4223
        %4519 = vmatprep.subr.mxu0 0.0
        %4520 = vmatpush1.msra.mxu0 %v4225
        %4521 = vmatprep.subr.mxu0 0.0
        %4522 = vmatpush1.msra.mxu0 %v4227
        %4523 = vmatprep.subr.mxu0 0.0
        %4524 = vmatpush1.msra.mxu0 %v4229
        %4525 = vmatprep.subr.mxu0 0.0
        %4526 = vmatpush1.msra.mxu0 %v4231
        %4527 = vmatprep.subr.mxu0 0.0
        %4528 = vmatpush1.msra.mxu0 %v4233
        %4529 = vmatprep.subr.mxu0 0.0
        %4530 = vmatpush1.msra.mxu0 %v4235
        %4531 = vmatprep.subr.mxu0 0.0
        %4532 = vmatpush1.msra.mxu0 %v4237
        %4533 = vmatprep.subr.mxu0 0.0
        %4534 = vmatpush1.msra.mxu0 %v4239
        %4535 = vmatprep.subr.mxu0 0.0
        %4536 = vmatpush1.msra.mxu0 %v4241
        %4537 = vmatprep.subr.mxu0 0.0
        %4538 = vmatpush1.msra.mxu0 %v4243
        %4539 = vmatprep.subr.mxu0 0.0
        %4540 = vmatpush1.msra.mxu0 %v4245
        %4541 = vmatprep.subr.mxu0 0.0
        %4542 = vmatpush1.msra.mxu0 %v4247
        %4543 = vmatprep.subr.mxu0 0.0
        %4544 = vmatpush1.msra.mxu0 %v4249
        %4545 = vmatprep.subr.mxu0 0.0
        %4546 = vmatpush1.msra.mxu0 %v4251
        %4547 = vmatprep.subr.mxu0 0.0
        %4548 = vmatpush1.msra.mxu0 %v4253
        %4549 = vmatprep.subr.mxu0 0.0
        %4550 = vmatpush1.msra.mxu0 %v4255
        %4551 = vmatprep.subr.mxu0 0.0
        %4552 = vmatpush1.msra.mxu0 %v4257
        %4553 = vmatprep.subr.mxu0 0.0
        %4554 = vmatpush1.msra.mxu0 %v4259
        %4555 = vmatprep.subr.mxu0 0.0
        %4556 = vmatpush1.msra.mxu0 %v4261
        %4557 = vmatprep.subr.mxu0 0.0
        %4558 = vmatpush1.msra.mxu0 %v4263
        %4559 = vmatprep.subr.mxu0 0.0
        %4560 = vmatpush1.msra.mxu0 %v4265
        %4561 = vmatprep.subr.mxu0 0.0
        %4562 = vmatpush1.msra.mxu0 %v4267
        %4563 = vmatprep.subr.mxu0 0.0
        %4564 = vmatpush1.msra.mxu0 %v4269
        %4565 = vmatprep.mubr.f32.mxu0 %v4367
        %4566 = vmatmul.mubr.f32.gmra.mrb[0].mxu0 %v4366
        %v4567 = vpop.f32.mrb[0].mxu0
        %v4568 = vadd.f32 %v4499, %v4567
        %v4569 = vpop.f32.mrb[0].mxu0
        %4570 = vmatprep.mubr.f32.mxu0 %v4371
        %4571 = vmatmul.mubr.f32.gmra.mrb[0].mxu0 %v4370
        %v4572 = vpop.f32.mrb[0].mxu0
        %v4573 = vadd.f32 %v4499, %v4572
        %v4574 = vpop.f32.mrb[0].mxu0
        %4575 = vmatprep.mubr.f32.mxu0 %v4375
        %4576 = vmatmul.mubr.f32.gmra.mrb[0].mxu0 %v4374
        %v4577 = vpop.f32.mrb[0].mxu0
        %v4578 = vadd.f32 %v4499, %v4577
        %v4579 = vpop.f32.mrb[0].mxu0
        %4580 = vmatprep.mubr.f32.mxu0 %v4379
        %4581 = vmatmul.mubr.f32.gmra.mrb[0].mxu0 %v4378
        %v4582 = vpop.f32.mrb[0].mxu0
        %v4583 = vadd.f32 %v4499, %v4582
        %v4584 = vpop.f32.mrb[0].mxu0
        %4585 = vmatprep.mubr.f32.mxu0 %v4383
        %4586 = vmatmul.mubr.f32.gmra.mrb[0].mxu0 %v4382
        %v4587 = vpop.f32.mrb[0].mxu0
        %v4588 = vadd.f32 %v4499, %v4587
        %v4589 = vpop.f32.mrb[0].mxu0
        %4590 = vmatprep.mubr.f32.mxu0 %v4387
        %4591 = vmatmul.mubr.f32.gmra.mrb[0].mxu0 %v4386
        %v4592 = vpop.f32.mrb[0].mxu0
        %v4593 = vadd.f32 %v4499, %v4592
        %v4594 = vpop.f32.mrb[0].mxu0
        %4595 = vmatprep.mubr.f32.mxu0 %v4391
        %4596 = vmatmul.mubr.f32.gmra.mrb[0].mxu0 %v4390
        %v4597 = vpop.f32.mrb[0].mxu0
        %v4598 = vadd.f32 %v4499, %v4597
        %v4599 = vpop.f32.mrb[0].mxu0
        %4600 = vmatprep.mubr.f32.mxu0 %v4395
        %4601 = vmatmul.mubr.f32.gmra.mrb[0].mxu0 %v4394
        %v4602 = vpop.f32.mrb[0].mxu0
        %v4603 = vadd.f32 %v4499, %v4602
        %v4604 = vpop.f32.mrb[0].mxu0
        %4605 = vmatprep.mubr.f32.mxu0 %v4399
        %4606 = vmatmul.mubr.f32.gmra.mrb[0].mxu0 %v4398
        %v4607 = vpop.f32.mrb[0].mxu0
        %v4608 = vadd.f32 %v4499, %v4607
        %v4609 = vpop.f32.mrb[0].mxu0
        %4610 = vmatprep.mubr.f32.mxu0 %v4403
        %4611 = vmatmul.mubr.f32.gmra.mrb[0].mxu0 %v4402
        %v4612 = vpop.f32.mrb[0].mxu0
        %v4613 = vadd.f32 %v4499, %v4612
        %v4614 = vpop.f32.mrb[0].mxu0
        %4615 = vmatprep.mubr.f32.mxu0 %v4407
        %4616 = vmatmul.mubr.f32.gmra.mrb[0].mxu0 %v4406
        %v4617 = vpop.f32.mrb[0].mxu0
        %v4618 = vadd.f32 %v4499, %v4617
        %v4619 = vpop.f32.mrb[0].mxu0
        %4620 = vmatprep.mubr.f32.mxu0 %v4411
        %4621 = vmatmul.mubr.f32.gmra.mrb[0].mxu0 %v4410
        %v4622 = vpop.f32.mrb[0].mxu0
        %v4623 = vadd.f32 %v4499, %v4622
        %v4624 = vpop.f32.mrb[0].mxu0
        %4625 = vmatprep.mubr.f32.mxu0 %v4415
        %4626 = vmatmul.mubr.f32.gmra.mrb[0].mxu0 %v4414
        %v4627 = vpop.f32.mrb[0].mxu0
        %v4628 = vadd.f32 %v4499, %v4627
        %v4629 = vpop.f32.mrb[0].mxu0
        %4630 = vmatprep.mubr.f32.mxu0 %v4419
        %4631 = vmatmul.mubr.f32.gmra.mrb[0].mxu0 %v4418
        %v4632 = vpop.f32.mrb[0].mxu0
        %v4633 = vadd.f32 %v4499, %v4632
        %v4634 = vpop.f32.mrb[0].mxu0
        %4635 = vmatprep.mubr.f32.mxu0 %v4423
        %4636 = vmatmul.mubr.f32.gmra.mrb[0].mxu0 %v4422
        %v4637 = vpop.f32.mrb[0].mxu0
        %v4638 = vadd.f32 %v4499, %v4637
        %v4639 = vpop.f32.mrb[0].mxu0
        %4640 = vmatprep.mubr.f32.mxu0 %v4427
        %4641 = vmatmul.mubr.f32.gmra.mrb[0].mxu0 %v4426
        %v4642 = vpop.f32.mrb[0].mxu0
        %v4643 = vadd.f32 %v4499, %v4642
        %v4644 = vpop.f32.mrb[0].mxu0
        %4645 = vmatprep.mubr.f32.mxu0 %v4431
        %4646 = vmatmul.mubr.f32.gmra.mrb[0].mxu0 %v4430
        %v4647 = vpop.f32.mrb[0].mxu0
        %v4648 = vadd.f32 %v4499, %v4647
        %v4649 = vpop.f32.mrb[0].mxu0
        %4650 = vmatprep.mubr.f32.mxu0 %v4435
        %4651 = vmatmul.mubr.f32.gmra.mrb[0].mxu0 %v4434
        %v4652 = vpop.f32.mrb[0].mxu0
        %v4653 = vadd.f32 %v4499, %v4652
        %v4654 = vpop.f32.mrb[0].mxu0
        %4655 = vmatprep.mubr.f32.mxu0 %v4439
        %4656 = vmatmul.mubr.f32.gmra.mrb[0].mxu0 %v4438
        %v4657 = vpop.f32.mrb[0].mxu0
        %v4658 = vadd.f32 %v4499, %v4657
        %v4659 = vpop.f32.mrb[0].mxu0
        %4660 = vmatprep.mubr.f32.mxu0 %v4443
        %4661 = vmatmul.mubr.f32.gmra.mrb[0].mxu0 %v4442
        %v4662 = vpop.f32.mrb[0].mxu0
        %v4663 = vadd.f32 %v4499, %v4662
        %v4664 = vpop.f32.mrb[0].mxu0
        %4665 = vmatprep.mubr.f32.mxu0 %v4447
        %4666 = vmatmul.mubr.f32.gmra.mrb[0].mxu0 %v4446
        %v4667 = vpop.f32.mrb[0].mxu0
        %v4668 = vadd.f32 %v4499, %v4667
        %v4669 = vpop.f32.mrb[0].mxu0
        %4670 = vmatprep.mubr.f32.mxu0 %v4451
        %4671 = vmatmul.mubr.f32.gmra.mrb[0].mxu0 %v4450
        %v4672 = vpop.f32.mrb[0].mxu0
        %v4673 = vadd.f32 %v4499, %v4672
        %v4674 = vpop.f32.mrb[0].mxu0
        %4675 = vmatprep.mubr.f32.mxu0 %v4455
        %4676 = vmatmul.mubr.f32.gmra.mrb[0].mxu0 %v4454
        %v4677 = vpop.f32.mrb[0].mxu0
        %v4678 = vadd.f32 %v4499, %v4677
        %v4679 = vpop.f32.mrb[0].mxu0
        %4680 = vmatprep.mubr.f32.mxu0 %v4459
        %4681 = vmatmul.mubr.f32.gmra.mrb[0].mxu0 %v4458
        %v4682 = vpop.f32.mrb[0].mxu0
        %v4683 = vadd.f32 %v4499, %v4682
        %v4684 = vpop.f32.mrb[0].mxu0
        %4685 = vmatprep.mubr.f32.mxu0 %v4463
        %4686 = vmatmul.mubr.f32.gmra.mrb[0].mxu0 %v4462
        %v4687 = vpop.f32.mrb[0].mxu0
        %v4688 = vadd.f32 %v4499, %v4687
        %v4689 = vpop.f32.mrb[0].mxu0
        %4690 = vmatprep.mubr.f32.mxu0 %v4467
        %4691 = vmatmul.mubr.f32.gmra.mrb[0].mxu0 %v4466
        %v4692 = vpop.f32.mrb[0].mxu0
        %v4693 = vadd.f32 %v4499, %v4692
        %v4694 = vpop.f32.mrb[0].mxu0
        %4695 = vmatprep.mubr.f32.mxu0 %v4471
        %4696 = vmatmul.mubr.f32.gmra.mrb[0].mxu0 %v4470
        %v4697 = vpop.f32.mrb[0].mxu0
        %v4698 = vadd.f32 %v4499, %v4697
        %v4699 = vpop.f32.mrb[0].mxu0
        %4700 = vmatprep.mubr.f32.mxu0 %v4475
        %4701 = vmatmul.mubr.f32.gmra.mrb[0].mxu0 %v4474
        %v4702 = vpop.f32.mrb[0].mxu0
        %v4703 = vadd.f32 %v4499, %v4702
        %v4704 = vpop.f32.mrb[0].mxu0
        %4705 = vmatprep.mubr.f32.mxu0 %v4479
        %4706 = vmatmul.mubr.f32.gmra.mrb[0].mxu0 %v4478
        %v4707 = vpop.f32.mrb[0].mxu0
        %v4708 = vadd.f32 %v4499, %v4707
        %v4709 = vpop.f32.mrb[0].mxu0
        %4710 = vmatprep.mubr.f32.mxu0 %v4483
        %4711 = vmatmul.mubr.f32.gmra.mrb[0].mxu0 %v4482
        %v4712 = vpop.f32.mrb[0].mxu0
        %v4713 = vadd.f32 %v4499, %v4712
        %v4714 = vpop.f32.mrb[0].mxu0
        %4715 = vmatprep.mubr.f32.mxu0 %v4487
        %4716 = vmatmul.mubr.f32.gmra.mrb[0].mxu0 %v4486
        %v4717 = vpop.f32.mrb[0].mxu0
        %v4718 = vadd.f32 %v4499, %v4717
        %v4719 = vpop.f32.mrb[0].mxu0
        %4720 = vmatprep.mubr.f32.mxu0 %v4491
        %4721 = vmatmul.mubr.f32.gmra.mrb[0].mxu0 %v4490
        %v4722 = vpop.f32.mrb[0].mxu0
        %v4723 = vadd.f32 %v4499, %v4722
        %v4724 = vpop.f32.mrb[0].mxu0
        %4725 = vdwg.mxu0
        %4726 = vmatprep.subr.mxu0 0.0
        %4727 = vmatpush1.msra.mxu0 %v4334
        %4728 = vmatprep.subr.mxu0 0.0
        %4729 = vmatpush1.msra.mxu0 %v4335
        %4730 = vmatprep.subr.mxu0 0.0
        %4731 = vmatpush1.msra.mxu0 %v4336
        %4732 = vmatprep.subr.mxu0 0.0
        %4733 = vmatpush1.msra.mxu0 %v4337
        %4734 = vmatprep.subr.mxu0 0.0
        %4735 = vmatpush1.msra.mxu0 %v4338
        %4736 = vmatprep.subr.mxu0 0.0
        %4737 = vmatpush1.msra.mxu0 %v4339
        %4738 = vmatprep.subr.mxu0 0.0
        %4739 = vmatpush1.msra.mxu0 %v4340
        %4740 = vmatprep.subr.mxu0 0.0
        %4741 = vmatpush1.msra.mxu0 %v4341
        %4742 = vmatprep.subr.mxu0 0.0
        %4743 = vmatpush1.msra.mxu0 %v4342
        %4744 = vmatprep.subr.mxu0 0.0
        %4745 = vmatpush1.msra.mxu0 %v4343
        %4746 = vmatprep.subr.mxu0 0.0
        %4747 = vmatpush1.msra.mxu0 %v4344
        %4748 = vmatprep.subr.mxu0 0.0
        %4749 = vmatpush1.msra.mxu0 %v4345
        %4750 = vmatprep.subr.mxu0 0.0
        %4751 = vmatpush1.msra.mxu0 %v4346
        %4752 = vmatprep.subr.mxu0 0.0
        %4753 = vmatpush1.msra.mxu0 %v4347
        %4754 = vmatprep.subr.mxu0 0.0
        %4755 = vmatpush1.msra.mxu0 %v4348
        %4756 = vmatprep.subr.mxu0 0.0
        %4757 = vmatpush1.msra.mxu0 %v4349
        %4758 = vmatprep.subr.mxu0 0.0
        %4759 = vmatpush1.msra.mxu0 %v4350
        %4760 = vmatprep.subr.mxu0 0.0
        %4761 = vmatpush1.msra.mxu0 %v4351
        %4762 = vmatprep.subr.mxu0 0.0
        %4763 = vmatpush1.msra.mxu0 %v4352
        %4764 = vmatprep.subr.mxu0 0.0
        %4765 = vmatpush1.msra.mxu0 %v4353
        %4766 = vmatprep.subr.mxu0 0.0
        %4767 = vmatpush1.msra.mxu0 %v4354
        %4768 = vmatprep.subr.mxu0 0.0
        %4769 = vmatpush1.msra.mxu0 %v4355
        %4770 = vmatprep.subr.mxu0 0.0
        %4771 = vmatpush1.msra.mxu0 %v4356
        %4772 = vmatprep.subr.mxu0 0.0
        %4773 = vmatpush1.msra.mxu0 %v4357
        %4774 = vmatprep.subr.mxu0 0.0
        %4775 = vmatpush1.msra.mxu0 %v4358
        %4776 = vmatprep.subr.mxu0 0.0
        %4777 = vmatpush1.msra.mxu0 %v4359
        %4778 = vmatprep.subr.mxu0 0.0
        %4779 = vmatpush1.msra.mxu0 %v4360
        %4780 = vmatprep.subr.mxu0 0.0
        %4781 = vmatpush1.msra.mxu0 %v4361
        %4782 = vmatprep.subr.mxu0 0.0
        %4783 = vmatpush1.msra.mxu0 %v4362
        %4784 = vmatprep.subr.mxu0 0.0
        %4785 = vmatpush1.msra.mxu0 %v4363
        %4786 = vmatprep.subr.mxu0 0.0
        %4787 = vmatpush1.msra.mxu0 %v4364
        %4788 = vmatprep.subr.mxu0 0.0
        %4789 = vmatpush1.msra.mxu0 %v4365
        %4790 = vmatprep.mubr.f32.mxu0 %v4369
        %4791 = vmatmul.mubr.f32.gmra.mrb[0].mxu0 %v4368
        %v4792 = vpop.f32.mrb[0].mxu0
        %v4793 = vadd.f32 %v4568, %v4792
        %v4794 = vpop.f32.mrb[0].mxu0
        %4795 = vmatprep.mubr.f32.mxu0 %v4373
        %4796 = vmatmul.mubr.f32.gmra.mrb[0].mxu0 %v4372
        %v4797 = vpop.f32.mrb[0].mxu0
        %v4798 = vadd.f32 %v4573, %v4797
        %v4799 = vpop.f32.mrb[0].mxu0
        %4800 = vmatprep.mubr.f32.mxu0 %v4377
        %4801 = vmatmul.mubr.f32.gmra.mrb[0].mxu0 %v4376
        %v4802 = vpop.f32.mrb[0].mxu0
        %v4803 = vadd.f32 %v4578, %v4802
        %v4804 = vpop.f32.mrb[0].mxu0
        %4805 = vmatprep.mubr.f32.mxu0 %v4381
        %4806 = vmatmul.mubr.f32.gmra.mrb[0].mxu0 %v4380
        %v4807 = vpop.f32.mrb[0].mxu0
        %v4808 = vadd.f32 %v4583, %v4807
        %v4809 = vpop.f32.mrb[0].mxu0
        %4810 = vmatprep.mubr.f32.mxu0 %v4385
        %4811 = vmatmul.mubr.f32.gmra.mrb[0].mxu0 %v4384
        %v4812 = vpop.f32.mrb[0].mxu0
        %v4813 = vadd.f32 %v4588, %v4812
        %v4814 = vpop.f32.mrb[0].mxu0
        %4815 = vmatprep.mubr.f32.mxu0 %v4389
        %4816 = vmatmul.mubr.f32.gmra.mrb[0].mxu0 %v4388
        %v4817 = vpop.f32.mrb[0].mxu0
        %v4818 = vadd.f32 %v4593, %v4817
        %v4819 = vpop.f32.mrb[0].mxu0
        %4820 = vmatprep.mubr.f32.mxu0 %v4393
        %4821 = vmatmul.mubr.f32.gmra.mrb[0].mxu0 %v4392
        %v4822 = vpop.f32.mrb[0].mxu0
        %v4823 = vadd.f32 %v4598, %v4822
        %v4824 = vpop.f32.mrb[0].mxu0
        %4825 = vmatprep.mubr.f32.mxu0 %v4397
        %4826 = vmatmul.mubr.f32.gmra.mrb[0].mxu0 %v4396
        %v4827 = vpop.f32.mrb[0].mxu0
        %v4828 = vadd.f32 %v4603, %v4827
        %v4829 = vpop.f32.mrb[0].mxu0
        %4830 = vmatprep.mubr.f32.mxu0 %v4401
        %4831 = vmatmul.mubr.f32.gmra.mrb[0].mxu0 %v4400
        %v4832 = vpop.f32.mrb[0].mxu0
        %v4833 = vadd.f32 %v4608, %v4832
        %v4834 = vpop.f32.mrb[0].mxu0
        %4835 = vmatprep.mubr.f32.mxu0 %v4405
        %4836 = vmatmul.mubr.f32.gmra.mrb[0].mxu0 %v4404
        %v4837 = vpop.f32.mrb[0].mxu0
        %v4838 = vadd.f32 %v4613, %v4837
        %v4839 = vpop.f32.mrb[0].mxu0
        %4840 = vmatprep.mubr.f32.mxu0 %v4409
        %4841 = vmatmul.mubr.f32.gmra.mrb[0].mxu0 %v4408
        %v4842 = vpop.f32.mrb[0].mxu0
        %v4843 = vadd.f32 %v4618, %v4842
        %v4844 = vpop.f32.mrb[0].mxu0
        %4845 = vmatprep.mubr.f32.mxu0 %v4413
        %4846 = vmatmul.mubr.f32.gmra.mrb[0].mxu0 %v4412
        %v4847 = vpop.f32.mrb[0].mxu0
        %v4848 = vadd.f32 %v4623, %v4847
        %v4849 = vpop.f32.mrb[0].mxu0
        %4850 = vmatprep.mubr.f32.mxu0 %v4417
        %4851 = vmatmul.mubr.f32.gmra.mrb[0].mxu0 %v4416
        %v4852 = vpop.f32.mrb[0].mxu0
        %v4853 = vadd.f32 %v4628, %v4852
        %v4854 = vpop.f32.mrb[0].mxu0
        %4855 = vmatprep.mubr.f32.mxu0 %v4421
        %4856 = vmatmul.mubr.f32.gmra.mrb[0].mxu0 %v4420
        %v4857 = vpop.f32.mrb[0].mxu0
        %v4858 = vadd.f32 %v4633, %v4857
        %v4859 = vpop.f32.mrb[0].mxu0
        %4860 = vmatprep.mubr.f32.mxu0 %v4425
        %4861 = vmatmul.mubr.f32.gmra.mrb[0].mxu0 %v4424
        %v4862 = vpop.f32.mrb[0].mxu0
        %v4863 = vadd.f32 %v4638, %v4862
        %v4864 = vpop.f32.mrb[0].mxu0
        %4865 = vmatprep.mubr.f32.mxu0 %v4429
        %4866 = vmatmul.mubr.f32.gmra.mrb[0].mxu0 %v4428
        %v4867 = vpop.f32.mrb[0].mxu0
        %v4868 = vadd.f32 %v4643, %v4867
        %v4869 = vpop.f32.mrb[0].mxu0
        %4870 = vmatprep.mubr.f32.mxu0 %v4433
        %4871 = vmatmul.mubr.f32.gmra.mrb[0].mxu0 %v4432
        %v4872 = vpop.f32.mrb[0].mxu0
        %v4873 = vadd.f32 %v4648, %v4872
        %v4874 = vpop.f32.mrb[0].mxu0
        %4875 = vmatprep.mubr.f32.mxu0 %v4437
        %4876 = vmatmul.mubr.f32.gmra.mrb[0].mxu0 %v4436
        %v4877 = vpop.f32.mrb[0].mxu0
        %v4878 = vadd.f32 %v4653, %v4877
        %v4879 = vpop.f32.mrb[0].mxu0
        %4880 = vmatprep.mubr.f32.mxu0 %v4441
        %4881 = vmatmul.mubr.f32.gmra.mrb[0].mxu0 %v4440
        %v4882 = vpop.f32.mrb[0].mxu0
        %v4883 = vadd.f32 %v4658, %v4882
        %v4884 = vpop.f32.mrb[0].mxu0
        %4885 = vmatprep.mubr.f32.mxu0 %v4445
        %4886 = vmatmul.mubr.f32.gmra.mrb[0].mxu0 %v4444
        %v4887 = vpop.f32.mrb[0].mxu0
        %v4888 = vadd.f32 %v4663, %v4887
        %v4889 = vpop.f32.mrb[0].mxu0
        %4890 = vmatprep.mubr.f32.mxu0 %v4449
        %4891 = vmatmul.mubr.f32.gmra.mrb[0].mxu0 %v4448
        %v4892 = vpop.f32.mrb[0].mxu0
        %v4893 = vadd.f32 %v4668, %v4892
        %v4894 = vpop.f32.mrb[0].mxu0
        %4895 = vmatprep.mubr.f32.mxu0 %v4453
        %4896 = vmatmul.mubr.f32.gmra.mrb[0].mxu0 %v4452
        %v4897 = vpop.f32.mrb[0].mxu0
        %v4898 = vadd.f32 %v4673, %v4897
        %v4899 = vpop.f32.mrb[0].mxu0
        %4900 = vmatprep.mubr.f32.mxu0 %v4457
        %4901 = vmatmul.mubr.f32.gmra.mrb[0].mxu0 %v4456
        %v4902 = vpop.f32.mrb[0].mxu0
        %v4903 = vadd.f32 %v4678, %v4902
        %v4904 = vpop.f32.mrb[0].mxu0
        %4905 = vmatprep.mubr.f32.mxu0 %v4461
        %4906 = vmatmul.mubr.f32.gmra.mrb[0].mxu0 %v4460
        %v4907 = vpop.f32.mrb[0].mxu0
        %v4908 = vadd.f32 %v4683, %v4907
        %v4909 = vpop.f32.mrb[0].mxu0
        %4910 = vmatprep.mubr.f32.mxu0 %v4465
        %4911 = vmatmul.mubr.f32.gmra.mrb[0].mxu0 %v4464
        %v4912 = vpop.f32.mrb[0].mxu0
        %v4913 = vadd.f32 %v4688, %v4912
        %v4914 = vpop.f32.mrb[0].mxu0
        %4915 = vmatprep.mubr.f32.mxu0 %v4469
        %4916 = vmatmul.mubr.f32.gmra.mrb[0].mxu0 %v4468
        %v4917 = vpop.f32.mrb[0].mxu0
        %v4918 = vadd.f32 %v4693, %v4917
        %v4919 = vpop.f32.mrb[0].mxu0
        %4920 = vmatprep.mubr.f32.mxu0 %v4473
        %4921 = vmatmul.mubr.f32.gmra.mrb[0].mxu0 %v4472
        %v4922 = vpop.f32.mrb[0].mxu0
        %v4923 = vadd.f32 %v4698, %v4922
        %v4924 = vpop.f32.mrb[0].mxu0
        %4925 = vmatprep.mubr.f32.mxu0 %v4477
        %4926 = vmatmul.mubr.f32.gmra.mrb[0].mxu0 %v4476
        %v4927 = vpop.f32.mrb[0].mxu0
        %v4928 = vadd.f32 %v4703, %v4927
        %v4929 = vpop.f32.mrb[0].mxu0
        %4930 = vmatprep.mubr.f32.mxu0 %v4481
        %4931 = vmatmul.mubr.f32.gmra.mrb[0].mxu0 %v4480
        %v4932 = vpop.f32.mrb[0].mxu0
        %v4933 = vadd.f32 %v4708, %v4932
        %v4934 = vpop.f32.mrb[0].mxu0
        %4935 = vmatprep.mubr.f32.mxu0 %v4485
        %4936 = vmatmul.mubr.f32.gmra.mrb[0].mxu0 %v4484
        %v4937 = vpop.f32.mrb[0].mxu0
        %v4938 = vadd.f32 %v4713, %v4937
        %v4939 = vpop.f32.mrb[0].mxu0
        %4940 = vmatprep.mubr.f32.mxu0 %v4489
        %4941 = vmatmul.mubr.f32.gmra.mrb[0].mxu0 %v4488
        %v4942 = vpop.f32.mrb[0].mxu0
        %v4943 = vadd.f32 %v4718, %v4942
        %v4944 = vpop.f32.mrb[0].mxu0
        %4945 = vmatprep.mubr.f32.mxu0 %v4493
        %4946 = vmatmul.mubr.f32.gmra.mrb[0].mxu0 %v4492
        %v4947 = vpop.f32.mrb[0].mxu0
        %v4948 = vadd.f32 %v4723, %v4947
        %v4949 = vpop.f32.mrb[0].mxu0
        %4950 = vdwg.mxu0
        %v4951 = vsub.f32 0.0, %v4793
        %v4952 = vsub.f32 0.0, %v4798
        %v4953 = vsub.f32 0.0, %v4803
        %v4954 = vsub.f32 0.0, %v4808
        %v4955 = vsub.f32 0.0, %v4813
        %v4956 = vsub.f32 0.0, %v4818
        %v4957 = vsub.f32 0.0, %v4823
        %v4958 = vsub.f32 0.0, %v4828
        %v4959 = vsub.f32 0.0, %v4833
        %v4960 = vsub.f32 0.0, %v4838
        %v4961 = vsub.f32 0.0, %v4843
        %v4962 = vsub.f32 0.0, %v4848
        %v4963 = vsub.f32 0.0, %v4853
        %v4964 = vsub.f32 0.0, %v4858
        %v4965 = vsub.f32 0.0, %v4863
        %v4966 = vsub.f32 0.0, %v4868
        %v4967 = vsub.f32 0.0, %v4873
        %v4968 = vsub.f32 0.0, %v4878
        %v4969 = vsub.f32 0.0, %v4883
        %v4970 = vsub.f32 0.0, %v4888
        %v4971 = vsub.f32 0.0, %v4893
        %v4972 = vsub.f32 0.0, %v4898
        %v4973 = vsub.f32 0.0, %v4903
        %v4974 = vsub.f32 0.0, %v4908
        %v4975 = vsub.f32 0.0, %v4913
        %v4976 = vsub.f32 0.0, %v4918
        %v4977 = vsub.f32 0.0, %v4923
        %v4978 = vsub.f32 0.0, %v4928
        %v4979 = vsub.f32 0.0, %v4933
        %v4980 = vsub.f32 0.0, %v4938
        %v4981 = vsub.f32 0.0, %v4943
        %v4982 = vsub.f32 0.0, %v4948
        %v4983 = vmul.f32 %v4951, 1.442695
        %v4984 = vpow.pop %v4983
        %v4985 = vmul.f32 %v4952, 1.442695
        %v4986 = vpow.pop %v4985
        %v4987 = vmul.f32 %v4953, 1.442695
        %v4988 = vpow.pop %v4987
        %v4989 = vmul.f32 %v4954, 1.442695
        %v4990 = vpow.pop %v4989
        %v4991 = vmul.f32 %v4955, 1.442695
        %v4992 = vpow.pop %v4991
        %v4993 = vmul.f32 %v4956, 1.442695
        %v4994 = vpow.pop %v4993
        %v4995 = vmul.f32 %v4957, 1.442695
        %v4996 = vpow.pop %v4995
        %v4997 = vmul.f32 %v4958, 1.442695
        %v4998 = vpow.pop %v4997
        %v4999 = vmul.f32 %v4959, 1.442695
        %v5000 = vpow.pop %v4999
        %v5001 = vmul.f32 %v4960, 1.442695
        %v5002 = vpow.pop %v5001
        %v5003 = vmul.f32 %v4961, 1.442695
        %v5004 = vpow.pop %v5003
        %v5005 = vmul.f32 %v4962, 1.442695
        %v5006 = vpow.pop %v5005
        %v5007 = vmul.f32 %v4963, 1.442695
        %v5008 = vpow.pop %v5007
        %v5009 = vmul.f32 %v4964, 1.442695
        %v5010 = vpow.pop %v5009
        %v5011 = vmul.f32 %v4965, 1.442695
        %v5012 = vpow.pop %v5011
        %v5013 = vmul.f32 %v4966, 1.442695
        %v5014 = vpow.pop %v5013
        %v5015 = vmul.f32 %v4967, 1.442695
        %v5016 = vpow.pop %v5015
        %v5017 = vmul.f32 %v4968, 1.442695
        %v5018 = vpow.pop %v5017
        %v5019 = vmul.f32 %v4969, 1.442695
        %v5020 = vpow.pop %v5019
        %v5021 = vmul.f32 %v4970, 1.442695
        %v5022 = vpow.pop %v5021
        %v5023 = vmul.f32 %v4971, 1.442695
        %v5024 = vpow.pop %v5023
        %v5025 = vmul.f32 %v4972, 1.442695
        %v5026 = vpow.pop %v5025
        %v5027 = vmul.f32 %v4973, 1.442695
        %v5028 = vpow.pop %v5027
        %v5029 = vmul.f32 %v4974, 1.442695
        %v5030 = vpow.pop %v5029
        %v5031 = vmul.f32 %v4975, 1.442695
        %v5032 = vpow.pop %v5031
        %v5033 = vmul.f32 %v4976, 1.442695
        %v5034 = vpow.pop %v5033
        %v5035 = vmul.f32 %v4977, 1.442695
        %v5036 = vpow.pop %v5035
        %v5037 = vmul.f32 %v4978, 1.442695
        %v5038 = vpow.pop %v5037
        %v5039 = vmul.f32 %v4979, 1.442695
        %v5040 = vpow.pop %v5039
        %v5041 = vmul.f32 %v4980, 1.442695
        %v5042 = vpow.pop %v5041
        %v5043 = vmul.f32 %v4981, 1.442695
        %v5044 = vpow.pop %v5043
        %v5045 = vmul.f32 %v4982, 1.442695
        %v5046 = vpow.pop %v5045
        %v5047 = vadd.f32 %v4984, 1.0
        %v5048 = vadd.f32 %v4986, 1.0
        %v5049 = vadd.f32 %v4988, 1.0
        %v5050 = vadd.f32 %v4990, 1.0
        %v5051 = vadd.f32 %v4992, 1.0
        %v5052 = vadd.f32 %v4994, 1.0
        %v5053 = vadd.f32 %v4996, 1.0
        %v5054 = vadd.f32 %v4998, 1.0
        %v5055 = vadd.f32 %v5000, 1.0
        %v5056 = vadd.f32 %v5002, 1.0
        %v5057 = vadd.f32 %v5004, 1.0
        %v5058 = vadd.f32 %v5006, 1.0
        %v5059 = vadd.f32 %v5008, 1.0
        %v5060 = vadd.f32 %v5010, 1.0
        %v5061 = vadd.f32 %v5012, 1.0
        %v5062 = vadd.f32 %v5014, 1.0
        %v5063 = vadd.f32 %v5016, 1.0
        %v5064 = vadd.f32 %v5018, 1.0
        %v5065 = vadd.f32 %v5020, 1.0
        %v5066 = vadd.f32 %v5022, 1.0
        %v5067 = vadd.f32 %v5024, 1.0
        %v5068 = vadd.f32 %v5026, 1.0
        %v5069 = vadd.f32 %v5028, 1.0
        %v5070 = vadd.f32 %v5030, 1.0
        %v5071 = vadd.f32 %v5032, 1.0
        %v5072 = vadd.f32 %v5034, 1.0
        %v5073 = vadd.f32 %v5036, 1.0
        %v5074 = vadd.f32 %v5038, 1.0
        %v5075 = vadd.f32 %v5040, 1.0
        %v5076 = vadd.f32 %v5042, 1.0
        %v5077 = vadd.f32 %v5044, 1.0
        %v5078 = vadd.f32 %v5046, 1.0
        %v5079 = vrcp.pop %v5047
        %v5080 = vmul.f32 1.0, %v5079
        %v5081 = vrcp.pop %v5048
        %v5082 = vmul.f32 1.0, %v5081
        %v5083 = vrcp.pop %v5049
        %v5084 = vmul.f32 1.0, %v5083
        %v5085 = vrcp.pop %v5050
        %v5086 = vmul.f32 1.0, %v5085
        %v5087 = vrcp.pop %v5051
        %v5088 = vmul.f32 1.0, %v5087
        %v5089 = vrcp.pop %v5052
        %v5090 = vmul.f32 1.0, %v5089
        %v5091 = vrcp.pop %v5053
        %v5092 = vmul.f32 1.0, %v5091
        %v5093 = vrcp.pop %v5054
        %v5094 = vmul.f32 1.0, %v5093
        %v5095 = vrcp.pop %v5055
        %v5096 = vmul.f32 1.0, %v5095
        %v5097 = vrcp.pop %v5056
        %v5098 = vmul.f32 1.0, %v5097
        %v5099 = vrcp.pop %v5057
        %v5100 = vmul.f32 1.0, %v5099
        %v5101 = vrcp.pop %v5058
        %v5102 = vmul.f32 1.0, %v5101
        %v5103 = vrcp.pop %v5059
        %v5104 = vmul.f32 1.0, %v5103
        %v5105 = vrcp.pop %v5060
        %v5106 = vmul.f32 1.0, %v5105
        %v5107 = vrcp.pop %v5061
        %v5108 = vmul.f32 1.0, %v5107
        %v5109 = vrcp.pop %v5062
        %v5110 = vmul.f32 1.0, %v5109
        %v5111 = vrcp.pop %v5063
        %v5112 = vmul.f32 1.0, %v5111
        %v5113 = vrcp.pop %v5064
        %v5114 = vmul.f32 1.0, %v5113
        %v5115 = vrcp.pop %v5065
        %v5116 = vmul.f32 1.0, %v5115
        %v5117 = vrcp.pop %v5066
        %v5118 = vmul.f32 1.0, %v5117
        %v5119 = vrcp.pop %v5067
        %v5120 = vmul.f32 1.0, %v5119
        %v5121 = vrcp.pop %v5068
        %v5122 = vmul.f32 1.0, %v5121
        %v5123 = vrcp.pop %v5069
        %v5124 = vmul.f32 1.0, %v5123
        %v5125 = vrcp.pop %v5070
        %v5126 = vmul.f32 1.0, %v5125
        %v5127 = vrcp.pop %v5071
        %v5128 = vmul.f32 1.0, %v5127
        %v5129 = vrcp.pop %v5072
        %v5130 = vmul.f32 1.0, %v5129
        %v5131 = vrcp.pop %v5073
        %v5132 = vmul.f32 1.0, %v5131
        %v5133 = vrcp.pop %v5074
        %v5134 = vmul.f32 1.0, %v5133
        %v5135 = vrcp.pop %v5075
        %v5136 = vmul.f32 1.0, %v5135
        %v5137 = vrcp.pop %v5076
        %v5138 = vmul.f32 1.0, %v5137
        %v5139 = vrcp.pop %v5077
        %v5140 = vmul.f32 1.0, %v5139
        %v5141 = vrcp.pop %v5078
        %v5142 = vmul.f32 1.0, %v5141
        %5144 = vset.pattern.permute.xlu0 0
        %5145 = vperm.xlu0 %5144, %v5080
        %v5146 = vpop.permute.xlu0 %5145
        %5149 = vset.pattern.permute.xlu0 0
        %5150 = vperm.xlu0 %5149, %v5082
        %v5151 = vpop.permute.xlu0 %5150
        %5154 = vset.pattern.permute.xlu0 0
        %5155 = vperm.xlu0 %5154, %v5084
        %v5156 = vpop.permute.xlu0 %5155
        %5159 = vset.pattern.permute.xlu0 0
        %5160 = vperm.xlu0 %5159, %v5086
        %v5161 = vpop.permute.xlu0 %5160
        %5164 = vset.pattern.permute.xlu0 0
        %5165 = vperm.xlu0 %5164, %v5088
        %v5166 = vpop.permute.xlu0 %5165
        %5169 = vset.pattern.permute.xlu0 0
        %5170 = vperm.xlu0 %5169, %v5090
        %v5171 = vpop.permute.xlu0 %5170
        %5174 = vset.pattern.permute.xlu0 0
        %5175 = vperm.xlu0 %5174, %v5092
        %v5176 = vpop.permute.xlu0 %5175
        %5179 = vset.pattern.permute.xlu0 0
        %5180 = vperm.xlu0 %5179, %v5094
        %v5181 = vpop.permute.xlu0 %5180
        %5184 = vset.pattern.permute.xlu0 0
        %5185 = vperm.xlu0 %5184, %v5096
        %v5186 = vpop.permute.xlu0 %5185
        %5189 = vset.pattern.permute.xlu0 0
        %5190 = vperm.xlu0 %5189, %v5098
        %v5191 = vpop.permute.xlu0 %5190
        %5194 = vset.pattern.permute.xlu0 0
        %5195 = vperm.xlu0 %5194, %v5100
        %v5196 = vpop.permute.xlu0 %5195
        %5199 = vset.pattern.permute.xlu0 0
        %5200 = vperm.xlu0 %5199, %v5102
        %v5201 = vpop.permute.xlu0 %5200
        %5204 = vset.pattern.permute.xlu0 0
        %5205 = vperm.xlu0 %5204, %v5104
        %v5206 = vpop.permute.xlu0 %5205
        %5209 = vset.pattern.permute.xlu0 0
        %5210 = vperm.xlu0 %5209, %v5106
        %v5211 = vpop.permute.xlu0 %5210
        %5214 = vset.pattern.permute.xlu0 0
        %5215 = vperm.xlu0 %5214, %v5108
        %v5216 = vpop.permute.xlu0 %5215
        %5219 = vset.pattern.permute.xlu0 0
        %5220 = vperm.xlu0 %5219, %v5110
        %v5221 = vpop.permute.xlu0 %5220
        %5224 = vset.pattern.permute.xlu0 0
        %5225 = vperm.xlu0 %5224, %v5112
        %v5226 = vpop.permute.xlu0 %5225
        %5229 = vset.pattern.permute.xlu0 0
        %5230 = vperm.xlu0 %5229, %v5114
        %v5231 = vpop.permute.xlu0 %5230
        %5234 = vset.pattern.permute.xlu0 0
        %5235 = vperm.xlu0 %5234, %v5116
        %v5236 = vpop.permute.xlu0 %5235
        %5239 = vset.pattern.permute.xlu0 0
        %5240 = vperm.xlu0 %5239, %v5118
        %v5241 = vpop.permute.xlu0 %5240
        %5244 = vset.pattern.permute.xlu0 0
        %5245 = vperm.xlu0 %5244, %v5120
        %v5246 = vpop.permute.xlu0 %5245
        %5249 = vset.pattern.permute.xlu0 0
        %5250 = vperm.xlu0 %5249, %v5122
        %v5251 = vpop.permute.xlu0 %5250
        %5254 = vset.pattern.permute.xlu0 0
        %5255 = vperm.xlu0 %5254, %v5124
        %v5256 = vpop.permute.xlu0 %5255
        %5259 = vset.pattern.permute.xlu0 0
        %5260 = vperm.xlu0 %5259, %v5126
        %v5261 = vpop.permute.xlu0 %5260
        %5264 = vset.pattern.permute.xlu0 0
        %5265 = vperm.xlu0 %5264, %v5128
        %v5266 = vpop.permute.xlu0 %5265
        %5269 = vset.pattern.permute.xlu0 0
        %5270 = vperm.xlu0 %5269, %v5130
        %v5271 = vpop.permute.xlu0 %5270
        %5274 = vset.pattern.permute.xlu0 0
        %5275 = vperm.xlu0 %5274, %v5132
        %v5276 = vpop.permute.xlu0 %5275
        %5279 = vset.pattern.permute.xlu0 0
        %5280 = vperm.xlu0 %5279, %v5134
        %v5281 = vpop.permute.xlu0 %5280
        %5284 = vset.pattern.permute.xlu0 0
        %5285 = vperm.xlu0 %5284, %v5136
        %v5286 = vpop.permute.xlu0 %5285
        %5289 = vset.pattern.permute.xlu0 0
        %5290 = vperm.xlu0 %5289, %v5138
        %v5291 = vpop.permute.xlu0 %5290
        %5294 = vset.pattern.permute.xlu0 0
        %5295 = vperm.xlu0 %5294, %v5140
        %v5296 = vpop.permute.xlu0 %5295
        %5299 = vset.pattern.permute.xlu0 0
        %5300 = vperm.xlu0 %5299, %v5142
        %v5301 = vpop.permute.xlu0 %5300
        %v5303 = vmul.f32 %v4137, %v5146
        %v5304 = vmul.f32 %v4138, %v5151
        %v5305 = vmul.f32 %v4139, %v5156
        %v5306 = vmul.f32 %v4140, %v5161
        %v5307 = vmul.f32 %v4141, %v5166
        %v5308 = vmul.f32 %v4142, %v5171
        %v5309 = vmul.f32 %v4143, %v5176
        %v5310 = vmul.f32 %v4144, %v5181
        %v5311 = vmul.f32 %v4145, %v5186
        %v5312 = vmul.f32 %v4146, %v5191
        %v5313 = vmul.f32 %v4147, %v5196
        %v5314 = vmul.f32 %v4148, %v5201
        %v5315 = vmul.f32 %v4149, %v5206
        %v5316 = vmul.f32 %v4150, %v5211
        %v5317 = vmul.f32 %v4151, %v5216
        %v5318 = vmul.f32 %v4152, %v5221
        %v5319 = vmul.f32 %v4153, %v5226
        %v5320 = vmul.f32 %v4154, %v5231
        %v5321 = vmul.f32 %v4155, %v5236
        %v5322 = vmul.f32 %v4156, %v5241
        %v5323 = vmul.f32 %v4157, %v5246
        %v5324 = vmul.f32 %v4158, %v5251
        %v5325 = vmul.f32 %v4159, %v5256
        %v5326 = vmul.f32 %v4160, %v5261
        %v5327 = vmul.f32 %v4161, %v5266
        %v5328 = vmul.f32 %v4162, %v5271
        %v5329 = vmul.f32 %v4163, %v5276
        %v5330 = vmul.f32 %v4164, %v5281
        %v5331 = vmul.f32 %v4165, %v5286
        %v5332 = vmul.f32 %v4166, %v5291
        %v5333 = vmul.f32 %v4167, %v5296
        %v5334 = vmul.f32 %v4168, %v5301
        %v5335 = vadd.f32 %v5303, %v515
        %v5336 = vadd.f32 %v5304, %v516
        %v5337 = vadd.f32 %v5305, %v517
        %v5338 = vadd.f32 %v5306, %v518
        %v5339 = vadd.f32 %v5307, %v519
        %v5340 = vadd.f32 %v5308, %v520
        %v5341 = vadd.f32 %v5309, %v521
        %v5342 = vadd.f32 %v5310, %v522
        %v5343 = vadd.f32 %v5311, %v523
        %v5344 = vadd.f32 %v5312, %v524
        %v5345 = vadd.f32 %v5313, %v525
        %v5346 = vadd.f32 %v5314, %v526
        %v5347 = vadd.f32 %v5315, %v527
        %v5348 = vadd.f32 %v5316, %v528
        %v5349 = vadd.f32 %v5317, %v529
        %v5350 = vadd.f32 %v5318, %v530
        %v5351 = vadd.f32 %v5319, %v531
        %v5352 = vadd.f32 %v5320, %v532
        %v5353 = vadd.f32 %v5321, %v533
        %v5354 = vadd.f32 %v5322, %v534
        %v5355 = vadd.f32 %v5323, %v535
        %v5356 = vadd.f32 %v5324, %v536
        %v5357 = vadd.f32 %v5325, %v537
        %v5358 = vadd.f32 %v5326, %v538
        %v5359 = vadd.f32 %v5327, %v539
        %v5360 = vadd.f32 %v5328, %v540
        %v5361 = vadd.f32 %v5329, %v541
        %v5362 = vadd.f32 %v5330, %v542
        %v5363 = vadd.f32 %v5331, %v543
        %v5364 = vadd.f32 %v5332, %v544
        %v5365 = vadd.f32 %v5333, %v545
        %v5366 = vadd.f32 %v5334, %v546
        %v5367 = vmax.f32 %v5335, 0.0
        %v5368 = vmax.f32 %v5336, 0.0
        %v5369 = vmax.f32 %v5337, 0.0
        %v5370 = vmax.f32 %v5338, 0.0
        %v5371 = vmax.f32 %v5339, 0.0
        %v5372 = vmax.f32 %v5340, 0.0
        %v5373 = vmax.f32 %v5341, 0.0
        %v5374 = vmax.f32 %v5342, 0.0
        %v5375 = vmax.f32 %v5343, 0.0
        %v5376 = vmax.f32 %v5344, 0.0
        %v5377 = vmax.f32 %v5345, 0.0
        %v5378 = vmax.f32 %v5346, 0.0
        %v5379 = vmax.f32 %v5347, 0.0
        %v5380 = vmax.f32 %v5348, 0.0
        %v5381 = vmax.f32 %v5349, 0.0
        %v5382 = vmax.f32 %v5350, 0.0
        %v5383 = vmax.f32 %v5351, 0.0
        %v5384 = vmax.f32 %v5352, 0.0
        %v5385 = vmax.f32 %v5353, 0.0
        %v5386 = vmax.f32 %v5354, 0.0
        %v5387 = vmax.f32 %v5355, 0.0
        %v5388 = vmax.f32 %v5356, 0.0
        %v5389 = vmax.f32 %v5357, 0.0
        %v5390 = vmax.f32 %v5358, 0.0
        %v5391 = vmax.f32 %v5359, 0.0
        %v5392 = vmax.f32 %v5360, 0.0
        %v5393 = vmax.f32 %v5361, 0.0
        %v5394 = vmax.f32 %v5362, 0.0
        %v5395 = vmax.f32 %v5363, 0.0
        %v5396 = vmax.f32 %v5364, 0.0
        %v5397 = vmax.f32 %v5365, 0.0
        %v5398 = vmax.f32 %v5366, 0.0
        %5399 = vst [vmem:[%s508] sm:$0xff] %v5367
        %5400 = vst [vmem:[%s508 + $0x8] sm:$0xff] %v5368
        %5401 = vst [vmem:[%s508 + $0x10] sm:$0xff] %v5369
        %5402 = vst [vmem:[%s508 + $0x18] sm:$0xff] %v5370
        %5403 = vst [vmem:[%s508 + $0x20] sm:$0xff] %v5371
        %5404 = vst [vmem:[%s508 + $0x28] sm:$0xff] %v5372
        %5405 = vst [vmem:[%s508 + $0x30] sm:$0xff] %v5373
        %5406 = vst [vmem:[%s508 + $0x38] sm:$0xff] %v5374
        %5407 = vst [vmem:[%s508 + $0x40] sm:$0xff] %v5375
        %5408 = vst [vmem:[%s508 + $0x48] sm:$0xff] %v5376
        %5409 = vst [vmem:[%s508 + $0x50] sm:$0xff] %v5377
        %5410 = vst [vmem:[%s508 + $0x58] sm:$0xff] %v5378
        %5411 = vst [vmem:[%s508 + $0x60] sm:$0xff] %v5379
        %5412 = vst [vmem:[%s508 + $0x68] sm:$0xff] %v5380
        %5413 = vst [vmem:[%s508 + $0x70] sm:$0xff] %v5381
        %5414 = vst [vmem:[%s508 + $0x78] sm:$0xff] %v5382
        %5415 = vst [vmem:[%s508 + $0x80] sm:$0xff] %v5383
        %5416 = vst [vmem:[%s508 + $0x88] sm:$0xff] %v5384
        %5417 = vst [vmem:[%s508 + $0x90] sm:$0xff] %v5385
        %5418 = vst [vmem:[%s508 + $0x98] sm:$0xff] %v5386
        %5419 = vst [vmem:[%s508 + $0xa0] sm:$0xff] %v5387
        %5420 = vst [vmem:[%s508 + $0xa8] sm:$0xff] %v5388
        %5421 = vst [vmem:[%s508 + $0xb0] sm:$0xff] %v5389
        %5422 = vst [vmem:[%s508 + $0xb8] sm:$0xff] %v5390
        %5423 = vst [vmem:[%s508 + $0xc0] sm:$0xff] %v5391
        %5424 = vst [vmem:[%s508 + $0xc8] sm:$0xff] %v5392
        %5425 = vst [vmem:[%s508 + $0xd0] sm:$0xff] %v5393
        %5426 = vst [vmem:[%s508 + $0xd8] sm:$0xff] %v5394
        %5427 = vst [vmem:[%s508 + $0xe0] sm:$0xff] %v5395
        %5428 = vst [vmem:[%s508 + $0xe8] sm:$0xff] %v5396
        %5429 = vst [vmem:[%s508 + $0xf0] sm:$0xff] %v5397
        %5430 = vst [vmem:[%s508 + $0xf8] sm:$0xff] %v5398
        %s5431 = sand.u32 %s318, 1
        %s5432 = scalar_lea.sflag [#allocation5], %s5431
        %s5433 = sand.u32 %s318, 1
        %s5434 = smul.addr %s5433, 256
        %s5435 = scalar_lea.vmem [#allocation12], %s5434
        // Predicated region
        $region93: #{bottleneck_forward.1} parent=71 // pred_check
          %p5436 = pneg %p328
        $region94: #{bottleneck_forward.1} parent=71 // pred_check_branch
          %5438 = sbr.rel (%p5436) target = $region96
        $region95: #{bottleneck_forward.1} parent=71 // pred_region
          %s5440 = ssub.s32 4096, 4096
          %5441 = vsyncadd %s5432, %s5440
          %s5442 = smul.addr %s32, 32
          %s5443 = smul.addr %s5442, 128
          %s5444 = scalar_lea.hbm %s13, %s5443
          %s5445 = sshll.u32 %s5435, 4
          %s5446 = int_to_ptr.vmem [resolvable:$true] %s5445
          %5451 = dma.vmem_to_hbm [thread:$0]  %s5446, 4096, %s5444, %s5432, 128, 128, 8
        $region96: #{bottleneck_forward.1} parent=71 // pred_fallthru
          _
      $region72: #{bottleneck_forward.1} parent=5 // pred_fallthru
        _
      %p5452 = scmp.le.s32.totalorder 2, %s27
      // Predicated region
      $region97: #{bottleneck_forward.1} parent=5 // pred_check
        %p5453 = pneg %p5452
      $region98: #{bottleneck_forward.1} parent=5 // pred_check_branch
        %5455 = sbr.rel (%p5453) target = $region100
      $region99: #{bottleneck_forward.1} parent=5 // pred_region
        %s5456 = ssub.s32 %s27, 2
        // Predicated region
        $region101: #{bottleneck_forward.1} parent=99 // pred_check
          %p5457 = pneg %p334
        $region102: #{bottleneck_forward.1} parent=99 // pred_check_branch
          %5459 = sbr.rel (%p5457) target = $region104
        $region103: #{bottleneck_forward.1} parent=99 // pred_region
          %s5460 = sand.u32 %s319, 1
          %s5461 = scalar_lea.sflag [#allocation5], %s5460
          %s5462 = sand.u32 %s319, 1
          %s5463 = smul.addr %s5462, 256
          %s5464 = scalar_lea.vmem [#allocation12], %s5463
          %5465 = dma.done %s5461, 4096
        $region104: #{bottleneck_forward.1} parent=99 // pred_fallthru
          _
      $region100: #{bottleneck_forward.1} parent=5 // pred_fallthru
        _
    $region6: #{bottleneck_forward.1} parent=1 // loop_footer
      %s31 = sadd.s32 1, %s27
    $region7: #{bottleneck_forward.1} parent=1 // loop_footer_branch
      %26 = sbr.rel target = $region3
    $region8: #{bottleneck_forward.1} parent=1 // loop_exit
      _
    %5466 = vsyncpa [#allocation4], 1
    %s5467 = scalar_lea.sflag [#allocation4], 1
    %5468 = vsyncpa %s5467, 1
    %5469 = vsyncpa [#allocation7], 1
    %5470 = vsyncpa [#allocation10], 1
    %5471 = vsyncpa [#allocation5], 1
    %s5472 = scalar_lea.sflag [#allocation5], 1
    %5473 = vsyncpa %s5472, 1

</llo_original>
